<compile_context>
chip_gen: v7x
topology: tpu7x:2x2x1
jax: 0.10.0
libtpu: 0.0.40
codegen_flags: <defaults>
</compile_context>

<pallas_src>
import functools

import jax
import jax.numpy as jnp
from jax import lax
from jax.experimental import pallas as pl
from jax.experimental.pallas import tpu as pltpu

OPAD = 128  # lane-padded width of the logits


def _round_up(n, m):
    return ((n + m - 1) // m) * m


# ----------------------------------------------------------------------------
# Fused kernel: one image per grid step, everything resident in VMEM.
# ----------------------------------------------------------------------------
def _fused_kernel(x_ref, w1_ref, b1_ref, w2_ref, b2_ref, w3_ref, b3_ref,
                  w4_ref, b4_ref, ma_ref, mb_ref, s1_ref, s2_ref,
                  wl_ref, bl_ref, o_ref, p_ref, *, W):
    """Refs (per grid step):
      x_ref : (1, Cin, L1)        flattened + lane-padded input image
      wK    : (Cout, 9*CinK)      im2col-packed conv weights
      bK    : (Cout, 1)           conv bias
      ma/mb : (9, L1) / (9, L2)   per-tap zero-padding masks (block 1 / block 2)
      s1/s2 : (L1, L2) / (L2, L3) 0/1 max-pool decimation matrices
      wl    : (Cout, L3, OPAD)    classifier weights (PyTorch (C,H,W) order)
      bl    : (1, OPAD)           classifier bias (zero padded)
      o_ref : (1, 1, OPAD)        logits (lane padded)
      p_ref : (9*Cout, L1)        VMEM scratch for the im2col matrix
    """

    def conv3x3_relu(a, w_ref, b_ref, m_ref, width):
        cin, lanes = a.shape
        # Build the im2col matrix (9*cin, lanes) in VMEM scratch: each tap is a
        # lane-roll of the activation with out-of-image lanes masked to zero
        # (== "same" zero padding, done in-kernel).
        for dy in range(3):
            for dx in range(3):
                tap = dy * 3 + dx
                off = (dy - 1) * width + (dx - 1)
                shifted = a if off == 0 else pltpu.roll(a, (-off) % lanes, axis=1)
                p_ref[tap * cin:(tap + 1) * cin, :lanes] = (
                    shifted * m_ref[tap:tap + 1, :])
        # Single K = 9*Cin matmul on the MXU, M = Cout, N = lanes (lane dense).
        acc = jnp.dot(w_ref[...], p_ref[:9 * cin, :lanes],
                      preferred_element_type=jnp.float32)
        return jnp.maximum(acc + b_ref[...], 0.0)

    def maxpool2x2(a, width, s_ref):
        lanes = a.shape[1]
        right = pltpu.roll(a, lanes - 1, axis=1)          # a[hw + 1]
        down = pltpu.roll(a, lanes - width, axis=1)       # a[hw + width]
        diag = pltpu.roll(a, lanes - width - 1, axis=1)   # a[hw + width + 1]
        m = jnp.maximum(jnp.maximum(a, right), jnp.maximum(down, diag))
        # Exact decimation (pick the max at each 2x2 top-left corner) as a
        # matmul with a constant 0/1 selection matrix.
        return jnp.dot(m, s_ref[...], preferred_element_type=jnp.float32)

    x = x_ref[0]                                      # (Cin, L1)
    a = conv3x3_relu(x, w1_ref, b1_ref, ma_ref, W)    # (hid, L1)
    a = conv3x3_relu(a, w2_ref, b2_ref, ma_ref, W)
    a = maxpool2x2(a, W, s1_ref)                      # (hid, L2)
    width2 = W // 2
    a = conv3x3_relu(a, w3_ref, b3_ref, mb_ref, width2)
    a = conv3x3_relu(a, w4_ref, b4_ref, mb_ref, width2)
    a = maxpool2x2(a, width2, s2_ref)                 # (hid, L3)

    # Classifier: logits = bias + sum_c a[c, :] @ wl[c]; the PyTorch (C, H, W)
    # flatten order is baked into wl at pack time, so no transpose/flatten here.
    hid = a.shape[0]
    logits = bl_ref[...]                              # (1, OPAD)
    for c in range(hid):
        logits = logits + jnp.dot(a[c:c + 1, :], wl_ref[c],
                                  preferred_element_type=jnp.float32)
    o_ref[0] = logits


# ----------------------------------------------------------------------------
# Parameter packing (one-time, at init) and host-side constant tables.
# ----------------------------------------------------------------------------
def _conv_boundary_masks(H, W, lanes):
    """(9, lanes) f32: mask[dy*3+dx, y*W+x] = 1 iff tap (dy-1, dx-1) of output
    pixel (y, x) lands inside the image (zero padding handled via the mask)."""
    y = jnp.arange(H)[:, None]
    x = jnp.arange(W)[None, :]
    rows = []
    for dy in range(3):
        for dx in range(3):
            ry, rx = dy - 1, dx - 1
            valid = ((y + ry >= 0) & (y + ry < H) &
                     (x + rx >= 0) & (x + rx < W)).reshape(-1)
            rows.append(jnp.pad(valid, (0, lanes - H * W)))
    return jnp.stack(rows, axis=0).astype(jnp.float32)


def _pool_select_matrix(H, W, lanes_in, lanes_out):
    """(lanes_in, lanes_out) 0/1 matrix: column py*(W//2)+px picks flat index
    (2*py)*W + 2*px (the top-left corner of each 2x2 window)."""
    Ho, Wo = H // 2, W // 2
    j = jnp.arange(lanes_out)
    jc = jnp.minimum(j, Ho * Wo - 1)
    src = (2 * (jc // Wo)) * W + 2 * (jc % Wo)
    hw = jnp.arange(lanes_in)
    sel = (hw[:, None] == src[None, :]) & (j[None, :] < Ho * Wo)
    return sel.astype(jnp.float32)


def pack_params(params, *, H, W):
    """One-time repack of PyTorch-layout params into kernel-ready tensors."""
    hid = params["c1_b"].shape[0]
    out_dim = params["fc_b"].shape[0]
    Ho, Wo = H // 2, W // 2
    Hq, Wq = Ho // 2, Wo // 2
    L1 = _round_up(H * W, 128)
    L2 = _round_up(Ho * Wo, 128)
    L3 = _round_up(Hq * Wq, 128)

    def pack_conv(w_hwio):  # (3,3,cin,cout) -> (cout, 9*cin), K order (dy,dx,cin)
        cout, cin = w_hwio.shape[3], w_hwio.shape[2]
        return jnp.transpose(w_hwio, (3, 0, 1, 2)).reshape(cout, 9 * cin)

    # fc_w rows are in PyTorch flatten order c*(Hq*Wq) + hw.
    wl = params["fc_w"].reshape(hid, Hq * Wq, out_dim)
    wl = jnp.pad(wl, ((0, 0), (0, L3 - Hq * Wq), (0, OPAD - out_dim)))
    bl = jnp.pad(params["fc_b"], (0, OPAD - out_dim)).reshape(1, OPAD)

    return {
        "w1": pack_conv(params["c1_w"]), "b1": params["c1_b"].reshape(hid, 1),
        "w2": pack_conv(params["c2_w"]), "b2": params["c2_b"].reshape(hid, 1),
        "w3": pack_conv(params["c3_w"]), "b3": params["c3_b"].reshape(hid, 1),
        "w4": pack_conv(params["c4_w"]), "b4": params["c4_b"].reshape(hid, 1),
        "m_a": _conv_boundary_masks(H, W, L1),
        "m_b": _conv_boundary_masks(Ho, Wo, L2),
        "s1": _pool_select_matrix(H, W, L1, L2),
        "s2": _pool_select_matrix(Ho, Wo, L2, L3),
        "wl": wl, "bl": bl,
    }


# ----------------------------------------------------------------------------
# Forward (single fused pallas_call)
# ----------------------------------------------------------------------------
@functools.partial(jax.jit, static_argnames=("out_dim",))
def forward(packed, x_nchw, *, out_dim):
    N, cin, H, W = x_nchw.shape
    HW = H * W
    L1 = _round_up(HW, 128)
    hid = packed["b1"].shape[0]

    # Flatten spatial onto the lane axis and pad to a multiple of 128 (free-ish:
    # contiguous reshape + one tiny pad of the raw input).
    x_flat = jnp.pad(x_nchw.reshape(N, cin, HW).astype(jnp.float32),
                     ((0, 0), (0, 0), (0, L1 - HW)))

    const2 = lambda n: (0, 0)
    const3 = lambda n: (0, 0, 0)
    in_specs = [
        pl.BlockSpec((1, cin, L1), lambda n: (n, 0, 0)),
        pl.BlockSpec(packed["w1"].shape, const2),
        pl.BlockSpec(packed["b1"].shape, const2),
        pl.BlockSpec(packed["w2"].shape, const2),
        pl.BlockSpec(packed["b2"].shape, const2),
        pl.BlockSpec(packed["w3"].shape, const2),
        pl.BlockSpec(packed["b3"].shape, const2),
        pl.BlockSpec(packed["w4"].shape, const2),
        pl.BlockSpec(packed["b4"].shape, const2),
        pl.BlockSpec(packed["m_a"].shape, const2),
        pl.BlockSpec(packed["m_b"].shape, const2),
        pl.BlockSpec(packed["s1"].shape, const2),
        pl.BlockSpec(packed["s2"].shape, const2),
        pl.BlockSpec(packed["wl"].shape, const3),
        pl.BlockSpec(packed["bl"].shape, const2),
    ]

    out_padded = pl.pallas_call(
        functools.partial(_fused_kernel, W=W),
        out_shape=jax.ShapeDtypeStruct((N, 1, OPAD), jnp.float32),
        grid=(N,),
        in_specs=in_specs,
        out_specs=pl.BlockSpec((1, 1, OPAD), lambda n: (n, 0, 0)),
        scratch_shapes=[pltpu.VMEM((9 * max(hid, cin), L1), jnp.float32)],
        compiler_params=pltpu.CompilerParams(
            dimension_semantics=("parallel",)),
    )(x_flat, packed["w1"], packed["b1"], packed["w2"], packed["b2"],
      packed["w3"], packed["b3"], packed["w4"], packed["b4"],
      packed["m_a"], packed["m_b"], packed["s1"], packed["s2"],
      packed["wl"], packed["bl"])

    return out_padded[:, 0, :out_dim]


# ----------------------------------------------------------------------------
# Init (PyTorch layout) and pure-JAX reference for the correctness check.
# ----------------------------------------------------------------------------
def init_params(key, input_shape, hidden_units, output_shape):
    ks = jax.random.split(key, 5)
    scale = 0.1

    def conv_w(k, cin, cout):  # HWIO
        return scale * jax.random.normal(k, (3, 3, cin, cout), jnp.float32)

    return {
        "c1_w": conv_w(ks[0], input_shape, hidden_units),
        "c1_b": jnp.zeros((hidden_units,), jnp.float32),
        "c2_w": conv_w(ks[1], hidden_units, hidden_units),
        "c2_b": jnp.zeros((hidden_units,), jnp.float32),
        "c3_w": conv_w(ks[2], hidden_units, hidden_units),
        "c3_b": jnp.zeros((hidden_units,), jnp.float32),
        "c4_w": conv_w(ks[3], hidden_units, hidden_units),
        "c4_b": jnp.zeros((hidden_units,), jnp.float32),
        "fc_w": scale * jax.random.normal(
            ks[4], (hidden_units * 7 * 7, output_shape), jnp.float32),
        "fc_b": jnp.zeros((output_shape,), jnp.float32),
    }


def reference_forward(params, x_nchw):
    def conv_relu(x, w_hwio, b):
        w_oihw = jnp.transpose(w_hwio, (3, 2, 0, 1))
        y = lax.conv_general_dilated(
            x, w_oihw, window_strides=(1, 1), padding=((1, 1), (1, 1)),
            dimension_numbers=("NCHW", "OIHW", "NCHW"))
        return jax.nn.relu(y + b[None, :, None, None])

    def pool(x):
        return lax.reduce_window(x, -jnp.inf, lax.max,
                                 (1, 1, 2, 2), (1, 1, 2, 2), "VALID")

    x = x_nchw.astype(jnp.float32)
    x = conv_relu(x, params["c1_w"], params["c1_b"])
    x = conv_relu(x, params["c2_w"], params["c2_b"])
    x = pool(x)
    x = conv_relu(x, params["c3_w"], params["c3_b"])
    x = conv_relu(x, params["c4_w"], params["c4_b"])
    x = pool(x)
    flat = x.reshape(x.shape[0], -1)
    return flat @ params["fc_w"] + params["fc_b"][None, :]


# ----------------------------------------------------------------------------
if __name__ == "__main__":
    # FashionMNIST-like shapes: batch=2, 1 input channel, 28x28 images
    # (28x28 is required by the module's hard-coded hidden_units*7*7 classifier).
    BATCH, IN_CH, HID, OUT, HW = 2, 1, 8, 10, 28

    key = jax.random.PRNGKey(0)
    pkey, xkey = jax.random.split(key)
    params = init_params(pkey, IN_CH, HID, OUT)
    packed = pack_params(params, H=HW, W=HW)
    x = jax.random.normal(xkey, (BATCH, IN_CH, HW, HW), jnp.float32)

    out = jax.block_until_ready(forward(packed, x, out_dim=OUT))
    ref = jax.block_until_ready(reference_forward(params, x))

    assert out.shape == (BATCH, OUT), out.shape
    assert jnp.allclose(out, ref, rtol=1e-3, atol=1e-3), (
        f"max abs diff {jnp.max(jnp.abs(out - ref))}")

    print("KERNEL_OK")
</pallas_src>

<mosaic_0001>
module attributes {stable_mosaic.version = 11 : i64} {
  func.func @_fused_kernel(%arg0: i32, %arg1: memref<1x1x896xf32, #tpu.memory_space<vmem>>, %arg2: memref<8x9xf32, #tpu.memory_space<vmem>>, %arg3: memref<8x1xf32, #tpu.memory_space<vmem>>, %arg4: memref<8x72xf32, #tpu.memory_space<vmem>>, %arg5: memref<8x1xf32, #tpu.memory_space<vmem>>, %arg6: memref<8x72xf32, #tpu.memory_space<vmem>>, %arg7: memref<8x1xf32, #tpu.memory_space<vmem>>, %arg8: memref<8x72xf32, #tpu.memory_space<vmem>>, %arg9: memref<8x1xf32, #tpu.memory_space<vmem>>, %arg10: memref<9x896xf32, #tpu.memory_space<vmem>>, %arg11: memref<9x256xf32, #tpu.memory_space<vmem>>, %arg12: memref<896x256xf32, #tpu.memory_space<vmem>>, %arg13: memref<256x128xf32, #tpu.memory_space<vmem>>, %arg14: memref<8x128x128xf32, #tpu.memory_space<vmem>>, %arg15: memref<1x128xf32, #tpu.memory_space<vmem>>, %arg16: memref<1x1x128xf32, #tpu.memory_space<vmem>>, %arg17: memref<72x896xf32, #tpu.memory_space<vmem>>) attributes {dimension_semantics = [#tpu.dimension_semantics<parallel>], iteration_bounds = array<i64: 2>, scalar_prefetch = 0 : i64, scratch_operands = 1 : i64, tpu.core_type = #tpu.core_type<tc>, window_params = [{transform_indices = @transform_0, window_bounds = array<i64: 1, 1, 896>}, {pipeline_mode = #tpu.pipeline_mode<synchronous>, transform_indices = @transform_1, window_bounds = array<i64: 8, 9>}, {pipeline_mode = #tpu.pipeline_mode<synchronous>, transform_indices = @transform_2, window_bounds = array<i64: 8, 1>}, {pipeline_mode = #tpu.pipeline_mode<synchronous>, transform_indices = @transform_3, window_bounds = array<i64: 8, 72>}, {pipeline_mode = #tpu.pipeline_mode<synchronous>, transform_indices = @transform_4, window_bounds = array<i64: 8, 1>}, {pipeline_mode = #tpu.pipeline_mode<synchronous>, transform_indices = @transform_5, window_bounds = array<i64: 8, 72>}, {pipeline_mode = #tpu.pipeline_mode<synchronous>, transform_indices = @transform_6, window_bounds = array<i64: 8, 1>}, {pipeline_mode = #tpu.pipeline_mode<synchronous>, transform_indices = @transform_7, window_bounds = array<i64: 8, 72>}, {pipeline_mode = #tpu.pipeline_mode<synchronous>, transform_indices = @transform_8, window_bounds = array<i64: 8, 1>}, {pipeline_mode = #tpu.pipeline_mode<synchronous>, transform_indices = @transform_9, window_bounds = array<i64: 9, 896>}, {pipeline_mode = #tpu.pipeline_mode<synchronous>, transform_indices = @transform_10, window_bounds = array<i64: 9, 256>}, {pipeline_mode = #tpu.pipeline_mode<synchronous>, transform_indices = @transform_11, window_bounds = array<i64: 896, 256>}, {pipeline_mode = #tpu.pipeline_mode<synchronous>, transform_indices = @transform_12, window_bounds = array<i64: 256, 128>}, {pipeline_mode = #tpu.pipeline_mode<synchronous>, transform_indices = @transform_13, window_bounds = array<i64: 8, 128, 128>}, {pipeline_mode = #tpu.pipeline_mode<synchronous>, transform_indices = @transform_14, window_bounds = array<i64: 1, 128>}, {transform_indices = @transform_15, window_bounds = array<i64: 1, 1, 128>}]} {
    %c0 = arith.constant 0 : index
    %c0_0 = arith.constant 0 : index
    %c0_1 = arith.constant 0 : index
    %0 = vector.load %arg1[%c0, %c0_0, %c0_1] : memref<1x1x896xf32, #tpu.memory_space<vmem>>, vector<1x1x896xf32>
    %1 = vector.shape_cast %0 : vector<1x1x896xf32> to vector<1x896xf32>
    %c29_i32 = arith.constant 29 : i32
    %2 = tpu.dynamic_rotate %1 by %c29_i32 dim 1 : vector<1x896xf32>, i32 -> vector<1x896xf32>
    %c0_2 = arith.constant 0 : index
    %c0_3 = arith.constant 0 : index
    %3 = vector.load %arg10[%c0_2, %c0_3] : memref<9x896xf32, #tpu.memory_space<vmem>>, vector<1x896xf32>
    %4 = arith.mulf %2, %3 : vector<1x896xf32>
    %c0_4 = arith.constant 0 : index
    %c0_5 = arith.constant 0 : index
    %5 = vector.load %arg17[%c0_4, %c0_5] : memref<72x896xf32, #tpu.memory_space<vmem>>, vector<1x896xf32>
    tpu.vector_store %arg17[%c0_4, %c0_5], %4 {strides = array<i32>} : memref<72x896xf32, #tpu.memory_space<vmem>>, vector<1x896xf32>,
    %c28_i32 = arith.constant 28 : i32
    %6 = tpu.dynamic_rotate %1 by %c28_i32 dim 1 : vector<1x896xf32>, i32 -> vector<1x896xf32>
    %c1 = arith.constant 1 : index
    %c0_6 = arith.constant 0 : index
    %7 = vector.load %arg10[%c1, %c0_6] : memref<9x896xf32, #tpu.memory_space<vmem>>, vector<1x896xf32>
    %8 = arith.mulf %6, %7 : vector<1x896xf32>
    %c1_7 = arith.constant 1 : index
    %c0_8 = arith.constant 0 : index
    %9 = vector.load %arg17[%c1_7, %c0_8] : memref<72x896xf32, #tpu.memory_space<vmem>>, vector<1x896xf32>
    tpu.vector_store %arg17[%c1_7, %c0_8], %8 {strides = array<i32>} : memref<72x896xf32, #tpu.memory_space<vmem>>, vector<1x896xf32>,
    %c27_i32 = arith.constant 27 : i32
    %10 = tpu.dynamic_rotate %1 by %c27_i32 dim 1 : vector<1x896xf32>, i32 -> vector<1x896xf32>
    %c2 = arith.constant 2 : index
    %c0_9 = arith.constant 0 : index
    %11 = vector.load %arg10[%c2, %c0_9] : memref<9x896xf32, #tpu.memory_space<vmem>>, vector<1x896xf32>
    %12 = arith.mulf %10, %11 : vector<1x896xf32>
    %c2_10 = arith.constant 2 : index
    %c0_11 = arith.constant 0 : index
    %13 = vector.load %arg17[%c2_10, %c0_11] : memref<72x896xf32, #tpu.memory_space<vmem>>, vector<1x896xf32>
    tpu.vector_store %arg17[%c2_10, %c0_11], %12 {strides = array<i32>} : memref<72x896xf32, #tpu.memory_space<vmem>>, vector<1x896xf32>,
    %c1_i32 = arith.constant 1 : i32
    %14 = tpu.dynamic_rotate %1 by %c1_i32 dim 1 : vector<1x896xf32>, i32 -> vector<1x896xf32>
    %c3 = arith.constant 3 : index
    %c0_12 = arith.constant 0 : index
    %15 = vector.load %arg10[%c3, %c0_12] : memref<9x896xf32, #tpu.memory_space<vmem>>, vector<1x896xf32>
    %16 = arith.mulf %14, %15 : vector<1x896xf32>
    %c3_13 = arith.constant 3 : index
    %c0_14 = arith.constant 0 : index
    %17 = vector.load %arg17[%c3_13, %c0_14] : memref<72x896xf32, #tpu.memory_space<vmem>>, vector<1x896xf32>
    tpu.vector_store %arg17[%c3_13, %c0_14], %16 {strides = array<i32>} : memref<72x896xf32, #tpu.memory_space<vmem>>, vector<1x896xf32>,
    %c4 = arith.constant 4 : index
    %c0_15 = arith.constant 0 : index
    %18 = vector.load %arg10[%c4, %c0_15] : memref<9x896xf32, #tpu.memory_space<vmem>>, vector<1x896xf32>
    %19 = arith.mulf %1, %18 : vector<1x896xf32>
    %c4_16 = arith.constant 4 : index
    %c0_17 = arith.constant 0 : index
    %20 = vector.load %arg17[%c4_16, %c0_17] : memref<72x896xf32, #tpu.memory_space<vmem>>, vector<1x896xf32>
    tpu.vector_store %arg17[%c4_16, %c0_17], %19 {strides = array<i32>} : memref<72x896xf32, #tpu.memory_space<vmem>>, vector<1x896xf32>,
    %c895_i32 = arith.constant 895 : i32
    %21 = tpu.dynamic_rotate %1 by %c895_i32 dim 1 : vector<1x896xf32>, i32 -> vector<1x896xf32>
    %c5 = arith.constant 5 : index
    %c0_18 = arith.constant 0 : index
    %22 = vector.load %arg10[%c5, %c0_18] : memref<9x896xf32, #tpu.memory_space<vmem>>, vector<1x896xf32>
    %23 = arith.mulf %21, %22 : vector<1x896xf32>
    %c5_19 = arith.constant 5 : index
    %c0_20 = arith.constant 0 : index
    %24 = vector.load %arg17[%c5_19, %c0_20] : memref<72x896xf32, #tpu.memory_space<vmem>>, vector<1x896xf32>
    tpu.vector_store %arg17[%c5_19, %c0_20], %23 {strides = array<i32>} : memref<72x896xf32, #tpu.memory_space<vmem>>, vector<1x896xf32>,
    %c869_i32 = arith.constant 869 : i32
    %25 = tpu.dynamic_rotate %1 by %c869_i32 dim 1 : vector<1x896xf32>, i32 -> vector<1x896xf32>
    %c6 = arith.constant 6 : index
    %c0_21 = arith.constant 0 : index
    %26 = vector.load %arg10[%c6, %c0_21] : memref<9x896xf32, #tpu.memory_space<vmem>>, vector<1x896xf32>
    %27 = arith.mulf %25, %26 : vector<1x896xf32>
    %c6_22 = arith.constant 6 : index
    %c0_23 = arith.constant 0 : index
    %28 = vector.load %arg17[%c6_22, %c0_23] : memref<72x896xf32, #tpu.memory_space<vmem>>, vector<1x896xf32>
    tpu.vector_store %arg17[%c6_22, %c0_23], %27 {strides = array<i32>} : memref<72x896xf32, #tpu.memory_space<vmem>>, vector<1x896xf32>,
    %c868_i32 = arith.constant 868 : i32
    %29 = tpu.dynamic_rotate %1 by %c868_i32 dim 1 : vector<1x896xf32>, i32 -> vector<1x896xf32>
    %c7 = arith.constant 7 : index
    %c0_24 = arith.constant 0 : index
    %30 = vector.load %arg10[%c7, %c0_24] : memref<9x896xf32, #tpu.memory_space<vmem>>, vector<1x896xf32>
    %31 = arith.mulf %29, %30 : vector<1x896xf32>
    %c7_25 = arith.constant 7 : index
    %c0_26 = arith.constant 0 : index
    %32 = vector.load %arg17[%c7_25, %c0_26] : memref<72x896xf32, #tpu.memory_space<vmem>>, vector<1x896xf32>
    tpu.vector_store %arg17[%c7_25, %c0_26], %31 {strides = array<i32>} : memref<72x896xf32, #tpu.memory_space<vmem>>, vector<1x896xf32>,
    %c867_i32 = arith.constant 867 : i32
    %33 = tpu.dynamic_rotate %1 by %c867_i32 dim 1 : vector<1x896xf32>, i32 -> vector<1x896xf32>
    %c8 = arith.constant 8 : index
    %c0_27 = arith.constant 0 : index
    %34 = vector.load %arg10[%c8, %c0_27] : memref<9x896xf32, #tpu.memory_space<vmem>>, vector<1x896xf32>
    %35 = arith.mulf %33, %34 : vector<1x896xf32>
    %c8_28 = arith.constant 8 : index
    %c0_29 = arith.constant 0 : index
    %36 = vector.load %arg17[%c8_28, %c0_29] : memref<72x896xf32, #tpu.memory_space<vmem>>, vector<1x896xf32>
    tpu.vector_store %arg17[%c8_28, %c0_29], %35 {strides = array<i32>} : memref<72x896xf32, #tpu.memory_space<vmem>>, vector<1x896xf32>,
    %c0_30 = arith.constant 0 : index
    %c0_31 = arith.constant 0 : index
    %37 = vector.load %arg2[%c0_30, %c0_31] : memref<8x9xf32, #tpu.memory_space<vmem>>, vector<8x9xf32>
    %c0_32 = arith.constant 0 : index
    %c0_33 = arith.constant 0 : index
    %38 = vector.load %arg17[%c0_32, %c0_33] : memref<72x896xf32, #tpu.memory_space<vmem>>, vector<9x896xf32>
    %cst = arith.constant dense<0.000000e+00> : vector<8x896xf32>
    %39 = tpu.matmul %37, %38, %cst {dimension_numbers = #tpu.dot_dimension_numbers<[1], [0], [0], [1], [0, 0, 1, 1], [], []>} : vector<8x9xf32>, vector<9x896xf32>, vector<8x896xf32> -> vector<8x896xf32>
    %c0_34 = arith.constant 0 : index
    %c0_35 = arith.constant 0 : index
    %40 = vector.load %arg3[%c0_34, %c0_35] : memref<8x1xf32, #tpu.memory_space<vmem>>, vector<8x1xf32>
    %41 = vector.broadcast %40 : vector<8x1xf32> to vector<8x896xf32>
    %42 = arith.addf %39, %41 : vector<8x896xf32>
    %cst_36 = arith.constant 0.000000e+00 : f32
    %43 = vector.broadcast %cst_36 : f32 to vector<8x896xf32>
    %44 = arith.maximumf %42, %43 : vector<8x896xf32>
    %c29_i32_37 = arith.constant 29 : i32
    %45 = tpu.dynamic_rotate %44 by %c29_i32_37 dim 1 : vector<8x896xf32>, i32 -> vector<8x896xf32>
    %c0_38 = arith.constant 0 : index
    %c0_39 = arith.constant 0 : index
    %46 = vector.load %arg10[%c0_38, %c0_39] : memref<9x896xf32, #tpu.memory_space<vmem>>, vector<1x896xf32>
    %47 = vector.broadcast %46 : vector<1x896xf32> to vector<8x896xf32>
    %48 = arith.mulf %45, %47 : vector<8x896xf32>
    %c0_40 = arith.constant 0 : index
    %c0_41 = arith.constant 0 : index
    %49 = vector.load %arg17[%c0_40, %c0_41] : memref<72x896xf32, #tpu.memory_space<vmem>>, vector<8x896xf32>
    tpu.vector_store %arg17[%c0_40, %c0_41], %48 {strides = array<i32>} : memref<72x896xf32, #tpu.memory_space<vmem>>, vector<8x896xf32>,
    %c28_i32_42 = arith.constant 28 : i32
    %50 = tpu.dynamic_rotate %44 by %c28_i32_42 dim 1 : vector<8x896xf32>, i32 -> vector<8x896xf32>
    %c1_43 = arith.constant 1 : index
    %c0_44 = arith.constant 0 : index
    %51 = vector.load %arg10[%c1_43, %c0_44] : memref<9x896xf32, #tpu.memory_space<vmem>>, vector<1x896xf32>
    %52 = vector.broadcast %51 : vector<1x896xf32> to vector<8x896xf32>
    %53 = arith.mulf %50, %52 : vector<8x896xf32>
    %c8_45 = arith.constant 8 : index
    %c0_46 = arith.constant 0 : index
    %54 = vector.load %arg17[%c8_45, %c0_46] : memref<72x896xf32, #tpu.memory_space<vmem>>, vector<8x896xf32>
    tpu.vector_store %arg17[%c8_45, %c0_46], %53 {strides = array<i32>} : memref<72x896xf32, #tpu.memory_space<vmem>>, vector<8x896xf32>,
    %c27_i32_47 = arith.constant 27 : i32
    %55 = tpu.dynamic_rotate %44 by %c27_i32_47 dim 1 : vector<8x896xf32>, i32 -> vector<8x896xf32>
    %c2_48 = arith.constant 2 : index
    %c0_49 = arith.constant 0 : index
    %56 = vector.load %arg10[%c2_48, %c0_49] : memref<9x896xf32, #tpu.memory_space<vmem>>, vector<1x896xf32>
    %57 = vector.broadcast %56 : vector<1x896xf32> to vector<8x896xf32>
    %58 = arith.mulf %55, %57 : vector<8x896xf32>
    %c16 = arith.constant 16 : index
    %c0_50 = arith.constant 0 : index
    %59 = vector.load %arg17[%c16, %c0_50] : memref<72x896xf32, #tpu.memory_space<vmem>>, vector<8x896xf32>
    tpu.vector_store %arg17[%c16, %c0_50], %58 {strides = array<i32>} : memref<72x896xf32, #tpu.memory_space<vmem>>, vector<8x896xf32>,
    %c1_i32_51 = arith.constant 1 : i32
    %60 = tpu.dynamic_rotate %44 by %c1_i32_51 dim 1 : vector<8x896xf32>, i32 -> vector<8x896xf32>
    %c3_52 = arith.constant 3 : index
    %c0_53 = arith.constant 0 : index
    %61 = vector.load %arg10[%c3_52, %c0_53] : memref<9x896xf32, #tpu.memory_space<vmem>>, vector<1x896xf32>
    %62 = vector.broadcast %61 : vector<1x896xf32> to vector<8x896xf32>
    %63 = arith.mulf %60, %62 : vector<8x896xf32>
    %c24 = arith.constant 24 : index
    %c0_54 = arith.constant 0 : index
    %64 = vector.load %arg17[%c24, %c0_54] : memref<72x896xf32, #tpu.memory_space<vmem>>, vector<8x896xf32>
    tpu.vector_store %arg17[%c24, %c0_54], %63 {strides = array<i32>} : memref<72x896xf32, #tpu.memory_space<vmem>>, vector<8x896xf32>,
    %c4_55 = arith.constant 4 : index
    %c0_56 = arith.constant 0 : index
    %65 = vector.load %arg10[%c4_55, %c0_56] : memref<9x896xf32, #tpu.memory_space<vmem>>, vector<1x896xf32>
    %66 = vector.broadcast %65 : vector<1x896xf32> to vector<8x896xf32>
    %67 = arith.mulf %44, %66 : vector<8x896xf32>
    %c32 = arith.constant 32 : index
    %c0_57 = arith.constant 0 : index
    %68 = vector.load %arg17[%c32, %c0_57] : memref<72x896xf32, #tpu.memory_space<vmem>>, vector<8x896xf32>
    tpu.vector_store %arg17[%c32, %c0_57], %67 {strides = array<i32>} : memref<72x896xf32, #tpu.memory_space<vmem>>, vector<8x896xf32>,
    %c895_i32_58 = arith.constant 895 : i32
    %69 = tpu.dynamic_rotate %44 by %c895_i32_58 dim 1 : vector<8x896xf32>, i32 -> vector<8x896xf32>
    %c5_59 = arith.constant 5 : index
    %c0_60 = arith.constant 0 : index
    %70 = vector.load %arg10[%c5_59, %c0_60] : memref<9x896xf32, #tpu.memory_space<vmem>>, vector<1x896xf32>
    %71 = vector.broadcast %70 : vector<1x896xf32> to vector<8x896xf32>
    %72 = arith.mulf %69, %71 : vector<8x896xf32>
    %c40 = arith.constant 40 : index
    %c0_61 = arith.constant 0 : index
    %73 = vector.load %arg17[%c40, %c0_61] : memref<72x896xf32, #tpu.memory_space<vmem>>, vector<8x896xf32>
    tpu.vector_store %arg17[%c40, %c0_61], %72 {strides = array<i32>} : memref<72x896xf32, #tpu.memory_space<vmem>>, vector<8x896xf32>,
    %c869_i32_62 = arith.constant 869 : i32
    %74 = tpu.dynamic_rotate %44 by %c869_i32_62 dim 1 : vector<8x896xf32>, i32 -> vector<8x896xf32>
    %c6_63 = arith.constant 6 : index
    %c0_64 = arith.constant 0 : index
    %75 = vector.load %arg10[%c6_63, %c0_64] : memref<9x896xf32, #tpu.memory_space<vmem>>, vector<1x896xf32>
    %76 = vector.broadcast %75 : vector<1x896xf32> to vector<8x896xf32>
    %77 = arith.mulf %74, %76 : vector<8x896xf32>
    %c48 = arith.constant 48 : index
    %c0_65 = arith.constant 0 : index
    %78 = vector.load %arg17[%c48, %c0_65] : memref<72x896xf32, #tpu.memory_space<vmem>>, vector<8x896xf32>
    tpu.vector_store %arg17[%c48, %c0_65], %77 {strides = array<i32>} : memref<72x896xf32, #tpu.memory_space<vmem>>, vector<8x896xf32>,
    %c868_i32_66 = arith.constant 868 : i32
    %79 = tpu.dynamic_rotate %44 by %c868_i32_66 dim 1 : vector<8x896xf32>, i32 -> vector<8x896xf32>
    %c7_67 = arith.constant 7 : index
    %c0_68 = arith.constant 0 : index
    %80 = vector.load %arg10[%c7_67, %c0_68] : memref<9x896xf32, #tpu.memory_space<vmem>>, vector<1x896xf32>
    %81 = vector.broadcast %80 : vector<1x896xf32> to vector<8x896xf32>
    %82 = arith.mulf %79, %81 : vector<8x896xf32>
    %c56 = arith.constant 56 : index
    %c0_69 = arith.constant 0 : index
    %83 = vector.load %arg17[%c56, %c0_69] : memref<72x896xf32, #tpu.memory_space<vmem>>, vector<8x896xf32>
    tpu.vector_store %arg17[%c56, %c0_69], %82 {strides = array<i32>} : memref<72x896xf32, #tpu.memory_space<vmem>>, vector<8x896xf32>,
    %c867_i32_70 = arith.constant 867 : i32
    %84 = tpu.dynamic_rotate %44 by %c867_i32_70 dim 1 : vector<8x896xf32>, i32 -> vector<8x896xf32>
    %c8_71 = arith.constant 8 : index
    %c0_72 = arith.constant 0 : index
    %85 = vector.load %arg10[%c8_71, %c0_72] : memref<9x896xf32, #tpu.memory_space<vmem>>, vector<1x896xf32>
    %86 = vector.broadcast %85 : vector<1x896xf32> to vector<8x896xf32>
    %87 = arith.mulf %84, %86 : vector<8x896xf32>
    %c64 = arith.constant 64 : index
    %c0_73 = arith.constant 0 : index
    %88 = vector.load %arg17[%c64, %c0_73] : memref<72x896xf32, #tpu.memory_space<vmem>>, vector<8x896xf32>
    tpu.vector_store %arg17[%c64, %c0_73], %87 {strides = array<i32>} : memref<72x896xf32, #tpu.memory_space<vmem>>, vector<8x896xf32>,
    %c0_74 = arith.constant 0 : index
    %c0_75 = arith.constant 0 : index
    %89 = vector.load %arg4[%c0_74, %c0_75] : memref<8x72xf32, #tpu.memory_space<vmem>>, vector<8x72xf32>
    %c0_76 = arith.constant 0 : index
    %c0_77 = arith.constant 0 : index
    %90 = vector.load %arg17[%c0_76, %c0_77] : memref<72x896xf32, #tpu.memory_space<vmem>>, vector<72x896xf32>
    %cst_78 = arith.constant dense<0.000000e+00> : vector<8x896xf32>
    %91 = tpu.matmul %89, %90, %cst_78 {dimension_numbers = #tpu.dot_dimension_numbers<[1], [0], [0], [1], [0, 0, 1, 1], [], []>} : vector<8x72xf32>, vector<72x896xf32>, vector<8x896xf32> -> vector<8x896xf32>
    %c0_79 = arith.constant 0 : index
    %c0_80 = arith.constant 0 : index
    %92 = vector.load %arg5[%c0_79, %c0_80] : memref<8x1xf32, #tpu.memory_space<vmem>>, vector<8x1xf32>
    %93 = vector.broadcast %92 : vector<8x1xf32> to vector<8x896xf32>
    %94 = arith.addf %91, %93 : vector<8x896xf32>
    %cst_81 = arith.constant 0.000000e+00 : f32
    %95 = vector.broadcast %cst_81 : f32 to vector<8x896xf32>
    %96 = arith.maximumf %94, %95 : vector<8x896xf32>
    %c895_i32_82 = arith.constant 895 : i32
    %97 = tpu.dynamic_rotate %96 by %c895_i32_82 dim 1 : vector<8x896xf32>, i32 -> vector<8x896xf32>
    %c868_i32_83 = arith.constant 868 : i32
    %98 = tpu.dynamic_rotate %96 by %c868_i32_83 dim 1 : vector<8x896xf32>, i32 -> vector<8x896xf32>
    %c867_i32_84 = arith.constant 867 : i32
    %99 = tpu.dynamic_rotate %96 by %c867_i32_84 dim 1 : vector<8x896xf32>, i32 -> vector<8x896xf32>
    %100 = arith.maximumf %96, %97 : vector<8x896xf32>
    %101 = arith.maximumf %98, %99 : vector<8x896xf32>
    %102 = arith.maximumf %100, %101 : vector<8x896xf32>
    %c0_85 = arith.constant 0 : index
    %c0_86 = arith.constant 0 : index
    %103 = vector.load %arg12[%c0_85, %c0_86] : memref<896x256xf32, #tpu.memory_space<vmem>>, vector<896x256xf32>
    %cst_87 = arith.constant dense<0.000000e+00> : vector<8x256xf32>
    %104 = tpu.matmul %102, %103, %cst_87 {dimension_numbers = #tpu.dot_dimension_numbers<[1], [0], [0], [1], [0, 0, 1, 1], [], []>} : vector<8x896xf32>, vector<896x256xf32>, vector<8x256xf32> -> vector<8x256xf32>
    %c15_i32 = arith.constant 15 : i32
    %105 = tpu.dynamic_rotate %104 by %c15_i32 dim 1 : vector<8x256xf32>, i32 -> vector<8x256xf32>
    %c0_88 = arith.constant 0 : index
    %c0_89 = arith.constant 0 : index
    %106 = vector.load %arg11[%c0_88, %c0_89] : memref<9x256xf32, #tpu.memory_space<vmem>>, vector<1x256xf32>
    %107 = vector.broadcast %106 : vector<1x256xf32> to vector<8x256xf32>
    %108 = arith.mulf %105, %107 : vector<8x256xf32>
    %c0_90 = arith.constant 0 : index
    %c0_91 = arith.constant 0 : index
    %109 = vector.load %arg17[%c0_90, %c0_91] : memref<72x896xf32, #tpu.memory_space<vmem>>, vector<8x256xf32>
    tpu.vector_store %arg17[%c0_90, %c0_91], %108 {strides = array<i32>} : memref<72x896xf32, #tpu.memory_space<vmem>>, vector<8x256xf32>,
    %c14_i32 = arith.constant 14 : i32
    %110 = tpu.dynamic_rotate %104 by %c14_i32 dim 1 : vector<8x256xf32>, i32 -> vector<8x256xf32>
    %c1_92 = arith.constant 1 : index
    %c0_93 = arith.constant 0 : index
    %111 = vector.load %arg11[%c1_92, %c0_93] : memref<9x256xf32, #tpu.memory_space<vmem>>, vector<1x256xf32>
    %112 = vector.broadcast %111 : vector<1x256xf32> to vector<8x256xf32>
    %113 = arith.mulf %110, %112 : vector<8x256xf32>
    %c8_94 = arith.constant 8 : index
    %c0_95 = arith.constant 0 : index
    %114 = vector.load %arg17[%c8_94, %c0_95] : memref<72x896xf32, #tpu.memory_space<vmem>>, vector<8x256xf32>
    tpu.vector_store %arg17[%c8_94, %c0_95], %113 {strides = array<i32>} : memref<72x896xf32, #tpu.memory_space<vmem>>, vector<8x256xf32>,
    %c13_i32 = arith.constant 13 : i32
    %115 = tpu.dynamic_rotate %104 by %c13_i32 dim 1 : vector<8x256xf32>, i32 -> vector<8x256xf32>
    %c2_96 = arith.constant 2 : index
    %c0_97 = arith.constant 0 : index
    %116 = vector.load %arg11[%c2_96, %c0_97] : memref<9x256xf32, #tpu.memory_space<vmem>>, vector<1x256xf32>
    %117 = vector.broadcast %116 : vector<1x256xf32> to vector<8x256xf32>
    %118 = arith.mulf %115, %117 : vector<8x256xf32>
    %c16_98 = arith.constant 16 : index
    %c0_99 = arith.constant 0 : index
    %119 = vector.load %arg17[%c16_98, %c0_99] : memref<72x896xf32, #tpu.memory_space<vmem>>, vector<8x256xf32>
    tpu.vector_store %arg17[%c16_98, %c0_99], %118 {strides = array<i32>} : memref<72x896xf32, #tpu.memory_space<vmem>>, vector<8x256xf32>,
    %c1_i32_100 = arith.constant 1 : i32
    %120 = tpu.dynamic_rotate %104 by %c1_i32_100 dim 1 : vector<8x256xf32>, i32 -> vector<8x256xf32>
    %c3_101 = arith.constant 3 : index
    %c0_102 = arith.constant 0 : index
    %121 = vector.load %arg11[%c3_101, %c0_102] : memref<9x256xf32, #tpu.memory_space<vmem>>, vector<1x256xf32>
    %122 = vector.broadcast %121 : vector<1x256xf32> to vector<8x256xf32>
    %123 = arith.mulf %120, %122 : vector<8x256xf32>
    %c24_103 = arith.constant 24 : index
    %c0_104 = arith.constant 0 : index
    %124 = vector.load %arg17[%c24_103, %c0_104] : memref<72x896xf32, #tpu.memory_space<vmem>>, vector<8x256xf32>
    tpu.vector_store %arg17[%c24_103, %c0_104], %123 {strides = array<i32>} : memref<72x896xf32, #tpu.memory_space<vmem>>, vector<8x256xf32>,
    %c4_105 = arith.constant 4 : index
    %c0_106 = arith.constant 0 : index
    %125 = vector.load %arg11[%c4_105, %c0_106] : memref<9x256xf32, #tpu.memory_space<vmem>>, vector<1x256xf32>
    %126 = vector.broadcast %125 : vector<1x256xf32> to vector<8x256xf32>
    %127 = arith.mulf %104, %126 : vector<8x256xf32>
    %c32_107 = arith.constant 32 : index
    %c0_108 = arith.constant 0 : index
    %128 = vector.load %arg17[%c32_107, %c0_108] : memref<72x896xf32, #tpu.memory_space<vmem>>, vector<8x256xf32>
    tpu.vector_store %arg17[%c32_107, %c0_108], %127 {strides = array<i32>} : memref<72x896xf32, #tpu.memory_space<vmem>>, vector<8x256xf32>,
    %c255_i32 = arith.constant 255 : i32
    %129 = tpu.dynamic_rotate %104 by %c255_i32 dim 1 : vector<8x256xf32>, i32 -> vector<8x256xf32>
    %c5_109 = arith.constant 5 : index
    %c0_110 = arith.constant 0 : index
    %130 = vector.load %arg11[%c5_109, %c0_110] : memref<9x256xf32, #tpu.memory_space<vmem>>, vector<1x256xf32>
    %131 = vector.broadcast %130 : vector<1x256xf32> to vector<8x256xf32>
    %132 = arith.mulf %129, %131 : vector<8x256xf32>
    %c40_111 = arith.constant 40 : index
    %c0_112 = arith.constant 0 : index
    %133 = vector.load %arg17[%c40_111, %c0_112] : memref<72x896xf32, #tpu.memory_space<vmem>>, vector<8x256xf32>
    tpu.vector_store %arg17[%c40_111, %c0_112], %132 {strides = array<i32>} : memref<72x896xf32, #tpu.memory_space<vmem>>, vector<8x256xf32>,
    %c243_i32 = arith.constant 243 : i32
    %134 = tpu.dynamic_rotate %104 by %c243_i32 dim 1 : vector<8x256xf32>, i32 -> vector<8x256xf32>
    %c6_113 = arith.constant 6 : index
    %c0_114 = arith.constant 0 : index
    %135 = vector.load %arg11[%c6_113, %c0_114] : memref<9x256xf32, #tpu.memory_space<vmem>>, vector<1x256xf32>
    %136 = vector.broadcast %135 : vector<1x256xf32> to vector<8x256xf32>
    %137 = arith.mulf %134, %136 : vector<8x256xf32>
    %c48_115 = arith.constant 48 : index
    %c0_116 = arith.constant 0 : index
    %138 = vector.load %arg17[%c48_115, %c0_116] : memref<72x896xf32, #tpu.memory_space<vmem>>, vector<8x256xf32>
    tpu.vector_store %arg17[%c48_115, %c0_116], %137 {strides = array<i32>} : memref<72x896xf32, #tpu.memory_space<vmem>>, vector<8x256xf32>,
    %c242_i32 = arith.constant 242 : i32
    %139 = tpu.dynamic_rotate %104 by %c242_i32 dim 1 : vector<8x256xf32>, i32 -> vector<8x256xf32>
    %c7_117 = arith.constant 7 : index
    %c0_118 = arith.constant 0 : index
    %140 = vector.load %arg11[%c7_117, %c0_118] : memref<9x256xf32, #tpu.memory_space<vmem>>, vector<1x256xf32>
    %141 = vector.broadcast %140 : vector<1x256xf32> to vector<8x256xf32>
    %142 = arith.mulf %139, %141 : vector<8x256xf32>
    %c56_119 = arith.constant 56 : index
    %c0_120 = arith.constant 0 : index
    %143 = vector.load %arg17[%c56_119, %c0_120] : memref<72x896xf32, #tpu.memory_space<vmem>>, vector<8x256xf32>
    tpu.vector_store %arg17[%c56_119, %c0_120], %142 {strides = array<i32>} : memref<72x896xf32, #tpu.memory_space<vmem>>, vector<8x256xf32>,
    %c241_i32 = arith.constant 241 : i32
    %144 = tpu.dynamic_rotate %104 by %c241_i32 dim 1 : vector<8x256xf32>, i32 -> vector<8x256xf32>
    %c8_121 = arith.constant 8 : index
    %c0_122 = arith.constant 0 : index
    %145 = vector.load %arg11[%c8_121, %c0_122] : memref<9x256xf32, #tpu.memory_space<vmem>>, vector<1x256xf32>
    %146 = vector.broadcast %145 : vector<1x256xf32> to vector<8x256xf32>
    %147 = arith.mulf %144, %146 : vector<8x256xf32>
    %c64_123 = arith.constant 64 : index
    %c0_124 = arith.constant 0 : index
    %148 = vector.load %arg17[%c64_123, %c0_124] : memref<72x896xf32, #tpu.memory_space<vmem>>, vector<8x256xf32>
    tpu.vector_store %arg17[%c64_123, %c0_124], %147 {strides = array<i32>} : memref<72x896xf32, #tpu.memory_space<vmem>>, vector<8x256xf32>,
    %c0_125 = arith.constant 0 : index
    %c0_126 = arith.constant 0 : index
    %149 = vector.load %arg6[%c0_125, %c0_126] : memref<8x72xf32, #tpu.memory_space<vmem>>, vector<8x72xf32>
    %c0_127 = arith.constant 0 : index
    %c0_128 = arith.constant 0 : index
    %150 = vector.load %arg17[%c0_127, %c0_128] : memref<72x896xf32, #tpu.memory_space<vmem>>, vector<72x256xf32>
    %cst_129 = arith.constant dense<0.000000e+00> : vector<8x256xf32>
    %151 = tpu.matmul %149, %150, %cst_129 {dimension_numbers = #tpu.dot_dimension_numbers<[1], [0], [0], [1], [0, 0, 1, 1], [], []>} : vector<8x72xf32>, vector<72x256xf32>, vector<8x256xf32> -> vector<8x256xf32>
    %c0_130 = arith.constant 0 : index
    %c0_131 = arith.constant 0 : index
    %152 = vector.load %arg7[%c0_130, %c0_131] : memref<8x1xf32, #tpu.memory_space<vmem>>, vector<8x1xf32>
    %153 = vector.broadcast %152 : vector<8x1xf32> to vector<8x256xf32>
    %154 = arith.addf %151, %153 : vector<8x256xf32>
    %cst_132 = arith.constant 0.000000e+00 : f32
    %155 = vector.broadcast %cst_132 : f32 to vector<8x256xf32>
    %156 = arith.maximumf %154, %155 : vector<8x256xf32>
    %c15_i32_133 = arith.constant 15 : i32
    %157 = tpu.dynamic_rotate %156 by %c15_i32_133 dim 1 : vector<8x256xf32>, i32 -> vector<8x256xf32>
    %c0_134 = arith.constant 0 : index
    %c0_135 = arith.constant 0 : index
    %158 = vector.load %arg11[%c0_134, %c0_135] : memref<9x256xf32, #tpu.memory_space<vmem>>, vector<1x256xf32>
    %159 = vector.broadcast %158 : vector<1x256xf32> to vector<8x256xf32>
    %160 = arith.mulf %157, %159 : vector<8x256xf32>
    %c0_136 = arith.constant 0 : index
    %c0_137 = arith.constant 0 : index
    %161 = vector.load %arg17[%c0_136, %c0_137] : memref<72x896xf32, #tpu.memory_space<vmem>>, vector<8x256xf32>
    tpu.vector_store %arg17[%c0_136, %c0_137], %160 {strides = array<i32>} : memref<72x896xf32, #tpu.memory_space<vmem>>, vector<8x256xf32>,
    %c14_i32_138 = arith.constant 14 : i32
    %162 = tpu.dynamic_rotate %156 by %c14_i32_138 dim 1 : vector<8x256xf32>, i32 -> vector<8x256xf32>
    %c1_139 = arith.constant 1 : index
    %c0_140 = arith.constant 0 : index
    %163 = vector.load %arg11[%c1_139, %c0_140] : memref<9x256xf32, #tpu.memory_space<vmem>>, vector<1x256xf32>
    %164 = vector.broadcast %163 : vector<1x256xf32> to vector<8x256xf32>
    %165 = arith.mulf %162, %164 : vector<8x256xf32>
    %c8_141 = arith.constant 8 : index
    %c0_142 = arith.constant 0 : index
    %166 = vector.load %arg17[%c8_141, %c0_142] : memref<72x896xf32, #tpu.memory_space<vmem>>, vector<8x256xf32>
    tpu.vector_store %arg17[%c8_141, %c0_142], %165 {strides = array<i32>} : memref<72x896xf32, #tpu.memory_space<vmem>>, vector<8x256xf32>,
    %c13_i32_143 = arith.constant 13 : i32
    %167 = tpu.dynamic_rotate %156 by %c13_i32_143 dim 1 : vector<8x256xf32>, i32 -> vector<8x256xf32>
    %c2_144 = arith.constant 2 : index
    %c0_145 = arith.constant 0 : index
    %168 = vector.load %arg11[%c2_144, %c0_145] : memref<9x256xf32, #tpu.memory_space<vmem>>, vector<1x256xf32>
    %169 = vector.broadcast %168 : vector<1x256xf32> to vector<8x256xf32>
    %170 = arith.mulf %167, %169 : vector<8x256xf32>
    %c16_146 = arith.constant 16 : index
    %c0_147 = arith.constant 0 : index
    %171 = vector.load %arg17[%c16_146, %c0_147] : memref<72x896xf32, #tpu.memory_space<vmem>>, vector<8x256xf32>
    tpu.vector_store %arg17[%c16_146, %c0_147], %170 {strides = array<i32>} : memref<72x896xf32, #tpu.memory_space<vmem>>, vector<8x256xf32>,
    %c1_i32_148 = arith.constant 1 : i32
    %172 = tpu.dynamic_rotate %156 by %c1_i32_148 dim 1 : vector<8x256xf32>, i32 -> vector<8x256xf32>
    %c3_149 = arith.constant 3 : index
    %c0_150 = arith.constant 0 : index
    %173 = vector.load %arg11[%c3_149, %c0_150] : memref<9x256xf32, #tpu.memory_space<vmem>>, vector<1x256xf32>
    %174 = vector.broadcast %173 : vector<1x256xf32> to vector<8x256xf32>
    %175 = arith.mulf %172, %174 : vector<8x256xf32>
    %c24_151 = arith.constant 24 : index
    %c0_152 = arith.constant 0 : index
    %176 = vector.load %arg17[%c24_151, %c0_152] : memref<72x896xf32, #tpu.memory_space<vmem>>, vector<8x256xf32>
    tpu.vector_store %arg17[%c24_151, %c0_152], %175 {strides = array<i32>} : memref<72x896xf32, #tpu.memory_space<vmem>>, vector<8x256xf32>,
    %c4_153 = arith.constant 4 : index
    %c0_154 = arith.constant 0 : index
    %177 = vector.load %arg11[%c4_153, %c0_154] : memref<9x256xf32, #tpu.memory_space<vmem>>, vector<1x256xf32>
    %178 = vector.broadcast %177 : vector<1x256xf32> to vector<8x256xf32>
    %179 = arith.mulf %156, %178 : vector<8x256xf32>
    %c32_155 = arith.constant 32 : index
    %c0_156 = arith.constant 0 : index
    %180 = vector.load %arg17[%c32_155, %c0_156] : memref<72x896xf32, #tpu.memory_space<vmem>>, vector<8x256xf32>
    tpu.vector_store %arg17[%c32_155, %c0_156], %179 {strides = array<i32>} : memref<72x896xf32, #tpu.memory_space<vmem>>, vector<8x256xf32>,
    %c255_i32_157 = arith.constant 255 : i32
    %181 = tpu.dynamic_rotate %156 by %c255_i32_157 dim 1 : vector<8x256xf32>, i32 -> vector<8x256xf32>
    %c5_158 = arith.constant 5 : index
    %c0_159 = arith.constant 0 : index
    %182 = vector.load %arg11[%c5_158, %c0_159] : memref<9x256xf32, #tpu.memory_space<vmem>>, vector<1x256xf32>
    %183 = vector.broadcast %182 : vector<1x256xf32> to vector<8x256xf32>
    %184 = arith.mulf %181, %183 : vector<8x256xf32>
    %c40_160 = arith.constant 40 : index
    %c0_161 = arith.constant 0 : index
    %185 = vector.load %arg17[%c40_160, %c0_161] : memref<72x896xf32, #tpu.memory_space<vmem>>, vector<8x256xf32>
    tpu.vector_store %arg17[%c40_160, %c0_161], %184 {strides = array<i32>} : memref<72x896xf32, #tpu.memory_space<vmem>>, vector<8x256xf32>,
    %c243_i32_162 = arith.constant 243 : i32
    %186 = tpu.dynamic_rotate %156 by %c243_i32_162 dim 1 : vector<8x256xf32>, i32 -> vector<8x256xf32>
    %c6_163 = arith.constant 6 : index
    %c0_164 = arith.constant 0 : index
    %187 = vector.load %arg11[%c6_163, %c0_164] : memref<9x256xf32, #tpu.memory_space<vmem>>, vector<1x256xf32>
    %188 = vector.broadcast %187 : vector<1x256xf32> to vector<8x256xf32>
    %189 = arith.mulf %186, %188 : vector<8x256xf32>
    %c48_165 = arith.constant 48 : index
    %c0_166 = arith.constant 0 : index
    %190 = vector.load %arg17[%c48_165, %c0_166] : memref<72x896xf32, #tpu.memory_space<vmem>>, vector<8x256xf32>
    tpu.vector_store %arg17[%c48_165, %c0_166], %189 {strides = array<i32>} : memref<72x896xf32, #tpu.memory_space<vmem>>, vector<8x256xf32>,
    %c242_i32_167 = arith.constant 242 : i32
    %191 = tpu.dynamic_rotate %156 by %c242_i32_167 dim 1 : vector<8x256xf32>, i32 -> vector<8x256xf32>
    %c7_168 = arith.constant 7 : index
    %c0_169 = arith.constant 0 : index
    %192 = vector.load %arg11[%c7_168, %c0_169] : memref<9x256xf32, #tpu.memory_space<vmem>>, vector<1x256xf32>
    %193 = vector.broadcast %192 : vector<1x256xf32> to vector<8x256xf32>
    %194 = arith.mulf %191, %193 : vector<8x256xf32>
    %c56_170 = arith.constant 56 : index
    %c0_171 = arith.constant 0 : index
    %195 = vector.load %arg17[%c56_170, %c0_171] : memref<72x896xf32, #tpu.memory_space<vmem>>, vector<8x256xf32>
    tpu.vector_store %arg17[%c56_170, %c0_171], %194 {strides = array<i32>} : memref<72x896xf32, #tpu.memory_space<vmem>>, vector<8x256xf32>,
    %c241_i32_172 = arith.constant 241 : i32
    %196 = tpu.dynamic_rotate %156 by %c241_i32_172 dim 1 : vector<8x256xf32>, i32 -> vector<8x256xf32>
    %c8_173 = arith.constant 8 : index
    %c0_174 = arith.constant 0 : index
    %197 = vector.load %arg11[%c8_173, %c0_174] : memref<9x256xf32, #tpu.memory_space<vmem>>, vector<1x256xf32>
    %198 = vector.broadcast %197 : vector<1x256xf32> to vector<8x256xf32>
    %199 = arith.mulf %196, %198 : vector<8x256xf32>
    %c64_175 = arith.constant 64 : index
    %c0_176 = arith.constant 0 : index
    %200 = vector.load %arg17[%c64_175, %c0_176] : memref<72x896xf32, #tpu.memory_space<vmem>>, vector<8x256xf32>
    tpu.vector_store %arg17[%c64_175, %c0_176], %199 {strides = array<i32>} : memref<72x896xf32, #tpu.memory_space<vmem>>, vector<8x256xf32>,
    %c0_177 = arith.constant 0 : index
    %c0_178 = arith.constant 0 : index
    %201 = vector.load %arg8[%c0_177, %c0_178] : memref<8x72xf32, #tpu.memory_space<vmem>>, vector<8x72xf32>
    %c0_179 = arith.constant 0 : index
    %c0_180 = arith.constant 0 : index
    %202 = vector.load %arg17[%c0_179, %c0_180] : memref<72x896xf32, #tpu.memory_space<vmem>>, vector<72x256xf32>
    %cst_181 = arith.constant dense<0.000000e+00> : vector<8x256xf32>
    %203 = tpu.matmul %201, %202, %cst_181 {dimension_numbers = #tpu.dot_dimension_numbers<[1], [0], [0], [1], [0, 0, 1, 1], [], []>} : vector<8x72xf32>, vector<72x256xf32>, vector<8x256xf32> -> vector<8x256xf32>
    %c0_182 = arith.constant 0 : index
    %c0_183 = arith.constant 0 : index
    %204 = vector.load %arg9[%c0_182, %c0_183] : memref<8x1xf32, #tpu.memory_space<vmem>>, vector<8x1xf32>
    %205 = vector.broadcast %204 : vector<8x1xf32> to vector<8x256xf32>
    %206 = arith.addf %203, %205 : vector<8x256xf32>
    %cst_184 = arith.constant 0.000000e+00 : f32
    %207 = vector.broadcast %cst_184 : f32 to vector<8x256xf32>
    %208 = arith.maximumf %206, %207 : vector<8x256xf32>
    %c255_i32_185 = arith.constant 255 : i32
    %209 = tpu.dynamic_rotate %208 by %c255_i32_185 dim 1 : vector<8x256xf32>, i32 -> vector<8x256xf32>
    %c242_i32_186 = arith.constant 242 : i32
    %210 = tpu.dynamic_rotate %208 by %c242_i32_186 dim 1 : vector<8x256xf32>, i32 -> vector<8x256xf32>
    %c241_i32_187 = arith.constant 241 : i32
    %211 = tpu.dynamic_rotate %208 by %c241_i32_187 dim 1 : vector<8x256xf32>, i32 -> vector<8x256xf32>
    %212 = arith.maximumf %208, %209 : vector<8x256xf32>
    %213 = arith.maximumf %210, %211 : vector<8x256xf32>
    %214 = arith.maximumf %212, %213 : vector<8x256xf32>
    %c0_188 = arith.constant 0 : index
    %c0_189 = arith.constant 0 : index
    %215 = vector.load %arg13[%c0_188, %c0_189] : memref<256x128xf32, #tpu.memory_space<vmem>>, vector<256x128xf32>
    %cst_190 = arith.constant dense<0.000000e+00> : vector<8x128xf32>
    %216 = tpu.matmul %214, %215, %cst_190 {dimension_numbers = #tpu.dot_dimension_numbers<[1], [0], [0], [1], [0, 0, 1, 1], [], []>} : vector<8x256xf32>, vector<256x128xf32>, vector<8x128xf32> -> vector<8x128xf32>
    %c0_191 = arith.constant 0 : index
    %c0_192 = arith.constant 0 : index
    %217 = vector.load %arg15[%c0_191, %c0_192] : memref<1x128xf32, #tpu.memory_space<vmem>>, vector<1x128xf32>
    %218 = vector.extract_strided_slice %216 {offsets = [0, 0], sizes = [1, 128], strides = [1, 1]} : vector<8x128xf32> to vector<1x128xf32>
    %c0_193 = arith.constant 0 : index
    %c0_194 = arith.constant 0 : index
    %c0_195 = arith.constant 0 : index
    %219 = vector.load %arg14[%c0_193, %c0_194, %c0_195] : memref<8x128x128xf32, #tpu.memory_space<vmem>>, vector<1x128x128xf32>
    %220 = vector.shape_cast %219 : vector<1x128x128xf32> to vector<128x128xf32>
    %cst_196 = arith.constant dense<0.000000e+00> : vector<1x128xf32>
    %221 = tpu.matmul %218, %220, %cst_196 {dimension_numbers = #tpu.dot_dimension_numbers<[1], [0], [0], [1], [0, 0, 1, 1], [], []>} : vector<1x128xf32>, vector<128x128xf32>, vector<1x128xf32> -> vector<1x128xf32>
    %222 = arith.addf %217, %221 : vector<1x128xf32>
    %223 = vector.extract_strided_slice %216 {offsets = [1, 0], sizes = [1, 128], strides = [1, 1]} : vector<8x128xf32> to vector<1x128xf32>
    %c1_197 = arith.constant 1 : index
    %c0_198 = arith.constant 0 : index
    %c0_199 = arith.constant 0 : index
    %224 = vector.load %arg14[%c1_197, %c0_198, %c0_199] : memref<8x128x128xf32, #tpu.memory_space<vmem>>, vector<1x128x128xf32>
    %225 = vector.shape_cast %224 : vector<1x128x128xf32> to vector<128x128xf32>
    %cst_200 = arith.constant dense<0.000000e+00> : vector<1x128xf32>
    %226 = tpu.matmul %223, %225, %cst_200 {dimension_numbers = #tpu.dot_dimension_numbers<[1], [0], [0], [1], [0, 0, 1, 1], [], []>} : vector<1x128xf32>, vector<128x128xf32>, vector<1x128xf32> -> vector<1x128xf32>
    %227 = arith.addf %222, %226 : vector<1x128xf32>
    %228 = vector.extract_strided_slice %216 {offsets = [2, 0], sizes = [1, 128], strides = [1, 1]} : vector<8x128xf32> to vector<1x128xf32>
    %c2_201 = arith.constant 2 : index
    %c0_202 = arith.constant 0 : index
    %c0_203 = arith.constant 0 : index
    %229 = vector.load %arg14[%c2_201, %c0_202, %c0_203] : memref<8x128x128xf32, #tpu.memory_space<vmem>>, vector<1x128x128xf32>
    %230 = vector.shape_cast %229 : vector<1x128x128xf32> to vector<128x128xf32>
    %cst_204 = arith.constant dense<0.000000e+00> : vector<1x128xf32>
    %231 = tpu.matmul %228, %230, %cst_204 {dimension_numbers = #tpu.dot_dimension_numbers<[1], [0], [0], [1], [0, 0, 1, 1], [], []>} : vector<1x128xf32>, vector<128x128xf32>, vector<1x128xf32> -> vector<1x128xf32>
    %232 = arith.addf %227, %231 : vector<1x128xf32>
    %233 = vector.extract_strided_slice %216 {offsets = [3, 0], sizes = [1, 128], strides = [1, 1]} : vector<8x128xf32> to vector<1x128xf32>
    %c3_205 = arith.constant 3 : index
    %c0_206 = arith.constant 0 : index
    %c0_207 = arith.constant 0 : index
    %234 = vector.load %arg14[%c3_205, %c0_206, %c0_207] : memref<8x128x128xf32, #tpu.memory_space<vmem>>, vector<1x128x128xf32>
    %235 = vector.shape_cast %234 : vector<1x128x128xf32> to vector<128x128xf32>
    %cst_208 = arith.constant dense<0.000000e+00> : vector<1x128xf32>
    %236 = tpu.matmul %233, %235, %cst_208 {dimension_numbers = #tpu.dot_dimension_numbers<[1], [0], [0], [1], [0, 0, 1, 1], [], []>} : vector<1x128xf32>, vector<128x128xf32>, vector<1x128xf32> -> vector<1x128xf32>
    %237 = arith.addf %232, %236 : vector<1x128xf32>
    %238 = vector.extract_strided_slice %216 {offsets = [4, 0], sizes = [1, 128], strides = [1, 1]} : vector<8x128xf32> to vector<1x128xf32>
    %c4_209 = arith.constant 4 : index
    %c0_210 = arith.constant 0 : index
    %c0_211 = arith.constant 0 : index
    %239 = vector.load %arg14[%c4_209, %c0_210, %c0_211] : memref<8x128x128xf32, #tpu.memory_space<vmem>>, vector<1x128x128xf32>
    %240 = vector.shape_cast %239 : vector<1x128x128xf32> to vector<128x128xf32>
    %cst_212 = arith.constant dense<0.000000e+00> : vector<1x128xf32>
    %241 = tpu.matmul %238, %240, %cst_212 {dimension_numbers = #tpu.dot_dimension_numbers<[1], [0], [0], [1], [0, 0, 1, 1], [], []>} : vector<1x128xf32>, vector<128x128xf32>, vector<1x128xf32> -> vector<1x128xf32>
    %242 = arith.addf %237, %241 : vector<1x128xf32>
    %243 = vector.extract_strided_slice %216 {offsets = [5, 0], sizes = [1, 128], strides = [1, 1]} : vector<8x128xf32> to vector<1x128xf32>
    %c5_213 = arith.constant 5 : index
    %c0_214 = arith.constant 0 : index
    %c0_215 = arith.constant 0 : index
    %244 = vector.load %arg14[%c5_213, %c0_214, %c0_215] : memref<8x128x128xf32, #tpu.memory_space<vmem>>, vector<1x128x128xf32>
    %245 = vector.shape_cast %244 : vector<1x128x128xf32> to vector<128x128xf32>
    %cst_216 = arith.constant dense<0.000000e+00> : vector<1x128xf32>
    %246 = tpu.matmul %243, %245, %cst_216 {dimension_numbers = #tpu.dot_dimension_numbers<[1], [0], [0], [1], [0, 0, 1, 1], [], []>} : vector<1x128xf32>, vector<128x128xf32>, vector<1x128xf32> -> vector<1x128xf32>
    %247 = arith.addf %242, %246 : vector<1x128xf32>
    %248 = vector.extract_strided_slice %216 {offsets = [6, 0], sizes = [1, 128], strides = [1, 1]} : vector<8x128xf32> to vector<1x128xf32>
    %c6_217 = arith.constant 6 : index
    %c0_218 = arith.constant 0 : index
    %c0_219 = arith.constant 0 : index
    %249 = vector.load %arg14[%c6_217, %c0_218, %c0_219] : memref<8x128x128xf32, #tpu.memory_space<vmem>>, vector<1x128x128xf32>
    %250 = vector.shape_cast %249 : vector<1x128x128xf32> to vector<128x128xf32>
    %cst_220 = arith.constant dense<0.000000e+00> : vector<1x128xf32>
    %251 = tpu.matmul %248, %250, %cst_220 {dimension_numbers = #tpu.dot_dimension_numbers<[1], [0], [0], [1], [0, 0, 1, 1], [], []>} : vector<1x128xf32>, vector<128x128xf32>, vector<1x128xf32> -> vector<1x128xf32>
    %252 = arith.addf %247, %251 : vector<1x128xf32>
    %253 = vector.extract_strided_slice %216 {offsets = [7, 0], sizes = [1, 128], strides = [1, 1]} : vector<8x128xf32> to vector<1x128xf32>
    %c7_221 = arith.constant 7 : index
    %c0_222 = arith.constant 0 : index
    %c0_223 = arith.constant 0 : index
    %254 = vector.load %arg14[%c7_221, %c0_222, %c0_223] : memref<8x128x128xf32, #tpu.memory_space<vmem>>, vector<1x128x128xf32>
    %255 = vector.shape_cast %254 : vector<1x128x128xf32> to vector<128x128xf32>
    %cst_224 = arith.constant dense<0.000000e+00> : vector<1x128xf32>
    %256 = tpu.matmul %253, %255, %cst_224 {dimension_numbers = #tpu.dot_dimension_numbers<[1], [0], [0], [1], [0, 0, 1, 1], [], []>} : vector<1x128xf32>, vector<128x128xf32>, vector<1x128xf32> -> vector<1x128xf32>
    %257 = arith.addf %252, %256 : vector<1x128xf32>
    %c0_225 = arith.constant 0 : index
    %c0_226 = arith.constant 0 : index
    %c0_227 = arith.constant 0 : index
    %258 = vector.load %arg16[%c0_225, %c0_226, %c0_227] : memref<1x1x128xf32, #tpu.memory_space<vmem>>, vector<1x1x128xf32>
    %259 = vector.shape_cast %258 : vector<1x1x128xf32> to vector<1x128xf32>
    %260 = vector.shape_cast %257 : vector<1x128xf32> to vector<1x1x128xf32>
    tpu.vector_store %arg16[%c0_225, %c0_226, %c0_227], %260 {strides = array<i32>} : memref<1x1x128xf32, #tpu.memory_space<vmem>>, vector<1x1x128xf32>,
    return
  }
  func.func @transform_0(%arg0: i32) -> (i32, i32, i32) {
    %c0_i32 = arith.constant 0 : i32
    %c0_i32_0 = arith.constant 0 : i32
    %c0_i32_1 = arith.constant 0 : i32
    return %arg0, %c0_i32, %c0_i32_0 : i32, i32, i32
  }
  func.func @transform_1(%arg0: i32) -> (i32, i32) {
    %c0_i32 = arith.constant 0 : i32
    %c0_i32_0 = arith.constant 0 : i32
    %c0_i32_1 = arith.constant 0 : i32
    return %c0_i32, %c0_i32_0 : i32, i32
  }
  func.func @transform_2(%arg0: i32) -> (i32, i32) {
    %c0_i32 = arith.constant 0 : i32
    %c0_i32_0 = arith.constant 0 : i32
    %c0_i32_1 = arith.constant 0 : i32
    return %c0_i32, %c0_i32_0 : i32, i32
  }
  func.func @transform_3(%arg0: i32) -> (i32, i32) {
    %c0_i32 = arith.constant 0 : i32
    %c0_i32_0 = arith.constant 0 : i32
    %c0_i32_1 = arith.constant 0 : i32
    return %c0_i32, %c0_i32_0 : i32, i32
  }
  func.func @transform_4(%arg0: i32) -> (i32, i32) {
    %c0_i32 = arith.constant 0 : i32
    %c0_i32_0 = arith.constant 0 : i32
    %c0_i32_1 = arith.constant 0 : i32
    return %c0_i32, %c0_i32_0 : i32, i32
  }
  func.func @transform_5(%arg0: i32) -> (i32, i32) {
    %c0_i32 = arith.constant 0 : i32
    %c0_i32_0 = arith.constant 0 : i32
    %c0_i32_1 = arith.constant 0 : i32
    return %c0_i32, %c0_i32_0 : i32, i32
  }
  func.func @transform_6(%arg0: i32) -> (i32, i32) {
    %c0_i32 = arith.constant 0 : i32
    %c0_i32_0 = arith.constant 0 : i32
    %c0_i32_1 = arith.constant 0 : i32
    return %c0_i32, %c0_i32_0 : i32, i32
  }
  func.func @transform_7(%arg0: i32) -> (i32, i32) {
    %c0_i32 = arith.constant 0 : i32
    %c0_i32_0 = arith.constant 0 : i32
    %c0_i32_1 = arith.constant 0 : i32
    return %c0_i32, %c0_i32_0 : i32, i32
  }
  func.func @transform_8(%arg0: i32) -> (i32, i32) {
    %c0_i32 = arith.constant 0 : i32
    %c0_i32_0 = arith.constant 0 : i32
    %c0_i32_1 = arith.constant 0 : i32
    return %c0_i32, %c0_i32_0 : i32, i32
  }
  func.func @transform_9(%arg0: i32) -> (i32, i32) {
    %c0_i32 = arith.constant 0 : i32
    %c0_i32_0 = arith.constant 0 : i32
    %c0_i32_1 = arith.constant 0 : i32
    return %c0_i32, %c0_i32_0 : i32, i32
  }
  func.func @transform_10(%arg0: i32) -> (i32, i32) {
    %c0_i32 = arith.constant 0 : i32
    %c0_i32_0 = arith.constant 0 : i32
    %c0_i32_1 = arith.constant 0 : i32
    return %c0_i32, %c0_i32_0 : i32, i32
  }
  func.func @transform_11(%arg0: i32) -> (i32, i32) {
    %c0_i32 = arith.constant 0 : i32
    %c0_i32_0 = arith.constant 0 : i32
    %c0_i32_1 = arith.constant 0 : i32
    return %c0_i32, %c0_i32_0 : i32, i32
  }
  func.func @transform_12(%arg0: i32) -> (i32, i32) {
    %c0_i32 = arith.constant 0 : i32
    %c0_i32_0 = arith.constant 0 : i32
    %c0_i32_1 = arith.constant 0 : i32
    return %c0_i32, %c0_i32_0 : i32, i32
  }
  func.func @transform_13(%arg0: i32) -> (i32, i32, i32) {
    %c0_i32 = arith.constant 0 : i32
    %c0_i32_0 = arith.constant 0 : i32
    %c0_i32_1 = arith.constant 0 : i32
    %c0_i32_2 = arith.constant 0 : i32
    return %c0_i32, %c0_i32_0, %c0_i32_1 : i32, i32, i32
  }
  func.func @transform_14(%arg0: i32) -> (i32, i32) {
    %c0_i32 = arith.constant 0 : i32
    %c0_i32_0 = arith.constant 0 : i32
    %c0_i32_1 = arith.constant 0 : i32
    return %c0_i32, %c0_i32_0 : i32, i32
  }
  func.func @transform_15(%arg0: i32) -> (i32, i32, i32) {
    %c0_i32 = arith.constant 0 : i32
    %c0_i32_0 = arith.constant 0 : i32
    %c0_i32_1 = arith.constant 0 : i32
    return %arg0, %c0_i32, %c0_i32_0 : i32, i32, i32
  }
}

</mosaic_0001>

<llo_original>
// kernel: forward.1
$region0: #{forward.1}
  #allocation0 [shape = 'u32[]', space=smem, size = 0x4, offset = 0x4, fixed_abs, tag = 'smem constant byte address 0x4 - core index']
  #allocation1 [shape = 'u32[144,128]{1,0:T(1,128)}', space=vmem, size = 0x12000, scoped, tag = 'internal scratch']
  #allocation2 [shape = 'f32[72,896]{1,0:T(8,128)}', space=vmem, size = 0x3f000, scoped, tag = 'scratch operand']
  %s0 = inlined_call_operand.vmem [shape: f32[2,1,896], index: 0, kind: input, shape index: {}]
  %s1 = inlined_call_operand.hbm [shape: f32[8,9], index: 1, kind: input, shape index: {}]
  %s2 = inlined_call_operand.vmem [shape: f32[8,1], index: 2, kind: input, shape index: {}]
  %s3 = inlined_call_operand.hbm [shape: f32[8,72], index: 3, kind: input, shape index: {}]
  %s4 = inlined_call_operand.vmem [shape: f32[8,1], index: 4, kind: input, shape index: {}]
  %s5 = inlined_call_operand.hbm [shape: f32[8,72], index: 5, kind: input, shape index: {}]
  %s6 = inlined_call_operand.vmem [shape: f32[8,1], index: 6, kind: input, shape index: {}]
  %s7 = inlined_call_operand.hbm [shape: f32[8,72], index: 7, kind: input, shape index: {}]
  %s8 = inlined_call_operand.vmem [shape: f32[8,1], index: 8, kind: input, shape index: {}]
  %s9 = inlined_call_operand.hbm [shape: f32[9,896], index: 9, kind: input, shape index: {}]
  %s10 = inlined_call_operand.vmem [shape: f32[9,256], index: 10, kind: input, shape index: {}]
  %s11 = inlined_call_operand.hbm [shape: f32[896,256], index: 11, kind: input, shape index: {}]
  %s12 = inlined_call_operand.vmem [shape: f32[256,128], index: 12, kind: input, shape index: {}]
  %s13 = inlined_call_operand.hbm [shape: f32[8,128,128], index: 13, kind: input, shape index: {}]
  %s14 = inlined_call_operand.vmem [shape: f32[1,128], index: 14, kind: input, shape index: {}]
  %s15 = inlined_call_operand.hbm [shape: f32[2,1,128], index: 15, kind: output, shape index: {}]
  %s16 = sld [smem:[#allocation0]]
  $region121: #{forward.1} parent=0
    _
  %s18 = ssub.s32 1, %s16
  %s19 = scalar_select 0, %s18, %s16
  $region1: #{forward.1} parent=0
    #allocation3 [shape = 'u8[4096]{0}', space=vmem, size = 0x1000, scoped, tag = 'input window, operand 1, single buffered']
    #allocation4 [shape = 's32[2]{0}', space=sflag, size = 0x8, scoped, tag = 'scoped memory for forward.1']
    #allocation5 [shape = 's32[2]{0}', space=sflag, size = 0x8, scoped, tag = 'scoped memory for forward.1']
    #allocation6 [shape = 'u8[4096]{0}', space=vmem, size = 0x1000, scoped, tag = 'input window, operand 3, single buffered']
    #allocation7 [shape = 's32[1]{0}', space=sflag, size = 0x4, scoped, tag = 'scoped memory for forward.1']
    #allocation8 [shape = 'u8[4096]{0}', space=vmem, size = 0x1000, scoped, tag = 'input window, operand 5, single buffered']
    #allocation9 [shape = 'u8[4096]{0}', space=vmem, size = 0x1000, scoped, tag = 'input window, operand 7, single buffered']
    #allocation10 [shape = 's32[1]{0}', space=sflag, size = 0x4, scoped, tag = 'scoped memory for forward.1']
    #allocation11 [shape = 'u8[57344]{0}', space=vmem, size = 0xe000, scoped, tag = 'input window, operand 9, single buffered']
    #allocation12 [shape = 'u8[917504]{0}', space=vmem, size = 0xe0000, scoped, tag = 'input window, operand 11, single buffered']
    #allocation13 [shape = 's32[1]{0}', space=sflag, size = 0x4, scoped, tag = 'scoped memory for forward.1']
    #allocation14 [shape = 'u8[524288]{0}', space=vmem, size = 0x80000, scoped, tag = 'input window, operand 13, single buffered']
    #allocation15 [shape = 'u8[1024]{0}', space=vmem, size = 0x400, scoped, tag = 'output window, operand 0']
    %20 = vsyncpa [#allocation4], 0
    %21 = vsyncpa [#allocation7], 0
    %22 = vsyncpa [#allocation10], 0
    %23 = vsyncpa [#allocation13], 0
    %24 = vsyncpa [#allocation5], 0
    %s25 = scalar_lea.sflag [#allocation5], 1
    %26 = vsyncpa %s25, 0
    loop: start=0, step=1, limit=4
    $region2: #{forward.1} parent=1 // loop_pre_header
      _
    $region3: #{forward.1} parent=1 // loop_header
      %s28 = sphi 0, %s32
      %p29 = scmp.ge.s32.totalorder %s28, 4
      %s38 = sphi 0, %s40
      %s41 = sphi 0, %s38
      %s42 = sphi 0, %s41
      %s58 = sphi 0, %s42
      %s62 = sphi 0, %s62
      %s64 = sphi 0, %s62
      %s65 = sphi 0, %s64
      %s79 = sphi 0, %s65
      %s83 = sphi 0, %s83
      %s85 = sphi 0, %s83
      %s86 = sphi 0, %s85
      %s100 = sphi 0, %s86
      %s104 = sphi 0, %s104
      %s106 = sphi 0, %s104
      %s107 = sphi 0, %s106
      %s121 = sphi 0, %s107
      %s125 = sphi 0, %s125
      %s127 = sphi 0, %s125
      %s128 = sphi 0, %s127
      %s142 = sphi 0, %s128
      %s146 = sphi 0, %s146
      %s148 = sphi 0, %s146
      %s149 = sphi 0, %s148
      %s163 = sphi 0, %s149
      %s167 = sphi 0, %s167
      %s169 = sphi 0, %s167
      %s170 = sphi 0, %s169
      %s184 = sphi 0, %s170
      %s188 = sphi 0, %s188
      %s190 = sphi 0, %s188
      %s191 = sphi 0, %s190
      %s205 = sphi 0, %s191
      %s209 = sphi 0, %s209
      %s211 = sphi 0, %s209
      %s212 = sphi 0, %s211
      %s226 = sphi 0, %s212
      %s230 = sphi 0, %s230
      %s232 = sphi 0, %s230
      %s233 = sphi 0, %s232
      %s247 = sphi 0, %s233
      %s251 = sphi 0, %s251
      %s253 = sphi 0, %s251
      %s254 = sphi 0, %s253
      %s268 = sphi 0, %s254
      %s272 = sphi 0, %s272
      %s274 = sphi 0, %s272
      %s275 = sphi 0, %s274
      %s289 = sphi 0, %s275
      %s293 = sphi 0, %s293
      %s295 = sphi 0, %s293
      %s296 = sphi 0, %s295
      %s310 = sphi 0, %s296
      %s314 = sphi 0, %s314
      %s316 = sphi 0, %s314
      %s317 = sphi 0, %s316
      %s331 = sphi 0, %s317
      %s335 = sphi 0, %s335
      %s337 = sphi 0, %s335
      %s338 = sphi 0, %s337
      %s352 = sphi 0, %s338
      %s358 = sphi 0, %s360
      %s361 = sphi 0, %s358
      %s362 = sphi 0, %s361
      %s378 = sphi 0, %s362
    $region4: #{forward.1} parent=1 // loop_header_branch
      %31 = sbr.rel (%p29) target = $region8
    $region5: #{forward.1} parent=1 // loop_body
      %s33 = ssub.s32 %s28, 1
      %s34 = ssub.s32 %s28, 2
      %s35 = sadd.s32 %s28, 1
      %s36 = ssub.s32 %s28, %s35
      %p37 = scmp.eq.s32.totalorder %s36, 0
      %s39 = sadd.s32 %s38, 1
      %s40 = scalar_select %p37, %s38, %s39
      %p43 = pneg %p37
      %p44 = scmp.eq.s32.totalorder %s28, 1
      %p45 = por %p43, %p44
      %p46 = scmp.ne.s32.totalorder %s38, %s41
      %p47 = scmp.eq.s32.totalorder %s28, 0
      %p48 = por %p46, %p47
      %p49 = scmp.ne.s32.totalorder %s38, %s41
      %p50 = scmp.eq.s32.totalorder %s33, 1
      %p51 = por %p49, %p50
      %p52 = scmp.ne.s32.totalorder %s41, %s42
      %p53 = scmp.eq.s32.totalorder %s33, 0
      %p54 = por %p52, %p53
      %p55 = scmp.ne.s32.totalorder %s41, %s42
      %p56 = scmp.eq.s32.totalorder %s34, 1
      %p57 = por %p55, %p56
      %p59 = scmp.ne.s32.totalorder %s42, %s58
      %p60 = scmp.eq.s32.totalorder %s34, 0
      %p61 = por %p59, %p60
      %s63 = sadd.s32 %s62, 1
      %p66 = scmp.eq.s32.totalorder %s28, 1
      %p67 = scmp.ne.s32.totalorder %s62, %s64
      %p68 = scmp.eq.s32.totalorder %s28, 0
      %p69 = por %p67, %p68
      %p70 = scmp.ne.s32.totalorder %s62, %s64
      %p71 = scmp.eq.s32.totalorder %s33, 1
      %p72 = por %p70, %p71
      %p73 = scmp.ne.s32.totalorder %s64, %s65
      %p74 = scmp.eq.s32.totalorder %s33, 0
      %p75 = por %p73, %p74
      %p76 = scmp.ne.s32.totalorder %s64, %s65
      %p77 = scmp.eq.s32.totalorder %s34, 1
      %p78 = por %p76, %p77
      %p80 = scmp.ne.s32.totalorder %s65, %s79
      %p81 = scmp.eq.s32.totalorder %s34, 0
      %p82 = por %p80, %p81
      %s84 = sadd.s32 %s83, 1
      %p87 = scmp.eq.s32.totalorder %s28, 1
      %p88 = scmp.ne.s32.totalorder %s83, %s85
      %p89 = scmp.eq.s32.totalorder %s28, 0
      %p90 = por %p88, %p89
      %p91 = scmp.ne.s32.totalorder %s83, %s85
      %p92 = scmp.eq.s32.totalorder %s33, 1
      %p93 = por %p91, %p92
      %p94 = scmp.ne.s32.totalorder %s85, %s86
      %p95 = scmp.eq.s32.totalorder %s33, 0
      %p96 = por %p94, %p95
      %p97 = scmp.ne.s32.totalorder %s85, %s86
      %p98 = scmp.eq.s32.totalorder %s34, 1
      %p99 = por %p97, %p98
      %p101 = scmp.ne.s32.totalorder %s86, %s100
      %p102 = scmp.eq.s32.totalorder %s34, 0
      %p103 = por %p101, %p102
      %s105 = sadd.s32 %s104, 1
      %p108 = scmp.eq.s32.totalorder %s28, 1
      %p109 = scmp.ne.s32.totalorder %s104, %s106
      %p110 = scmp.eq.s32.totalorder %s28, 0
      %p111 = por %p109, %p110
      %p112 = scmp.ne.s32.totalorder %s104, %s106
      %p113 = scmp.eq.s32.totalorder %s33, 1
      %p114 = por %p112, %p113
      %p115 = scmp.ne.s32.totalorder %s106, %s107
      %p116 = scmp.eq.s32.totalorder %s33, 0
      %p117 = por %p115, %p116
      %p118 = scmp.ne.s32.totalorder %s106, %s107
      %p119 = scmp.eq.s32.totalorder %s34, 1
      %p120 = por %p118, %p119
      %p122 = scmp.ne.s32.totalorder %s107, %s121
      %p123 = scmp.eq.s32.totalorder %s34, 0
      %p124 = por %p122, %p123
      %s126 = sadd.s32 %s125, 1
      %p129 = scmp.eq.s32.totalorder %s28, 1
      %p130 = scmp.ne.s32.totalorder %s125, %s127
      %p131 = scmp.eq.s32.totalorder %s28, 0
      %p132 = por %p130, %p131
      %p133 = scmp.ne.s32.totalorder %s125, %s127
      %p134 = scmp.eq.s32.totalorder %s33, 1
      %p135 = por %p133, %p134
      %p136 = scmp.ne.s32.totalorder %s127, %s128
      %p137 = scmp.eq.s32.totalorder %s33, 0
      %p138 = por %p136, %p137
      %p139 = scmp.ne.s32.totalorder %s127, %s128
      %p140 = scmp.eq.s32.totalorder %s34, 1
      %p141 = por %p139, %p140
      %p143 = scmp.ne.s32.totalorder %s128, %s142
      %p144 = scmp.eq.s32.totalorder %s34, 0
      %p145 = por %p143, %p144
      %s147 = sadd.s32 %s146, 1
      %p150 = scmp.eq.s32.totalorder %s28, 1
      %p151 = scmp.ne.s32.totalorder %s146, %s148
      %p152 = scmp.eq.s32.totalorder %s28, 0
      %p153 = por %p151, %p152
      %p154 = scmp.ne.s32.totalorder %s146, %s148
      %p155 = scmp.eq.s32.totalorder %s33, 1
      %p156 = por %p154, %p155
      %p157 = scmp.ne.s32.totalorder %s148, %s149
      %p158 = scmp.eq.s32.totalorder %s33, 0
      %p159 = por %p157, %p158
      %p160 = scmp.ne.s32.totalorder %s148, %s149
      %p161 = scmp.eq.s32.totalorder %s34, 1
      %p162 = por %p160, %p161
      %p164 = scmp.ne.s32.totalorder %s149, %s163
      %p165 = scmp.eq.s32.totalorder %s34, 0
      %p166 = por %p164, %p165
      %s168 = sadd.s32 %s167, 1
      %p171 = scmp.eq.s32.totalorder %s28, 1
      %p172 = scmp.ne.s32.totalorder %s167, %s169
      %p173 = scmp.eq.s32.totalorder %s28, 0
      %p174 = por %p172, %p173
      %p175 = scmp.ne.s32.totalorder %s167, %s169
      %p176 = scmp.eq.s32.totalorder %s33, 1
      %p177 = por %p175, %p176
      %p178 = scmp.ne.s32.totalorder %s169, %s170
      %p179 = scmp.eq.s32.totalorder %s33, 0
      %p180 = por %p178, %p179
      %p181 = scmp.ne.s32.totalorder %s169, %s170
      %p182 = scmp.eq.s32.totalorder %s34, 1
      %p183 = por %p181, %p182
      %p185 = scmp.ne.s32.totalorder %s170, %s184
      %p186 = scmp.eq.s32.totalorder %s34, 0
      %p187 = por %p185, %p186
      %s189 = sadd.s32 %s188, 1
      %p192 = scmp.eq.s32.totalorder %s28, 1
      %p193 = scmp.ne.s32.totalorder %s188, %s190
      %p194 = scmp.eq.s32.totalorder %s28, 0
      %p195 = por %p193, %p194
      %p196 = scmp.ne.s32.totalorder %s188, %s190
      %p197 = scmp.eq.s32.totalorder %s33, 1
      %p198 = por %p196, %p197
      %p199 = scmp.ne.s32.totalorder %s190, %s191
      %p200 = scmp.eq.s32.totalorder %s33, 0
      %p201 = por %p199, %p200
      %p202 = scmp.ne.s32.totalorder %s190, %s191
      %p203 = scmp.eq.s32.totalorder %s34, 1
      %p204 = por %p202, %p203
      %p206 = scmp.ne.s32.totalorder %s191, %s205
      %p207 = scmp.eq.s32.totalorder %s34, 0
      %p208 = por %p206, %p207
      %s210 = sadd.s32 %s209, 1
      %p213 = scmp.eq.s32.totalorder %s28, 1
      %p214 = scmp.ne.s32.totalorder %s209, %s211
      %p215 = scmp.eq.s32.totalorder %s28, 0
      %p216 = por %p214, %p215
      %p217 = scmp.ne.s32.totalorder %s209, %s211
      %p218 = scmp.eq.s32.totalorder %s33, 1
      %p219 = por %p217, %p218
      %p220 = scmp.ne.s32.totalorder %s211, %s212
      %p221 = scmp.eq.s32.totalorder %s33, 0
      %p222 = por %p220, %p221
      %p223 = scmp.ne.s32.totalorder %s211, %s212
      %p224 = scmp.eq.s32.totalorder %s34, 1
      %p225 = por %p223, %p224
      %p227 = scmp.ne.s32.totalorder %s212, %s226
      %p228 = scmp.eq.s32.totalorder %s34, 0
      %p229 = por %p227, %p228
      %s231 = sadd.s32 %s230, 1
      %p234 = scmp.eq.s32.totalorder %s28, 1
      %p235 = scmp.ne.s32.totalorder %s230, %s232
      %p236 = scmp.eq.s32.totalorder %s28, 0
      %p237 = por %p235, %p236
      %p238 = scmp.ne.s32.totalorder %s230, %s232
      %p239 = scmp.eq.s32.totalorder %s33, 1
      %p240 = por %p238, %p239
      %p241 = scmp.ne.s32.totalorder %s232, %s233
      %p242 = scmp.eq.s32.totalorder %s33, 0
      %p243 = por %p241, %p242
      %p244 = scmp.ne.s32.totalorder %s232, %s233
      %p245 = scmp.eq.s32.totalorder %s34, 1
      %p246 = por %p244, %p245
      %p248 = scmp.ne.s32.totalorder %s233, %s247
      %p249 = scmp.eq.s32.totalorder %s34, 0
      %p250 = por %p248, %p249
      %s252 = sadd.s32 %s251, 1
      %p255 = scmp.eq.s32.totalorder %s28, 1
      %p256 = scmp.ne.s32.totalorder %s251, %s253
      %p257 = scmp.eq.s32.totalorder %s28, 0
      %p258 = por %p256, %p257
      %p259 = scmp.ne.s32.totalorder %s251, %s253
      %p260 = scmp.eq.s32.totalorder %s33, 1
      %p261 = por %p259, %p260
      %p262 = scmp.ne.s32.totalorder %s253, %s254
      %p263 = scmp.eq.s32.totalorder %s33, 0
      %p264 = por %p262, %p263
      %p265 = scmp.ne.s32.totalorder %s253, %s254
      %p266 = scmp.eq.s32.totalorder %s34, 1
      %p267 = por %p265, %p266
      %p269 = scmp.ne.s32.totalorder %s254, %s268
      %p270 = scmp.eq.s32.totalorder %s34, 0
      %p271 = por %p269, %p270
      %s273 = sadd.s32 %s272, 1
      %p276 = scmp.eq.s32.totalorder %s28, 1
      %p277 = scmp.ne.s32.totalorder %s272, %s274
      %p278 = scmp.eq.s32.totalorder %s28, 0
      %p279 = por %p277, %p278
      %p280 = scmp.ne.s32.totalorder %s272, %s274
      %p281 = scmp.eq.s32.totalorder %s33, 1
      %p282 = por %p280, %p281
      %p283 = scmp.ne.s32.totalorder %s274, %s275
      %p284 = scmp.eq.s32.totalorder %s33, 0
      %p285 = por %p283, %p284
      %p286 = scmp.ne.s32.totalorder %s274, %s275
      %p287 = scmp.eq.s32.totalorder %s34, 1
      %p288 = por %p286, %p287
      %p290 = scmp.ne.s32.totalorder %s275, %s289
      %p291 = scmp.eq.s32.totalorder %s34, 0
      %p292 = por %p290, %p291
      %s294 = sadd.s32 %s293, 1
      %p297 = scmp.eq.s32.totalorder %s28, 1
      %p298 = scmp.ne.s32.totalorder %s293, %s295
      %p299 = scmp.eq.s32.totalorder %s28, 0
      %p300 = por %p298, %p299
      %p301 = scmp.ne.s32.totalorder %s293, %s295
      %p302 = scmp.eq.s32.totalorder %s33, 1
      %p303 = por %p301, %p302
      %p304 = scmp.ne.s32.totalorder %s295, %s296
      %p305 = scmp.eq.s32.totalorder %s33, 0
      %p306 = por %p304, %p305
      %p307 = scmp.ne.s32.totalorder %s295, %s296
      %p308 = scmp.eq.s32.totalorder %s34, 1
      %p309 = por %p307, %p308
      %p311 = scmp.ne.s32.totalorder %s296, %s310
      %p312 = scmp.eq.s32.totalorder %s34, 0
      %p313 = por %p311, %p312
      %s315 = sadd.s32 %s314, 1
      %p318 = scmp.eq.s32.totalorder %s28, 1
      %p319 = scmp.ne.s32.totalorder %s314, %s316
      %p320 = scmp.eq.s32.totalorder %s28, 0
      %p321 = por %p319, %p320
      %p322 = scmp.ne.s32.totalorder %s314, %s316
      %p323 = scmp.eq.s32.totalorder %s33, 1
      %p324 = por %p322, %p323
      %p325 = scmp.ne.s32.totalorder %s316, %s317
      %p326 = scmp.eq.s32.totalorder %s33, 0
      %p327 = por %p325, %p326
      %p328 = scmp.ne.s32.totalorder %s316, %s317
      %p329 = scmp.eq.s32.totalorder %s34, 1
      %p330 = por %p328, %p329
      %p332 = scmp.ne.s32.totalorder %s317, %s331
      %p333 = scmp.eq.s32.totalorder %s34, 0
      %p334 = por %p332, %p333
      %s336 = sadd.s32 %s335, 1
      %p339 = scmp.eq.s32.totalorder %s28, 1
      %p340 = scmp.ne.s32.totalorder %s335, %s337
      %p341 = scmp.eq.s32.totalorder %s28, 0
      %p342 = por %p340, %p341
      %p343 = scmp.ne.s32.totalorder %s335, %s337
      %p344 = scmp.eq.s32.totalorder %s33, 1
      %p345 = por %p343, %p344
      %p346 = scmp.ne.s32.totalorder %s337, %s338
      %p347 = scmp.eq.s32.totalorder %s33, 0
      %p348 = por %p346, %p347
      %p349 = scmp.ne.s32.totalorder %s337, %s338
      %p350 = scmp.eq.s32.totalorder %s34, 1
      %p351 = por %p349, %p350
      %p353 = scmp.ne.s32.totalorder %s338, %s352
      %p354 = scmp.eq.s32.totalorder %s34, 0
      %p355 = por %p353, %p354
      %s356 = ssub.s32 %s28, %s35
      %p357 = scmp.eq.s32.totalorder %s356, 0
      %s359 = sadd.s32 %s358, 1
      %s360 = scalar_select %p357, %s358, %s359
      %p363 = pneg %p357
      %p364 = scmp.eq.s32.totalorder %s28, 1
      %p365 = por %p363, %p364
      %p366 = scmp.ne.s32.totalorder %s358, %s361
      %p367 = scmp.eq.s32.totalorder %s28, 0
      %p368 = por %p366, %p367
      %p369 = scmp.ne.s32.totalorder %s358, %s361
      %p370 = scmp.eq.s32.totalorder %s33, 1
      %p371 = por %p369, %p370
      %p372 = scmp.ne.s32.totalorder %s361, %s362
      %p373 = scmp.eq.s32.totalorder %s33, 0
      %p374 = por %p372, %p373
      %p375 = scmp.ne.s32.totalorder %s361, %s362
      %p376 = scmp.eq.s32.totalorder %s34, 1
      %p377 = por %p375, %p376
      %p379 = scmp.ne.s32.totalorder %s362, %s378
      %p380 = scmp.eq.s32.totalorder %s34, 0
      %p381 = por %p379, %p380
      %p382 = scmp.le.s32.totalorder 1, %s28
      %p383 = scmp.lt.s32.totalorder %s28, 3
      %p384 = pnand %p382, %p383
      %p385 = pneg %p384
      // Predicated region
      $region9: #{forward.1} parent=5 // pred_check
        _
      $region10: #{forward.1} parent=5 // pred_check_branch
        %387 = sbr.rel (%p384) target = $region12
      $region11: #{forward.1} parent=5 // pred_region
        %s388 = ssub.s32 %s28, 1
        // Predicated region
        $region13: #{forward.1} parent=11 // pred_check
          %p389 = pneg %p75
        $region14: #{forward.1} parent=11 // pred_check_branch
          %391 = sbr.rel (%p389) target = $region16
        $region15: #{forward.1} parent=11 // pred_region
          %s393 = ssub.s32 128, 128
          %394 = vsyncadd [#allocation4], %s393
          %s396 = sshll.u32 [#allocation3], 4
          %s397 = int_to_ptr.vmem [resolvable:$true] %s396
          %399 = dma.hbm_to_vmem [thread:$0]  %s1, 128, %s397, [#allocation4]
        $region16: #{forward.1} parent=11 // pred_fallthru
          _
        // Predicated region
        $region17: #{forward.1} parent=11 // pred_check
          %p400 = pneg %p96
        $region18: #{forward.1} parent=11 // pred_check_branch
          %402 = sbr.rel (%p400) target = $region20
        $region19: #{forward.1} parent=11 // pred_region
          _
        $region20: #{forward.1} parent=11 // pred_fallthru
          _
        // Predicated region
        $region21: #{forward.1} parent=11 // pred_check
          %p403 = pneg %p117
        $region22: #{forward.1} parent=11 // pred_check_branch
          %405 = sbr.rel (%p403) target = $region24
        $region23: #{forward.1} parent=11 // pred_region
          %s407 = ssub.s32 128, 128
          %408 = vsyncadd [#allocation7], %s407
          %s410 = sshll.u32 [#allocation6], 4
          %s411 = int_to_ptr.vmem [resolvable:$true] %s410
          %413 = dma.hbm_to_vmem [thread:$0]  %s3, 128, %s411, [#allocation7]
        $region24: #{forward.1} parent=11 // pred_fallthru
          _
        // Predicated region
        $region25: #{forward.1} parent=11 // pred_check
          %p414 = pneg %p138
        $region26: #{forward.1} parent=11 // pred_check_branch
          %416 = sbr.rel (%p414) target = $region28
        $region27: #{forward.1} parent=11 // pred_region
          _
        $region28: #{forward.1} parent=11 // pred_fallthru
          _
        // Predicated region
        $region29: #{forward.1} parent=11 // pred_check
          %p417 = pneg %p159
        $region30: #{forward.1} parent=11 // pred_check_branch
          %419 = sbr.rel (%p417) target = $region32
        $region31: #{forward.1} parent=11 // pred_region
          %s421 = ssub.s32 128, 128
          %422 = vsyncadd [#allocation7], %s421
          %s424 = sshll.u32 [#allocation8], 4
          %s425 = int_to_ptr.vmem [resolvable:$true] %s424
          %427 = dma.hbm_to_vmem [thread:$0]  %s5, 128, %s425, [#allocation7]
        $region32: #{forward.1} parent=11 // pred_fallthru
          _
        // Predicated region
        $region33: #{forward.1} parent=11 // pred_check
          %p428 = pneg %p180
        $region34: #{forward.1} parent=11 // pred_check_branch
          %430 = sbr.rel (%p428) target = $region36
        $region35: #{forward.1} parent=11 // pred_region
          _
        $region36: #{forward.1} parent=11 // pred_fallthru
          _
        // Predicated region
        $region37: #{forward.1} parent=11 // pred_check
          %p431 = pneg %p201
        $region38: #{forward.1} parent=11 // pred_check_branch
          %433 = sbr.rel (%p431) target = $region40
        $region39: #{forward.1} parent=11 // pred_region
          %s435 = ssub.s32 128, 128
          %436 = vsyncadd [#allocation10], %s435
          %s438 = sshll.u32 [#allocation9], 4
          %s439 = int_to_ptr.vmem [resolvable:$true] %s438
          %441 = dma.hbm_to_vmem [thread:$0]  %s7, 128, %s439, [#allocation10]
        $region40: #{forward.1} parent=11 // pred_fallthru
          _
        // Predicated region
        $region41: #{forward.1} parent=11 // pred_check
          %p442 = pneg %p222
        $region42: #{forward.1} parent=11 // pred_check_branch
          %444 = sbr.rel (%p442) target = $region44
        $region43: #{forward.1} parent=11 // pred_region
          _
        $region44: #{forward.1} parent=11 // pred_fallthru
          _
        // Predicated region
        $region45: #{forward.1} parent=11 // pred_check
          %p445 = pneg %p243
        $region46: #{forward.1} parent=11 // pred_check_branch
          %447 = sbr.rel (%p445) target = $region48
        $region47: #{forward.1} parent=11 // pred_region
          %s449 = ssub.s32 1792, 1792
          %450 = vsyncadd [#allocation10], %s449
          %s451 = sshll.u32 [#allocation11], 4
          %s452 = int_to_ptr.vmem [resolvable:$true] %s451
          %457 = dma.hbm_to_vmem [thread:$0]  %s9, 1792, %s452, [#allocation10], 896, 896, 56
        $region48: #{forward.1} parent=11 // pred_fallthru
          _
        // Predicated region
        $region49: #{forward.1} parent=11 // pred_check
          %p458 = pneg %p264
        $region50: #{forward.1} parent=11 // pred_check_branch
          %460 = sbr.rel (%p458) target = $region52
        $region51: #{forward.1} parent=11 // pred_region
          _
        $region52: #{forward.1} parent=11 // pred_fallthru
          _
        // Predicated region
        $region53: #{forward.1} parent=11 // pred_check
          %p461 = pneg %p285
        $region54: #{forward.1} parent=11 // pred_check_branch
          %463 = sbr.rel (%p461) target = $region56
        $region55: #{forward.1} parent=11 // pred_region
          %s465 = ssub.s32 28672, 28672
          %466 = vsyncadd [#allocation13], %s465
          %s467 = sshll.u32 [#allocation12], 4
          %s468 = int_to_ptr.vmem [resolvable:$true] %s467
          %473 = dma.hbm_to_vmem [thread:$0]  %s11, 28672, %s468, [#allocation13], 256, 256, 16
        $region56: #{forward.1} parent=11 // pred_fallthru
          _
        // Predicated region
        $region57: #{forward.1} parent=11 // pred_check
          %p474 = pneg %p306
        $region58: #{forward.1} parent=11 // pred_check_branch
          %476 = sbr.rel (%p474) target = $region60
        $region59: #{forward.1} parent=11 // pred_region
          _
        $region60: #{forward.1} parent=11 // pred_fallthru
          _
        // Predicated region
        $region61: #{forward.1} parent=11 // pred_check
          %p477 = pneg %p327
        $region62: #{forward.1} parent=11 // pred_check_branch
          %479 = sbr.rel (%p477) target = $region64
        $region63: #{forward.1} parent=11 // pred_region
          %s481 = ssub.s32 16384, 16384
          %482 = vsyncadd [#allocation13], %s481
          %s483 = sshll.u32 [#allocation14], 4
          %s484 = int_to_ptr.vmem [resolvable:$true] %s483
          %489 = dma.hbm_to_vmem [thread:$0]  %s13, 16384, %s484, [#allocation13], 128, 128, 8
        $region64: #{forward.1} parent=11 // pred_fallthru
          _
        // Predicated region
        $region65: #{forward.1} parent=11 // pred_check
          %p490 = pneg %p348
        $region66: #{forward.1} parent=11 // pred_check_branch
          %492 = sbr.rel (%p490) target = $region68
        $region67: #{forward.1} parent=11 // pred_region
          _
        $region68: #{forward.1} parent=11 // pred_fallthru
          _
      $region12: #{forward.1} parent=5 // pred_fallthru
        _
      %p493 = scmp.lt.s32.totalorder %s28, 2
      // Predicated region
      $region69: #{forward.1} parent=5 // pred_check
        %p494 = pneg %p493
      $region70: #{forward.1} parent=5 // pred_check_branch
        %496 = sbr.rel (%p494) target = $region72
      $region71: #{forward.1} parent=5 // pred_region
        // Predicated region
        $region73: #{forward.1} parent=71 // pred_check
          %p497 = pneg %p48
        $region74: #{forward.1} parent=71 // pred_check_branch
          %499 = sbr.rel (%p497) target = $region76
        $region75: #{forward.1} parent=71 // pred_region
          %p500 = scmp.lt.s32.totalorder %s28, 1
          %s501 = scalar_select %p500, %s28, 1
          %s502 = smul.addr %s501, 7
          %s503 = scalar_lea.vmem %s0, %s502
        $region76: #{forward.1} parent=71 // pred_fallthru
          _
      $region72: #{forward.1} parent=5 // pred_fallthru
        _
      %p504 = scmp.le.s32.totalorder 1, %s28
      %p505 = scmp.lt.s32.totalorder %s28, 3
      %p506 = pnand %p504, %p505
      %p507 = pneg %p506
      // Predicated region
      $region77: #{forward.1} parent=5 // pred_check
        _
      $region78: #{forward.1} parent=5 // pred_check_branch
        %509 = sbr.rel (%p506) target = $region80
      $region79: #{forward.1} parent=5 // pred_region
        %s510 = ssub.s32 %s28, 1
        // Predicated region
        $region81: #{forward.1} parent=79 // pred_check
          %p511 = pneg %p75
        $region82: #{forward.1} parent=79 // pred_check_branch
          %513 = sbr.rel (%p511) target = $region84
        $region83: #{forward.1} parent=79 // pred_region
          %514 = dma.done [#allocation4], 128
        $region84: #{forward.1} parent=79 // pred_fallthru
          _
        // Predicated region
        $region85: #{forward.1} parent=79 // pred_check
          %p515 = pneg %p117
        $region86: #{forward.1} parent=79 // pred_check_branch
          %517 = sbr.rel (%p515) target = $region88
        $region87: #{forward.1} parent=79 // pred_region
          %518 = dma.done [#allocation7], 128
        $region88: #{forward.1} parent=79 // pred_fallthru
          _
        // Predicated region
        $region89: #{forward.1} parent=79 // pred_check
          %p519 = pneg %p159
        $region90: #{forward.1} parent=79 // pred_check_branch
          %521 = sbr.rel (%p519) target = $region92
        $region91: #{forward.1} parent=79 // pred_region
          %522 = dma.done [#allocation7], 128
        $region92: #{forward.1} parent=79 // pred_fallthru
          _
        // Predicated region
        $region93: #{forward.1} parent=79 // pred_check
          %p523 = pneg %p201
        $region94: #{forward.1} parent=79 // pred_check_branch
          %525 = sbr.rel (%p523) target = $region96
        $region95: #{forward.1} parent=79 // pred_region
          %526 = dma.done [#allocation10], 128
        $region96: #{forward.1} parent=79 // pred_fallthru
          _
        // Predicated region
        $region97: #{forward.1} parent=79 // pred_check
          %p527 = pneg %p243
        $region98: #{forward.1} parent=79 // pred_check_branch
          %529 = sbr.rel (%p527) target = $region100
        $region99: #{forward.1} parent=79 // pred_region
          %530 = dma.done [#allocation10], 1792
        $region100: #{forward.1} parent=79 // pred_fallthru
          _
        // Predicated region
        $region101: #{forward.1} parent=79 // pred_check
          %p531 = pneg %p285
        $region102: #{forward.1} parent=79 // pred_check_branch
          %533 = sbr.rel (%p531) target = $region104
        $region103: #{forward.1} parent=79 // pred_region
          %534 = dma.done [#allocation13], 28672
        $region104: #{forward.1} parent=79 // pred_fallthru
          _
        // Predicated region
        $region105: #{forward.1} parent=79 // pred_check
          %p535 = pneg %p327
        $region106: #{forward.1} parent=79 // pred_check_branch
          %537 = sbr.rel (%p535) target = $region108
        $region107: #{forward.1} parent=79 // pred_region
          %538 = dma.done [#allocation13], 16384
        $region108: #{forward.1} parent=79 // pred_fallthru
          _
        %p539 = scmp.lt.s32.totalorder %s33, 1
        %s540 = scalar_select %p539, %s33, 1
        %s541 = smul.addr %s540, 7
        %s542 = scalar_lea.vmem %s0, %s541
        %p543 = pneg %p54
        %p544 = pneg %p51
        %p545 = pneg %p75
        %p546 = pneg %p72
        %p547 = pneg %p96
        %p548 = pneg %p93
        %p549 = pneg %p117
        %p550 = pneg %p114
        %p551 = pneg %p138
        %p552 = pneg %p135
        %p553 = pneg %p159
        %p554 = pneg %p156
        %p555 = pneg %p180
        %p556 = pneg %p177
        %p557 = pneg %p201
        %p558 = pneg %p198
        %p559 = pneg %p222
        %p560 = pneg %p219
        %p561 = pneg %p243
        %p562 = pneg %p240
        %p563 = pneg %p264
        %p564 = pneg %p261
        %p565 = pneg %p285
        %p566 = pneg %p282
        %p567 = pneg %p306
        %p568 = pneg %p303
        %p569 = pneg %p327
        %p570 = pneg %p324
        %p571 = pneg %p348
        %p572 = pneg %p345
        %p573 = pneg %p374
        %p574 = pneg %p371
        %s575 = sand.u32 %s361, 1
        %s576 = scalar_lea.sflag [#allocation5], %s575
        %s577 = sand.u32 %s361, 1
        %s578 = scalar_lea.vmem [#allocation15], %s577
        %p579 = scmp.lt.s32.totalorder %s33, 1
        %s580 = scalar_select %p579, %s33, 1
        %s581 = smul.addr %s580, 7
        %s582 = scalar_lea.vmem %s0, %s581
        %v583 = vld [vmem:[%s582] sm:$0xff]
        %v585 = vlaneseq
        %v586 = vshrl.u32 %v585, 7
        %v587 = vsub.s32 0, %v586
        %v588 = vrot.slane %v583, %v587
        %v589 = vlaneseq
        %v590 = vshrl.u32 %v589, 7
        %v591 = vsub.s32 1, %v590
        %v592 = vrot.slane %v583, %v591
        %v593 = vlaneseq
        %v594 = vshrl.u32 %v593, 7
        %v595 = vsub.s32 2, %v594
        %v596 = vrot.slane %v583, %v595
        %v597 = vlaneseq
        %v598 = vshrl.u32 %v597, 7
        %v599 = vsub.s32 3, %v598
        %v600 = vrot.slane %v583, %v599
        %v601 = vlaneseq
        %v602 = vshrl.u32 %v601, 7
        %v603 = vsub.s32 4, %v602
        %v604 = vrot.slane %v583, %v603
        %v605 = vlaneseq
        %v606 = vshrl.u32 %v605, 7
        %v607 = vsub.s32 5, %v606
        %v608 = vrot.slane %v583, %v607
        %v609 = vlaneseq
        %v610 = vshrl.u32 %v609, 7
        %v611 = vsub.s32 6, %v610
        %v612 = vrot.slane %v583, %v611
        %620 = vrot.lane.b32.xlu0 %v588, 29
        %v621 = vpop.permute.xlu0 %620
        %622 = vrot.lane.b32.xlu0 %v592, 29
        %v623 = vpop.permute.xlu0 %622
        %624 = vrot.lane.b32.xlu0 %v596, 29
        %v625 = vpop.permute.xlu0 %624
        %626 = vrot.lane.b32.xlu0 %v600, 29
        %v627 = vpop.permute.xlu0 %626
        %628 = vrot.lane.b32.xlu0 %v604, 29
        %v629 = vpop.permute.xlu0 %628
        %630 = vrot.lane.b32.xlu0 %v608, 29
        %v631 = vpop.permute.xlu0 %630
        %632 = vrot.lane.b32.xlu0 %v612, 29
        %v633 = vpop.permute.xlu0 %632
        %v634 = vlaneseq
        %v635 = vand.u32 %v634, 127
        %vm636 = vcmp.lt.s32.totalorder %v635, 29
        %v637 = vsel %vm636, %v631, %v633
        %v638 = vsel %vm636, %v629, %v631
        %v639 = vsel %vm636, %v627, %v629
        %v640 = vsel %vm636, %v625, %v627
        %v641 = vsel %vm636, %v623, %v625
        %v642 = vsel %vm636, %v621, %v623
        %v643 = vsel %vm636, %v633, %v621
        %v644 = vld [vmem:[#allocation11] ss:$8 sm:$0xf]
        %v645 = vld [vmem:[#allocation11] ss:$8 sm:$0xf0]
        %v646 = vor.u32 %v644, %v645
        %v648 = vlaneseq
        %v649 = vshrl.u32 %v648, 7
        %v650 = vsub.s32 0, %v649
        %v651 = vrot.slane %v646, %v650
        %v652 = vlaneseq
        %v653 = vshrl.u32 %v652, 7
        %v654 = vsub.s32 1, %v653
        %v655 = vrot.slane %v646, %v654
        %v656 = vlaneseq
        %v657 = vshrl.u32 %v656, 7
        %v658 = vsub.s32 2, %v657
        %v659 = vrot.slane %v646, %v658
        %v660 = vlaneseq
        %v661 = vshrl.u32 %v660, 7
        %v662 = vsub.s32 3, %v661
        %v663 = vrot.slane %v646, %v662
        %v664 = vlaneseq
        %v665 = vshrl.u32 %v664, 7
        %v666 = vsub.s32 4, %v665
        %v667 = vrot.slane %v646, %v666
        %v668 = vlaneseq
        %v669 = vshrl.u32 %v668, 7
        %v670 = vsub.s32 5, %v669
        %v671 = vrot.slane %v646, %v670
        %v672 = vlaneseq
        %v673 = vshrl.u32 %v672, 7
        %v674 = vsub.s32 6, %v673
        %v675 = vrot.slane %v646, %v674
        %v683 = vmul.f32 %v643, %v651
        %v684 = vmul.f32 %v642, %v655
        %v685 = vmul.f32 %v641, %v659
        %v686 = vmul.f32 %v640, %v663
        %v687 = vmul.f32 %v639, %v667
        %v688 = vmul.f32 %v638, %v671
        %v689 = vmul.f32 %v637, %v675
        %v697 = vcombine.low %v683, %v684
        %v698 = vcombine.low %v685, %v686
        %v699 = vcombine.low %v687, %v688
        %v701 = vunpack.c.l.s4 1966171168
        %v702 = vunpack.c.0.s8 %v701
        %v703 = vlaneseq
        %v704 = vshrl.u32 %v703, 7
        %v705 = vsub.s32 %v702, %v704
        %v706 = vrot.slane %v697, %v705
        %v708 = vunpack.c.l.s4 1966171168
        %v709 = vunpack.c.0.s8 %v708
        %v710 = vlaneseq
        %v711 = vshrl.u32 %v710, 7
        %v712 = vsub.s32 %v709, %v711
        %v713 = vrot.slane %v698, %v712
        %v715 = vunpack.c.l.s4 1966171168
        %v716 = vunpack.c.0.s8 %v715
        %v717 = vlaneseq
        %v718 = vshrl.u32 %v717, 7
        %v719 = vsub.s32 %v716, %v718
        %v720 = vrot.slane %v699, %v719
        %v722 = vunpack.c.l.s4 1966171168
        %v723 = vunpack.c.0.s8 %v722
        %v724 = vlaneseq
        %v725 = vshrl.u32 %v724, 7
        %v726 = vsub.s32 %v723, %v725
        %v727 = vrot.slane %v689, %v726
        %v728 = vcombine.low %v706, %v713
        %v729 = vcombine.low %v720, %v727
        %v731 = vunpack.c.l.s4 1966171168
        %v732 = vunpack.c.0.s8 %v731
        %v733 = vlaneseq
        %v734 = vshrl.u32 %v733, 7
        %v735 = vsub.s32 %v732, %v734
        %v736 = vrot.slane %v728, %v735
        %v738 = vunpack.c.l.s4 1966171168
        %v739 = vunpack.c.0.s8 %v738
        %v740 = vlaneseq
        %v741 = vshrl.u32 %v740, 7
        %v742 = vsub.s32 %v739, %v741
        %v743 = vrot.slane %v729, %v742
        %v744 = vcombine.low %v736, %v743
        %v746 = vlaneseq
        %vm747 = vcmp.ge.s32.totalorder %v746, 0
        %vm748 = vcmp.lt.s32.totalorder %v746, 896
        %vm749 = vmand %vm747, %vm748
        %750 = vst.msk [vmem:[#allocation2] ss:$8 sm:$0xf] %vm749, %v744
        %751 = vst.msk [vmem:[#allocation2] ss:$8 sm:$0x70] %vm749, %v744
        %752 = vrot.lane.b32.xlu0 %v588, 28
        %v753 = vpop.permute.xlu0 %752
        %754 = vrot.lane.b32.xlu0 %v592, 28
        %v755 = vpop.permute.xlu0 %754
        %756 = vrot.lane.b32.xlu0 %v596, 28
        %v757 = vpop.permute.xlu0 %756
        %758 = vrot.lane.b32.xlu0 %v600, 28
        %v759 = vpop.permute.xlu0 %758
        %760 = vrot.lane.b32.xlu0 %v604, 28
        %v761 = vpop.permute.xlu0 %760
        %762 = vrot.lane.b32.xlu0 %v608, 28
        %v763 = vpop.permute.xlu0 %762
        %764 = vrot.lane.b32.xlu0 %v612, 28
        %v765 = vpop.permute.xlu0 %764
        %vm766 = vcmp.lt.s32.totalorder %v635, 28
        %v767 = vsel %vm766, %v763, %v765
        %v768 = vsel %vm766, %v761, %v763
        %v769 = vsel %vm766, %v759, %v761
        %v770 = vsel %vm766, %v757, %v759
        %v771 = vsel %vm766, %v755, %v757
        %v772 = vsel %vm766, %v753, %v755
        %v773 = vsel %vm766, %v765, %v753
        %s774 = scalar_lea.vmem [#allocation11], 1
        %v775 = vld [vmem:[%s774] ss:$8 sm:$0xf]
        %v776 = vld [vmem:[%s774] ss:$8 sm:$0xf0]
        %v777 = vor.u32 %v775, %v776
        %v779 = vlaneseq
        %v780 = vshrl.u32 %v779, 7
        %v781 = vsub.s32 0, %v780
        %v782 = vrot.slane %v777, %v781
        %v783 = vlaneseq
        %v784 = vshrl.u32 %v783, 7
        %v785 = vsub.s32 1, %v784
        %v786 = vrot.slane %v777, %v785
        %v787 = vlaneseq
        %v788 = vshrl.u32 %v787, 7
        %v789 = vsub.s32 2, %v788
        %v790 = vrot.slane %v777, %v789
        %v791 = vlaneseq
        %v792 = vshrl.u32 %v791, 7
        %v793 = vsub.s32 3, %v792
        %v794 = vrot.slane %v777, %v793
        %v795 = vlaneseq
        %v796 = vshrl.u32 %v795, 7
        %v797 = vsub.s32 4, %v796
        %v798 = vrot.slane %v777, %v797
        %v799 = vlaneseq
        %v800 = vshrl.u32 %v799, 7
        %v801 = vsub.s32 5, %v800
        %v802 = vrot.slane %v777, %v801
        %v803 = vlaneseq
        %v804 = vshrl.u32 %v803, 7
        %v805 = vsub.s32 6, %v804
        %v806 = vrot.slane %v777, %v805
        %v814 = vmul.f32 %v773, %v782
        %v815 = vmul.f32 %v772, %v786
        %v816 = vmul.f32 %v771, %v790
        %v817 = vmul.f32 %v770, %v794
        %v818 = vmul.f32 %v769, %v798
        %v819 = vmul.f32 %v768, %v802
        %v820 = vmul.f32 %v767, %v806
        %v828 = vcombine.low %v814, %v815
        %v829 = vcombine.low %v816, %v817
        %v830 = vcombine.low %v818, %v819
        %v832 = vunpack.c.l.s4 1966171168
        %v833 = vunpack.c.0.s8 %v832
        %v834 = vlaneseq
        %v835 = vshrl.u32 %v834, 7
        %v836 = vsub.s32 %v833, %v835
        %v837 = vrot.slane %v828, %v836
        %v839 = vunpack.c.l.s4 1966171168
        %v840 = vunpack.c.0.s8 %v839
        %v841 = vlaneseq
        %v842 = vshrl.u32 %v841, 7
        %v843 = vsub.s32 %v840, %v842
        %v844 = vrot.slane %v829, %v843
        %v846 = vunpack.c.l.s4 1966171168
        %v847 = vunpack.c.0.s8 %v846
        %v848 = vlaneseq
        %v849 = vshrl.u32 %v848, 7
        %v850 = vsub.s32 %v847, %v849
        %v851 = vrot.slane %v830, %v850
        %v853 = vunpack.c.l.s4 1966171168
        %v854 = vunpack.c.0.s8 %v853
        %v855 = vlaneseq
        %v856 = vshrl.u32 %v855, 7
        %v857 = vsub.s32 %v854, %v856
        %v858 = vrot.slane %v820, %v857
        %v859 = vcombine.low %v837, %v844
        %v860 = vcombine.low %v851, %v858
        %v862 = vunpack.c.l.s4 1966171168
        %v863 = vunpack.c.0.s8 %v862
        %v864 = vlaneseq
        %v865 = vshrl.u32 %v864, 7
        %v866 = vsub.s32 %v863, %v865
        %v867 = vrot.slane %v859, %v866
        %v869 = vunpack.c.l.s4 1966171168
        %v870 = vunpack.c.0.s8 %v869
        %v871 = vlaneseq
        %v872 = vshrl.u32 %v871, 7
        %v873 = vsub.s32 %v870, %v872
        %v874 = vrot.slane %v860, %v873
        %v875 = vcombine.low %v867, %v874
        %s877 = scalar_lea.vmem [#allocation2], 1
        %878 = vst.msk [vmem:[%s877] ss:$8 sm:$0xf] %vm749, %v875
        %879 = vst.msk [vmem:[%s877] ss:$8 sm:$0x70] %vm749, %v875
        %880 = vrot.lane.b32.xlu0 %v588, 27
        %v881 = vpop.permute.xlu0 %880
        %882 = vrot.lane.b32.xlu0 %v592, 27
        %v883 = vpop.permute.xlu0 %882
        %884 = vrot.lane.b32.xlu0 %v596, 27
        %v885 = vpop.permute.xlu0 %884
        %886 = vrot.lane.b32.xlu0 %v600, 27
        %v887 = vpop.permute.xlu0 %886
        %888 = vrot.lane.b32.xlu0 %v604, 27
        %v889 = vpop.permute.xlu0 %888
        %890 = vrot.lane.b32.xlu0 %v608, 27
        %v891 = vpop.permute.xlu0 %890
        %892 = vrot.lane.b32.xlu0 %v612, 27
        %v893 = vpop.permute.xlu0 %892
        %vm894 = vcmp.lt.s32.totalorder %v635, 27
        %v895 = vsel %vm894, %v891, %v893
        %v896 = vsel %vm894, %v889, %v891
        %v897 = vsel %vm894, %v887, %v889
        %v898 = vsel %vm894, %v885, %v887
        %v899 = vsel %vm894, %v883, %v885
        %v900 = vsel %vm894, %v881, %v883
        %v901 = vsel %vm894, %v893, %v881
        %s902 = scalar_lea.vmem [#allocation11], 2
        %v903 = vld [vmem:[%s902] ss:$8 sm:$0xf]
        %v904 = vld [vmem:[%s902] ss:$8 sm:$0xf0]
        %v905 = vor.u32 %v903, %v904
        %v907 = vlaneseq
        %v908 = vshrl.u32 %v907, 7
        %v909 = vsub.s32 0, %v908
        %v910 = vrot.slane %v905, %v909
        %v911 = vlaneseq
        %v912 = vshrl.u32 %v911, 7
        %v913 = vsub.s32 1, %v912
        %v914 = vrot.slane %v905, %v913
        %v915 = vlaneseq
        %v916 = vshrl.u32 %v915, 7
        %v917 = vsub.s32 2, %v916
        %v918 = vrot.slane %v905, %v917
        %v919 = vlaneseq
        %v920 = vshrl.u32 %v919, 7
        %v921 = vsub.s32 3, %v920
        %v922 = vrot.slane %v905, %v921
        %v923 = vlaneseq
        %v924 = vshrl.u32 %v923, 7
        %v925 = vsub.s32 4, %v924
        %v926 = vrot.slane %v905, %v925
        %v927 = vlaneseq
        %v928 = vshrl.u32 %v927, 7
        %v929 = vsub.s32 5, %v928
        %v930 = vrot.slane %v905, %v929
        %v931 = vlaneseq
        %v932 = vshrl.u32 %v931, 7
        %v933 = vsub.s32 6, %v932
        %v934 = vrot.slane %v905, %v933
        %v942 = vmul.f32 %v901, %v910
        %v943 = vmul.f32 %v900, %v914
        %v944 = vmul.f32 %v899, %v918
        %v945 = vmul.f32 %v898, %v922
        %v946 = vmul.f32 %v897, %v926
        %v947 = vmul.f32 %v896, %v930
        %v948 = vmul.f32 %v895, %v934
        %v956 = vcombine.low %v942, %v943
        %v957 = vcombine.low %v944, %v945
        %v958 = vcombine.low %v946, %v947
        %v960 = vunpack.c.l.s4 1966171168
        %v961 = vunpack.c.0.s8 %v960
        %v962 = vlaneseq
        %v963 = vshrl.u32 %v962, 7
        %v964 = vsub.s32 %v961, %v963
        %v965 = vrot.slane %v956, %v964
        %v967 = vunpack.c.l.s4 1966171168
        %v968 = vunpack.c.0.s8 %v967
        %v969 = vlaneseq
        %v970 = vshrl.u32 %v969, 7
        %v971 = vsub.s32 %v968, %v970
        %v972 = vrot.slane %v957, %v971
        %v974 = vunpack.c.l.s4 1966171168
        %v975 = vunpack.c.0.s8 %v974
        %v976 = vlaneseq
        %v977 = vshrl.u32 %v976, 7
        %v978 = vsub.s32 %v975, %v977
        %v979 = vrot.slane %v958, %v978
        %v981 = vunpack.c.l.s4 1966171168
        %v982 = vunpack.c.0.s8 %v981
        %v983 = vlaneseq
        %v984 = vshrl.u32 %v983, 7
        %v985 = vsub.s32 %v982, %v984
        %v986 = vrot.slane %v948, %v985
        %v987 = vcombine.low %v965, %v972
        %v988 = vcombine.low %v979, %v986
        %v990 = vunpack.c.l.s4 1966171168
        %v991 = vunpack.c.0.s8 %v990
        %v992 = vlaneseq
        %v993 = vshrl.u32 %v992, 7
        %v994 = vsub.s32 %v991, %v993
        %v995 = vrot.slane %v987, %v994
        %v997 = vunpack.c.l.s4 1966171168
        %v998 = vunpack.c.0.s8 %v997
        %v999 = vlaneseq
        %v1000 = vshrl.u32 %v999, 7
        %v1001 = vsub.s32 %v998, %v1000
        %v1002 = vrot.slane %v988, %v1001
        %v1003 = vcombine.low %v995, %v1002
        %s1005 = scalar_lea.vmem [#allocation2], 2
        %1006 = vst.msk [vmem:[%s1005] ss:$8 sm:$0xf] %vm749, %v1003
        %1007 = vst.msk [vmem:[%s1005] ss:$8 sm:$0x70] %vm749, %v1003
        %1008 = vrot.lane.b32.xlu0 %v588, 1
        %v1009 = vpop.permute.xlu0 %1008
        %1010 = vrot.lane.b32.xlu0 %v592, 1
        %v1011 = vpop.permute.xlu0 %1010
        %1012 = vrot.lane.b32.xlu0 %v596, 1
        %v1013 = vpop.permute.xlu0 %1012
        %1014 = vrot.lane.b32.xlu0 %v600, 1
        %v1015 = vpop.permute.xlu0 %1014
        %1016 = vrot.lane.b32.xlu0 %v604, 1
        %v1017 = vpop.permute.xlu0 %1016
        %1018 = vrot.lane.b32.xlu0 %v608, 1
        %v1019 = vpop.permute.xlu0 %1018
        %1020 = vrot.lane.b32.xlu0 %v612, 1
        %v1021 = vpop.permute.xlu0 %1020
        %vm1022 = vcmp.lt.s32.totalorder %v635, 1
        %v1023 = vsel %vm1022, %v1019, %v1021
        %v1024 = vsel %vm1022, %v1017, %v1019
        %v1025 = vsel %vm1022, %v1015, %v1017
        %v1026 = vsel %vm1022, %v1013, %v1015
        %v1027 = vsel %vm1022, %v1011, %v1013
        %v1028 = vsel %vm1022, %v1009, %v1011
        %v1029 = vsel %vm1022, %v1021, %v1009
        %s1030 = scalar_lea.vmem [#allocation11], 3
        %v1031 = vld [vmem:[%s1030] ss:$8 sm:$0xf]
        %v1032 = vld [vmem:[%s1030] ss:$8 sm:$0xf0]
        %v1033 = vor.u32 %v1031, %v1032
        %v1035 = vlaneseq
        %v1036 = vshrl.u32 %v1035, 7
        %v1037 = vsub.s32 0, %v1036
        %v1038 = vrot.slane %v1033, %v1037
        %v1039 = vlaneseq
        %v1040 = vshrl.u32 %v1039, 7
        %v1041 = vsub.s32 1, %v1040
        %v1042 = vrot.slane %v1033, %v1041
        %v1043 = vlaneseq
        %v1044 = vshrl.u32 %v1043, 7
        %v1045 = vsub.s32 2, %v1044
        %v1046 = vrot.slane %v1033, %v1045
        %v1047 = vlaneseq
        %v1048 = vshrl.u32 %v1047, 7
        %v1049 = vsub.s32 3, %v1048
        %v1050 = vrot.slane %v1033, %v1049
        %v1051 = vlaneseq
        %v1052 = vshrl.u32 %v1051, 7
        %v1053 = vsub.s32 4, %v1052
        %v1054 = vrot.slane %v1033, %v1053
        %v1055 = vlaneseq
        %v1056 = vshrl.u32 %v1055, 7
        %v1057 = vsub.s32 5, %v1056
        %v1058 = vrot.slane %v1033, %v1057
        %v1059 = vlaneseq
        %v1060 = vshrl.u32 %v1059, 7
        %v1061 = vsub.s32 6, %v1060
        %v1062 = vrot.slane %v1033, %v1061
        %v1070 = vmul.f32 %v1029, %v1038
        %v1071 = vmul.f32 %v1028, %v1042
        %v1072 = vmul.f32 %v1027, %v1046
        %v1073 = vmul.f32 %v1026, %v1050
        %v1074 = vmul.f32 %v1025, %v1054
        %v1075 = vmul.f32 %v1024, %v1058
        %v1076 = vmul.f32 %v1023, %v1062
        %v1084 = vcombine.low %v1070, %v1071
        %v1085 = vcombine.low %v1072, %v1073
        %v1086 = vcombine.low %v1074, %v1075
        %v1088 = vunpack.c.l.s4 1966171168
        %v1089 = vunpack.c.0.s8 %v1088
        %v1090 = vlaneseq
        %v1091 = vshrl.u32 %v1090, 7
        %v1092 = vsub.s32 %v1089, %v1091
        %v1093 = vrot.slane %v1084, %v1092
        %v1095 = vunpack.c.l.s4 1966171168
        %v1096 = vunpack.c.0.s8 %v1095
        %v1097 = vlaneseq
        %v1098 = vshrl.u32 %v1097, 7
        %v1099 = vsub.s32 %v1096, %v1098
        %v1100 = vrot.slane %v1085, %v1099
        %v1102 = vunpack.c.l.s4 1966171168
        %v1103 = vunpack.c.0.s8 %v1102
        %v1104 = vlaneseq
        %v1105 = vshrl.u32 %v1104, 7
        %v1106 = vsub.s32 %v1103, %v1105
        %v1107 = vrot.slane %v1086, %v1106
        %v1109 = vunpack.c.l.s4 1966171168
        %v1110 = vunpack.c.0.s8 %v1109
        %v1111 = vlaneseq
        %v1112 = vshrl.u32 %v1111, 7
        %v1113 = vsub.s32 %v1110, %v1112
        %v1114 = vrot.slane %v1076, %v1113
        %v1115 = vcombine.low %v1093, %v1100
        %v1116 = vcombine.low %v1107, %v1114
        %v1118 = vunpack.c.l.s4 1966171168
        %v1119 = vunpack.c.0.s8 %v1118
        %v1120 = vlaneseq
        %v1121 = vshrl.u32 %v1120, 7
        %v1122 = vsub.s32 %v1119, %v1121
        %v1123 = vrot.slane %v1115, %v1122
        %v1125 = vunpack.c.l.s4 1966171168
        %v1126 = vunpack.c.0.s8 %v1125
        %v1127 = vlaneseq
        %v1128 = vshrl.u32 %v1127, 7
        %v1129 = vsub.s32 %v1126, %v1128
        %v1130 = vrot.slane %v1116, %v1129
        %v1131 = vcombine.low %v1123, %v1130
        %s1133 = scalar_lea.vmem [#allocation2], 3
        %1134 = vst.msk [vmem:[%s1133] ss:$8 sm:$0xf] %vm749, %v1131
        %1135 = vst.msk [vmem:[%s1133] ss:$8 sm:$0x70] %vm749, %v1131
        %s1136 = scalar_lea.vmem [#allocation11], 4
        %v1137 = vld [vmem:[%s1136] ss:$8 sm:$0xf]
        %v1138 = vld [vmem:[%s1136] ss:$8 sm:$0xf0]
        %v1139 = vor.u32 %v1137, %v1138
        %v1140 = vmul.f32 %v583, %v1139
        %s1141 = scalar_lea.vmem [#allocation2], 4
        %1142 = vst.msk [vmem:[%s1141] ss:$8 sm:$0xf] %vm749, %v1140
        %1143 = vst.msk [vmem:[%s1141] ss:$8 sm:$0x70] %vm749, %v1140
        %1144 = vrot.lane.b32.xlu0 %v588, 127
        %v1145 = vpop.permute.xlu0 %1144
        %1146 = vrot.lane.b32.xlu0 %v592, 127
        %v1147 = vpop.permute.xlu0 %1146
        %1148 = vrot.lane.b32.xlu0 %v596, 127
        %v1149 = vpop.permute.xlu0 %1148
        %1150 = vrot.lane.b32.xlu0 %v600, 127
        %v1151 = vpop.permute.xlu0 %1150
        %1152 = vrot.lane.b32.xlu0 %v604, 127
        %v1153 = vpop.permute.xlu0 %1152
        %1154 = vrot.lane.b32.xlu0 %v608, 127
        %v1155 = vpop.permute.xlu0 %1154
        %1156 = vrot.lane.b32.xlu0 %v612, 127
        %v1157 = vpop.permute.xlu0 %1156
        %vm1158 = vcmp.lt.s32.totalorder %v635, 127
        %v1159 = vsel %vm1158, %v1155, %v1157
        %v1160 = vsel %vm1158, %v1153, %v1155
        %v1161 = vsel %vm1158, %v1151, %v1153
        %v1162 = vsel %vm1158, %v1149, %v1151
        %v1163 = vsel %vm1158, %v1147, %v1149
        %v1164 = vsel %vm1158, %v1145, %v1147
        %v1165 = vsel %vm1158, %v1157, %v1145
        %s1166 = scalar_lea.vmem [#allocation11], 5
        %v1167 = vld [vmem:[%s1166] ss:$8 sm:$0xf]
        %v1168 = vld [vmem:[%s1166] ss:$8 sm:$0xf0]
        %v1169 = vor.u32 %v1167, %v1168
        %v1171 = vlaneseq
        %v1172 = vshrl.u32 %v1171, 7
        %v1173 = vsub.s32 0, %v1172
        %v1174 = vrot.slane %v1169, %v1173
        %v1175 = vlaneseq
        %v1176 = vshrl.u32 %v1175, 7
        %v1177 = vsub.s32 1, %v1176
        %v1178 = vrot.slane %v1169, %v1177
        %v1179 = vlaneseq
        %v1180 = vshrl.u32 %v1179, 7
        %v1181 = vsub.s32 2, %v1180
        %v1182 = vrot.slane %v1169, %v1181
        %v1183 = vlaneseq
        %v1184 = vshrl.u32 %v1183, 7
        %v1185 = vsub.s32 3, %v1184
        %v1186 = vrot.slane %v1169, %v1185
        %v1187 = vlaneseq
        %v1188 = vshrl.u32 %v1187, 7
        %v1189 = vsub.s32 4, %v1188
        %v1190 = vrot.slane %v1169, %v1189
        %v1191 = vlaneseq
        %v1192 = vshrl.u32 %v1191, 7
        %v1193 = vsub.s32 5, %v1192
        %v1194 = vrot.slane %v1169, %v1193
        %v1195 = vlaneseq
        %v1196 = vshrl.u32 %v1195, 7
        %v1197 = vsub.s32 6, %v1196
        %v1198 = vrot.slane %v1169, %v1197
        %v1206 = vmul.f32 %v1164, %v1174
        %v1207 = vmul.f32 %v1163, %v1178
        %v1208 = vmul.f32 %v1162, %v1182
        %v1209 = vmul.f32 %v1161, %v1186
        %v1210 = vmul.f32 %v1160, %v1190
        %v1211 = vmul.f32 %v1159, %v1194
        %v1212 = vmul.f32 %v1165, %v1198
        %v1220 = vcombine.low %v1206, %v1207
        %v1221 = vcombine.low %v1208, %v1209
        %v1222 = vcombine.low %v1210, %v1211
        %v1224 = vunpack.c.l.s4 1966171168
        %v1225 = vunpack.c.0.s8 %v1224
        %v1226 = vlaneseq
        %v1227 = vshrl.u32 %v1226, 7
        %v1228 = vsub.s32 %v1225, %v1227
        %v1229 = vrot.slane %v1220, %v1228
        %v1231 = vunpack.c.l.s4 1966171168
        %v1232 = vunpack.c.0.s8 %v1231
        %v1233 = vlaneseq
        %v1234 = vshrl.u32 %v1233, 7
        %v1235 = vsub.s32 %v1232, %v1234
        %v1236 = vrot.slane %v1221, %v1235
        %v1238 = vunpack.c.l.s4 1966171168
        %v1239 = vunpack.c.0.s8 %v1238
        %v1240 = vlaneseq
        %v1241 = vshrl.u32 %v1240, 7
        %v1242 = vsub.s32 %v1239, %v1241
        %v1243 = vrot.slane %v1222, %v1242
        %v1245 = vunpack.c.l.s4 1966171168
        %v1246 = vunpack.c.0.s8 %v1245
        %v1247 = vlaneseq
        %v1248 = vshrl.u32 %v1247, 7
        %v1249 = vsub.s32 %v1246, %v1248
        %v1250 = vrot.slane %v1212, %v1249
        %v1251 = vcombine.low %v1229, %v1236
        %v1252 = vcombine.low %v1243, %v1250
        %v1254 = vunpack.c.l.s4 1966171168
        %v1255 = vunpack.c.0.s8 %v1254
        %v1256 = vlaneseq
        %v1257 = vshrl.u32 %v1256, 7
        %v1258 = vsub.s32 %v1255, %v1257
        %v1259 = vrot.slane %v1251, %v1258
        %v1261 = vunpack.c.l.s4 1966171168
        %v1262 = vunpack.c.0.s8 %v1261
        %v1263 = vlaneseq
        %v1264 = vshrl.u32 %v1263, 7
        %v1265 = vsub.s32 %v1262, %v1264
        %v1266 = vrot.slane %v1252, %v1265
        %v1267 = vcombine.low %v1259, %v1266
        %s1269 = scalar_lea.vmem [#allocation2], 5
        %1270 = vst.msk [vmem:[%s1269] ss:$8 sm:$0xf] %vm749, %v1267
        %1271 = vst.msk [vmem:[%s1269] ss:$8 sm:$0x70] %vm749, %v1267
        %1272 = vrot.lane.b32.xlu0 %v588, 101
        %v1273 = vpop.permute.xlu0 %1272
        %1274 = vrot.lane.b32.xlu0 %v592, 101
        %v1275 = vpop.permute.xlu0 %1274
        %1276 = vrot.lane.b32.xlu0 %v596, 101
        %v1277 = vpop.permute.xlu0 %1276
        %1278 = vrot.lane.b32.xlu0 %v600, 101
        %v1279 = vpop.permute.xlu0 %1278
        %1280 = vrot.lane.b32.xlu0 %v604, 101
        %v1281 = vpop.permute.xlu0 %1280
        %1282 = vrot.lane.b32.xlu0 %v608, 101
        %v1283 = vpop.permute.xlu0 %1282
        %1284 = vrot.lane.b32.xlu0 %v612, 101
        %v1285 = vpop.permute.xlu0 %1284
        %vm1286 = vcmp.lt.s32.totalorder %v635, 101
        %v1287 = vsel %vm1286, %v1283, %v1285
        %v1288 = vsel %vm1286, %v1281, %v1283
        %v1289 = vsel %vm1286, %v1279, %v1281
        %v1290 = vsel %vm1286, %v1277, %v1279
        %v1291 = vsel %vm1286, %v1275, %v1277
        %v1292 = vsel %vm1286, %v1273, %v1275
        %v1293 = vsel %vm1286, %v1285, %v1273
        %s1294 = scalar_lea.vmem [#allocation11], 6
        %v1295 = vld [vmem:[%s1294] ss:$8 sm:$0xf]
        %v1296 = vld [vmem:[%s1294] ss:$8 sm:$0xf0]
        %v1297 = vor.u32 %v1295, %v1296
        %v1299 = vlaneseq
        %v1300 = vshrl.u32 %v1299, 7
        %v1301 = vsub.s32 0, %v1300
        %v1302 = vrot.slane %v1297, %v1301
        %v1303 = vlaneseq
        %v1304 = vshrl.u32 %v1303, 7
        %v1305 = vsub.s32 1, %v1304
        %v1306 = vrot.slane %v1297, %v1305
        %v1307 = vlaneseq
        %v1308 = vshrl.u32 %v1307, 7
        %v1309 = vsub.s32 2, %v1308
        %v1310 = vrot.slane %v1297, %v1309
        %v1311 = vlaneseq
        %v1312 = vshrl.u32 %v1311, 7
        %v1313 = vsub.s32 3, %v1312
        %v1314 = vrot.slane %v1297, %v1313
        %v1315 = vlaneseq
        %v1316 = vshrl.u32 %v1315, 7
        %v1317 = vsub.s32 4, %v1316
        %v1318 = vrot.slane %v1297, %v1317
        %v1319 = vlaneseq
        %v1320 = vshrl.u32 %v1319, 7
        %v1321 = vsub.s32 5, %v1320
        %v1322 = vrot.slane %v1297, %v1321
        %v1323 = vlaneseq
        %v1324 = vshrl.u32 %v1323, 7
        %v1325 = vsub.s32 6, %v1324
        %v1326 = vrot.slane %v1297, %v1325
        %v1334 = vmul.f32 %v1292, %v1302
        %v1335 = vmul.f32 %v1291, %v1306
        %v1336 = vmul.f32 %v1290, %v1310
        %v1337 = vmul.f32 %v1289, %v1314
        %v1338 = vmul.f32 %v1288, %v1318
        %v1339 = vmul.f32 %v1287, %v1322
        %v1340 = vmul.f32 %v1293, %v1326
        %v1348 = vcombine.low %v1334, %v1335
        %v1349 = vcombine.low %v1336, %v1337
        %v1350 = vcombine.low %v1338, %v1339
        %v1352 = vunpack.c.l.s4 1966171168
        %v1353 = vunpack.c.0.s8 %v1352
        %v1354 = vlaneseq
        %v1355 = vshrl.u32 %v1354, 7
        %v1356 = vsub.s32 %v1353, %v1355
        %v1357 = vrot.slane %v1348, %v1356
        %v1359 = vunpack.c.l.s4 1966171168
        %v1360 = vunpack.c.0.s8 %v1359
        %v1361 = vlaneseq
        %v1362 = vshrl.u32 %v1361, 7
        %v1363 = vsub.s32 %v1360, %v1362
        %v1364 = vrot.slane %v1349, %v1363
        %v1366 = vunpack.c.l.s4 1966171168
        %v1367 = vunpack.c.0.s8 %v1366
        %v1368 = vlaneseq
        %v1369 = vshrl.u32 %v1368, 7
        %v1370 = vsub.s32 %v1367, %v1369
        %v1371 = vrot.slane %v1350, %v1370
        %v1373 = vunpack.c.l.s4 1966171168
        %v1374 = vunpack.c.0.s8 %v1373
        %v1375 = vlaneseq
        %v1376 = vshrl.u32 %v1375, 7
        %v1377 = vsub.s32 %v1374, %v1376
        %v1378 = vrot.slane %v1340, %v1377
        %v1379 = vcombine.low %v1357, %v1364
        %v1380 = vcombine.low %v1371, %v1378
        %v1382 = vunpack.c.l.s4 1966171168
        %v1383 = vunpack.c.0.s8 %v1382
        %v1384 = vlaneseq
        %v1385 = vshrl.u32 %v1384, 7
        %v1386 = vsub.s32 %v1383, %v1385
        %v1387 = vrot.slane %v1379, %v1386
        %v1389 = vunpack.c.l.s4 1966171168
        %v1390 = vunpack.c.0.s8 %v1389
        %v1391 = vlaneseq
        %v1392 = vshrl.u32 %v1391, 7
        %v1393 = vsub.s32 %v1390, %v1392
        %v1394 = vrot.slane %v1380, %v1393
        %v1395 = vcombine.low %v1387, %v1394
        %s1397 = scalar_lea.vmem [#allocation2], 6
        %1398 = vst.msk [vmem:[%s1397] ss:$8 sm:$0xf] %vm749, %v1395
        %1399 = vst.msk [vmem:[%s1397] ss:$8 sm:$0x70] %vm749, %v1395
        %1400 = vrot.lane.b32.xlu0 %v588, 100
        %v1401 = vpop.permute.xlu0 %1400
        %1402 = vrot.lane.b32.xlu0 %v592, 100
        %v1403 = vpop.permute.xlu0 %1402
        %1404 = vrot.lane.b32.xlu0 %v596, 100
        %v1405 = vpop.permute.xlu0 %1404
        %1406 = vrot.lane.b32.xlu0 %v600, 100
        %v1407 = vpop.permute.xlu0 %1406
        %1408 = vrot.lane.b32.xlu0 %v604, 100
        %v1409 = vpop.permute.xlu0 %1408
        %1410 = vrot.lane.b32.xlu0 %v608, 100
        %v1411 = vpop.permute.xlu0 %1410
        %1412 = vrot.lane.b32.xlu0 %v612, 100
        %v1413 = vpop.permute.xlu0 %1412
        %vm1414 = vcmp.lt.s32.totalorder %v635, 100
        %v1415 = vsel %vm1414, %v1411, %v1413
        %v1416 = vsel %vm1414, %v1409, %v1411
        %v1417 = vsel %vm1414, %v1407, %v1409
        %v1418 = vsel %vm1414, %v1405, %v1407
        %v1419 = vsel %vm1414, %v1403, %v1405
        %v1420 = vsel %vm1414, %v1401, %v1403
        %v1421 = vsel %vm1414, %v1413, %v1401
        %s1422 = scalar_lea.vmem [#allocation11], 7
        %v1423 = vld [vmem:[%s1422] ss:$8 sm:$0xf]
        %v1424 = vld [vmem:[%s1422] ss:$8 sm:$0xf0]
        %v1425 = vor.u32 %v1423, %v1424
        %v1427 = vlaneseq
        %v1428 = vshrl.u32 %v1427, 7
        %v1429 = vsub.s32 0, %v1428
        %v1430 = vrot.slane %v1425, %v1429
        %v1431 = vlaneseq
        %v1432 = vshrl.u32 %v1431, 7
        %v1433 = vsub.s32 1, %v1432
        %v1434 = vrot.slane %v1425, %v1433
        %v1435 = vlaneseq
        %v1436 = vshrl.u32 %v1435, 7
        %v1437 = vsub.s32 2, %v1436
        %v1438 = vrot.slane %v1425, %v1437
        %v1439 = vlaneseq
        %v1440 = vshrl.u32 %v1439, 7
        %v1441 = vsub.s32 3, %v1440
        %v1442 = vrot.slane %v1425, %v1441
        %v1443 = vlaneseq
        %v1444 = vshrl.u32 %v1443, 7
        %v1445 = vsub.s32 4, %v1444
        %v1446 = vrot.slane %v1425, %v1445
        %v1447 = vlaneseq
        %v1448 = vshrl.u32 %v1447, 7
        %v1449 = vsub.s32 5, %v1448
        %v1450 = vrot.slane %v1425, %v1449
        %v1451 = vlaneseq
        %v1452 = vshrl.u32 %v1451, 7
        %v1453 = vsub.s32 6, %v1452
        %v1454 = vrot.slane %v1425, %v1453
        %v1462 = vmul.f32 %v1420, %v1430
        %v1463 = vmul.f32 %v1419, %v1434
        %v1464 = vmul.f32 %v1418, %v1438
        %v1465 = vmul.f32 %v1417, %v1442
        %v1466 = vmul.f32 %v1416, %v1446
        %v1467 = vmul.f32 %v1415, %v1450
        %v1468 = vmul.f32 %v1421, %v1454
        %v1476 = vcombine.low %v1462, %v1463
        %v1477 = vcombine.low %v1464, %v1465
        %v1478 = vcombine.low %v1466, %v1467
        %v1480 = vunpack.c.l.s4 1966171168
        %v1481 = vunpack.c.0.s8 %v1480
        %v1482 = vlaneseq
        %v1483 = vshrl.u32 %v1482, 7
        %v1484 = vsub.s32 %v1481, %v1483
        %v1485 = vrot.slane %v1476, %v1484
        %v1487 = vunpack.c.l.s4 1966171168
        %v1488 = vunpack.c.0.s8 %v1487
        %v1489 = vlaneseq
        %v1490 = vshrl.u32 %v1489, 7
        %v1491 = vsub.s32 %v1488, %v1490
        %v1492 = vrot.slane %v1477, %v1491
        %v1494 = vunpack.c.l.s4 1966171168
        %v1495 = vunpack.c.0.s8 %v1494
        %v1496 = vlaneseq
        %v1497 = vshrl.u32 %v1496, 7
        %v1498 = vsub.s32 %v1495, %v1497
        %v1499 = vrot.slane %v1478, %v1498
        %v1501 = vunpack.c.l.s4 1966171168
        %v1502 = vunpack.c.0.s8 %v1501
        %v1503 = vlaneseq
        %v1504 = vshrl.u32 %v1503, 7
        %v1505 = vsub.s32 %v1502, %v1504
        %v1506 = vrot.slane %v1468, %v1505
        %v1507 = vcombine.low %v1485, %v1492
        %v1508 = vcombine.low %v1499, %v1506
        %v1510 = vunpack.c.l.s4 1966171168
        %v1511 = vunpack.c.0.s8 %v1510
        %v1512 = vlaneseq
        %v1513 = vshrl.u32 %v1512, 7
        %v1514 = vsub.s32 %v1511, %v1513
        %v1515 = vrot.slane %v1507, %v1514
        %v1517 = vunpack.c.l.s4 1966171168
        %v1518 = vunpack.c.0.s8 %v1517
        %v1519 = vlaneseq
        %v1520 = vshrl.u32 %v1519, 7
        %v1521 = vsub.s32 %v1518, %v1520
        %v1522 = vrot.slane %v1508, %v1521
        %v1523 = vcombine.low %v1515, %v1522
        %s1525 = scalar_lea.vmem [#allocation2], 7
        %1526 = vst.msk [vmem:[%s1525] ss:$8 sm:$0xf] %vm749, %v1523
        %1527 = vst.msk [vmem:[%s1525] ss:$8 sm:$0x70] %vm749, %v1523
        %1528 = vrot.lane.b32.xlu0 %v588, 99
        %v1529 = vpop.permute.xlu0 %1528
        %1530 = vrot.lane.b32.xlu0 %v592, 99
        %v1531 = vpop.permute.xlu0 %1530
        %1532 = vrot.lane.b32.xlu0 %v596, 99
        %v1533 = vpop.permute.xlu0 %1532
        %1534 = vrot.lane.b32.xlu0 %v600, 99
        %v1535 = vpop.permute.xlu0 %1534
        %1536 = vrot.lane.b32.xlu0 %v604, 99
        %v1537 = vpop.permute.xlu0 %1536
        %1538 = vrot.lane.b32.xlu0 %v608, 99
        %v1539 = vpop.permute.xlu0 %1538
        %1540 = vrot.lane.b32.xlu0 %v612, 99
        %v1541 = vpop.permute.xlu0 %1540
        %vm1542 = vcmp.lt.s32.totalorder %v635, 99
        %v1543 = vsel %vm1542, %v1539, %v1541
        %v1544 = vsel %vm1542, %v1537, %v1539
        %v1545 = vsel %vm1542, %v1535, %v1537
        %v1546 = vsel %vm1542, %v1533, %v1535
        %v1547 = vsel %vm1542, %v1531, %v1533
        %v1548 = vsel %vm1542, %v1529, %v1531
        %v1549 = vsel %vm1542, %v1541, %v1529
        %s1550 = scalar_lea.vmem [#allocation11], 56
        %v1551 = vld [vmem:[%s1550] ss:$8 sm:$0xf]
        %v1552 = vld [vmem:[%s1550] ss:$8 sm:$0xf0]
        %v1553 = vor.u32 %v1551, %v1552
        %v1555 = vlaneseq
        %v1556 = vshrl.u32 %v1555, 7
        %v1557 = vsub.s32 0, %v1556
        %v1558 = vrot.slane %v1553, %v1557
        %v1559 = vlaneseq
        %v1560 = vshrl.u32 %v1559, 7
        %v1561 = vsub.s32 1, %v1560
        %v1562 = vrot.slane %v1553, %v1561
        %v1563 = vlaneseq
        %v1564 = vshrl.u32 %v1563, 7
        %v1565 = vsub.s32 2, %v1564
        %v1566 = vrot.slane %v1553, %v1565
        %v1567 = vlaneseq
        %v1568 = vshrl.u32 %v1567, 7
        %v1569 = vsub.s32 3, %v1568
        %v1570 = vrot.slane %v1553, %v1569
        %v1571 = vlaneseq
        %v1572 = vshrl.u32 %v1571, 7
        %v1573 = vsub.s32 4, %v1572
        %v1574 = vrot.slane %v1553, %v1573
        %v1575 = vlaneseq
        %v1576 = vshrl.u32 %v1575, 7
        %v1577 = vsub.s32 5, %v1576
        %v1578 = vrot.slane %v1553, %v1577
        %v1579 = vlaneseq
        %v1580 = vshrl.u32 %v1579, 7
        %v1581 = vsub.s32 6, %v1580
        %v1582 = vrot.slane %v1553, %v1581
        %v1590 = vmul.f32 %v1548, %v1558
        %v1591 = vmul.f32 %v1547, %v1562
        %v1592 = vmul.f32 %v1546, %v1566
        %v1593 = vmul.f32 %v1545, %v1570
        %v1594 = vmul.f32 %v1544, %v1574
        %v1595 = vmul.f32 %v1543, %v1578
        %v1596 = vmul.f32 %v1549, %v1582
        %v1604 = vcombine.low %v1590, %v1591
        %v1605 = vcombine.low %v1592, %v1593
        %v1606 = vcombine.low %v1594, %v1595
        %v1608 = vunpack.c.l.s4 1966171168
        %v1609 = vunpack.c.0.s8 %v1608
        %v1610 = vlaneseq
        %v1611 = vshrl.u32 %v1610, 7
        %v1612 = vsub.s32 %v1609, %v1611
        %v1613 = vrot.slane %v1604, %v1612
        %v1615 = vunpack.c.l.s4 1966171168
        %v1616 = vunpack.c.0.s8 %v1615
        %v1617 = vlaneseq
        %v1618 = vshrl.u32 %v1617, 7
        %v1619 = vsub.s32 %v1616, %v1618
        %v1620 = vrot.slane %v1605, %v1619
        %v1622 = vunpack.c.l.s4 1966171168
        %v1623 = vunpack.c.0.s8 %v1622
        %v1624 = vlaneseq
        %v1625 = vshrl.u32 %v1624, 7
        %v1626 = vsub.s32 %v1623, %v1625
        %v1627 = vrot.slane %v1606, %v1626
        %v1629 = vunpack.c.l.s4 1966171168
        %v1630 = vunpack.c.0.s8 %v1629
        %v1631 = vlaneseq
        %v1632 = vshrl.u32 %v1631, 7
        %v1633 = vsub.s32 %v1630, %v1632
        %v1634 = vrot.slane %v1596, %v1633
        %v1635 = vcombine.low %v1613, %v1620
        %v1636 = vcombine.low %v1627, %v1634
        %v1638 = vunpack.c.l.s4 1966171168
        %v1639 = vunpack.c.0.s8 %v1638
        %v1640 = vlaneseq
        %v1641 = vshrl.u32 %v1640, 7
        %v1642 = vsub.s32 %v1639, %v1641
        %v1643 = vrot.slane %v1635, %v1642
        %v1645 = vunpack.c.l.s4 1966171168
        %v1646 = vunpack.c.0.s8 %v1645
        %v1647 = vlaneseq
        %v1648 = vshrl.u32 %v1647, 7
        %v1649 = vsub.s32 %v1646, %v1648
        %v1650 = vrot.slane %v1636, %v1649
        %v1651 = vcombine.low %v1643, %v1650
        %s1653 = scalar_lea.vmem [#allocation2], 56
        %1654 = vst.msk [vmem:[%s1653] ss:$8 sm:$0xf] %vm749, %v1651
        %1655 = vst.msk [vmem:[%s1653] ss:$8 sm:$0x70] %vm749, %v1651
        %v1656 = vld [vmem:[#allocation3] sm:$0xff]
        %v1657 = vld [vmem:[#allocation2] sm:$0xff]
        %v1658 = vld [vmem:[#allocation2 + $0x8] sm:$0xff]
        %v1659 = vld [vmem:[#allocation2 + $0x10] sm:$0xff]
        %v1660 = vld [vmem:[#allocation2 + $0x18] sm:$0xff]
        %v1661 = vld [vmem:[#allocation2 + $0x20] sm:$0xff]
        %v1662 = vld [vmem:[#allocation2 + $0x28] sm:$0xff]
        %v1663 = vld [vmem:[#allocation2 + $0x30] sm:$0xff]
        %v1664 = vld [vmem:[#allocation2 + $0x38] sm:$0x1]
        %v1665 = vld [vmem:[#allocation2 + $0x40] sm:$0x1]
        %v1666 = vld [vmem:[#allocation2 + $0x48] sm:$0x1]
        %v1667 = vld [vmem:[#allocation2 + $0x50] sm:$0x1]
        %v1668 = vld [vmem:[#allocation2 + $0x58] sm:$0x1]
        %v1669 = vld [vmem:[#allocation2 + $0x60] sm:$0x1]
        %v1670 = vld [vmem:[#allocation2 + $0x68] sm:$0x1]
        %v1671 = vld [vmem:[%s2] sm:$0xff]
        %1673 = vset.pattern.permute.xlu0 0
        %1674 = vperm.xlu0 %1673, %v1671
        %v1675 = vpop.permute.xlu0 %1674
        %vm1677 = vcmask 72704
        %v1679 = vsel %vm1677, %v1656, 0
        %vm1681 = vcmask 1040384
        %v1683 = vsel %vm1681, %v1664, 0
        %v1686 = vsel %vm1681, %v1665, 0
        %v1689 = vsel %vm1681, %v1666, 0
        %v1692 = vsel %vm1681, %v1667, 0
        %v1695 = vsel %vm1681, %v1668, 0
        %v1698 = vsel %vm1681, %v1669, 0
        %v1701 = vsel %vm1681, %v1670, 0
        %1703 = vmatprep.subr.mxu0 %v1658
        %1704 = vmatpush1.msra.mxu0 %v1657
        %1705 = vmatprep.subr.mxu0 %v1686
        %1706 = vmatpush1.msra.mxu0 %v1683
        %1707 = vmatprep.subr.mxu0 0.0
        %1708 = vmatpush1.msra.mxu0 0.0
        %1709 = vmatprep.subr.mxu0 0.0
        %1710 = vmatpush1.msra.mxu0 0.0
        %1711 = vmatprep.subr.mxu0 0.0
        %1712 = vmatpush1.msra.mxu0 0.0
        %1713 = vmatprep.subr.mxu0 0.0
        %1714 = vmatpush1.msra.mxu0 0.0
        %1715 = vmatprep.subr.mxu0 0.0
        %1716 = vmatpush1.msra.mxu0 0.0
        %1717 = vmatprep.subr.mxu0 0.0
        %1718 = vmatpush1.msra.mxu0 0.0
        %1719 = vmatprep.subr.mxu0 0.0
        %1720 = vmatpush1.msra.mxu0 0.0
        %1721 = vmatprep.subr.mxu0 0.0
        %1722 = vmatpush1.msra.mxu0 0.0
        %1723 = vmatprep.subr.mxu0 0.0
        %1724 = vmatpush1.msra.mxu0 0.0
        %1725 = vmatprep.subr.mxu0 0.0
        %1726 = vmatpush1.msra.mxu0 0.0
        %1727 = vmatprep.subr.mxu0 0.0
        %1728 = vmatpush1.msra.mxu0 0.0
        %1729 = vmatprep.subr.mxu0 0.0
        %1730 = vmatpush1.msra.mxu0 0.0
        %1731 = vmatprep.subr.mxu0 0.0
        %1732 = vmatpush1.msra.mxu0 0.0
        %1733 = vmatprep.subr.mxu0 0.0
        %1734 = vmatpush1.msra.mxu0 0.0
        %1735 = vmatprep.subr.mxu0 0.0
        %1736 = vmatpush1.msra.mxu0 0.0
        %1737 = vmatprep.subr.mxu0 0.0
        %1738 = vmatpush1.msra.mxu0 0.0
        %1739 = vmatprep.subr.mxu0 0.0
        %1740 = vmatpush1.msra.mxu0 0.0
        %1741 = vmatprep.subr.mxu0 0.0
        %1742 = vmatpush1.msra.mxu0 0.0
        %1743 = vmatprep.subr.mxu0 0.0
        %1744 = vmatpush1.msra.mxu0 0.0
        %1745 = vmatprep.subr.mxu0 0.0
        %1746 = vmatpush1.msra.mxu0 0.0
        %1747 = vmatprep.subr.mxu0 0.0
        %1748 = vmatpush1.msra.mxu0 0.0
        %1749 = vmatprep.subr.mxu0 0.0
        %1750 = vmatpush1.msra.mxu0 0.0
        %1751 = vmatprep.subr.mxu0 0.0
        %1752 = vmatpush1.msra.mxu0 0.0
        %1753 = vmatprep.subr.mxu0 0.0
        %1754 = vmatpush1.msra.mxu0 0.0
        %1755 = vmatprep.subr.mxu0 0.0
        %1756 = vmatpush1.msra.mxu0 0.0
        %1757 = vmatprep.subr.mxu0 0.0
        %1758 = vmatpush1.msra.mxu0 0.0
        %1759 = vmatprep.subr.mxu0 0.0
        %1760 = vmatpush1.msra.mxu0 0.0
        %1761 = vmatprep.subr.mxu0 0.0
        %1762 = vmatpush1.msra.mxu0 0.0
        %1763 = vmatprep.subr.mxu0 0.0
        %1764 = vmatpush1.msra.mxu0 0.0
        %1765 = vmatprep.subr.mxu0 0.0
        %1766 = vmatpush1.msra.mxu0 0.0
        %1767 = vmatprep.mubr.f32.mxu0 0.0
        %1768 = vmatmul.mubr.f32.gmra.mrb[0].mxu0 %v1679
        %v1769 = vpop.f32.mrb[0].mxu0
        %v1770 = vadd.f32 %v1675, %v1769
        %v1771 = vpop.f32.mrb[0].mxu0
        %v1772 = vadd.f32 %v1675, %v1771
        %1773 = vdwg.mxu0
        %1774 = vmatprep.subr.mxu0 %v1660
        %1775 = vmatpush1.msra.mxu0 %v1659
        %1776 = vmatprep.subr.mxu0 %v1692
        %1777 = vmatpush1.msra.mxu0 %v1689
        %1778 = vmatprep.subr.mxu0 0.0
        %1779 = vmatpush1.msra.mxu0 0.0
        %1780 = vmatprep.subr.mxu0 0.0
        %1781 = vmatpush1.msra.mxu0 0.0
        %1782 = vmatprep.subr.mxu0 0.0
        %1783 = vmatpush1.msra.mxu0 0.0
        %1784 = vmatprep.subr.mxu0 0.0
        %1785 = vmatpush1.msra.mxu0 0.0
        %1786 = vmatprep.subr.mxu0 0.0
        %1787 = vmatpush1.msra.mxu0 0.0
        %1788 = vmatprep.subr.mxu0 0.0
        %1789 = vmatpush1.msra.mxu0 0.0
        %1790 = vmatprep.subr.mxu0 0.0
        %1791 = vmatpush1.msra.mxu0 0.0
        %1792 = vmatprep.subr.mxu0 0.0
        %1793 = vmatpush1.msra.mxu0 0.0
        %1794 = vmatprep.subr.mxu0 0.0
        %1795 = vmatpush1.msra.mxu0 0.0
        %1796 = vmatprep.subr.mxu0 0.0
        %1797 = vmatpush1.msra.mxu0 0.0
        %1798 = vmatprep.subr.mxu0 0.0
        %1799 = vmatpush1.msra.mxu0 0.0
        %1800 = vmatprep.subr.mxu0 0.0
        %1801 = vmatpush1.msra.mxu0 0.0
        %1802 = vmatprep.subr.mxu0 0.0
        %1803 = vmatpush1.msra.mxu0 0.0
        %1804 = vmatprep.subr.mxu0 0.0
        %1805 = vmatpush1.msra.mxu0 0.0
        %1806 = vmatprep.subr.mxu0 0.0
        %1807 = vmatpush1.msra.mxu0 0.0
        %1808 = vmatprep.subr.mxu0 0.0
        %1809 = vmatpush1.msra.mxu0 0.0
        %1810 = vmatprep.subr.mxu0 0.0
        %1811 = vmatpush1.msra.mxu0 0.0
        %1812 = vmatprep.subr.mxu0 0.0
        %1813 = vmatpush1.msra.mxu0 0.0
        %1814 = vmatprep.subr.mxu0 0.0
        %1815 = vmatpush1.msra.mxu0 0.0
        %1816 = vmatprep.subr.mxu0 0.0
        %1817 = vmatpush1.msra.mxu0 0.0
        %1818 = vmatprep.subr.mxu0 0.0
        %1819 = vmatpush1.msra.mxu0 0.0
        %1820 = vmatprep.subr.mxu0 0.0
        %1821 = vmatpush1.msra.mxu0 0.0
        %1822 = vmatprep.subr.mxu0 0.0
        %1823 = vmatpush1.msra.mxu0 0.0
        %1824 = vmatprep.subr.mxu0 0.0
        %1825 = vmatpush1.msra.mxu0 0.0
        %1826 = vmatprep.subr.mxu0 0.0
        %1827 = vmatpush1.msra.mxu0 0.0
        %1828 = vmatprep.subr.mxu0 0.0
        %1829 = vmatpush1.msra.mxu0 0.0
        %1830 = vmatprep.subr.mxu0 0.0
        %1831 = vmatpush1.msra.mxu0 0.0
        %1832 = vmatprep.subr.mxu0 0.0
        %1833 = vmatpush1.msra.mxu0 0.0
        %1834 = vmatprep.subr.mxu0 0.0
        %1835 = vmatpush1.msra.mxu0 0.0
        %1836 = vmatprep.subr.mxu0 0.0
        %1837 = vmatpush1.msra.mxu0 0.0
        %1838 = vmatprep.mubr.f32.mxu0 0.0
        %1839 = vmatmul.mubr.f32.gmra.mrb[0].mxu0 %v1679
        %v1840 = vpop.f32.mrb[0].mxu0
        %v1841 = vadd.f32 %v1675, %v1840
        %v1842 = vpop.f32.mrb[0].mxu0
        %v1843 = vadd.f32 %v1675, %v1842
        %1844 = vdwg.mxu0
        %1845 = vmatprep.subr.mxu0 %v1662
        %1846 = vmatpush1.msra.mxu0 %v1661
        %1847 = vmatprep.subr.mxu0 %v1698
        %1848 = vmatpush1.msra.mxu0 %v1695
        %1849 = vmatprep.subr.mxu0 0.0
        %1850 = vmatpush1.msra.mxu0 0.0
        %1851 = vmatprep.subr.mxu0 0.0
        %1852 = vmatpush1.msra.mxu0 0.0
        %1853 = vmatprep.subr.mxu0 0.0
        %1854 = vmatpush1.msra.mxu0 0.0
        %1855 = vmatprep.subr.mxu0 0.0
        %1856 = vmatpush1.msra.mxu0 0.0
        %1857 = vmatprep.subr.mxu0 0.0
        %1858 = vmatpush1.msra.mxu0 0.0
        %1859 = vmatprep.subr.mxu0 0.0
        %1860 = vmatpush1.msra.mxu0 0.0
        %1861 = vmatprep.subr.mxu0 0.0
        %1862 = vmatpush1.msra.mxu0 0.0
        %1863 = vmatprep.subr.mxu0 0.0
        %1864 = vmatpush1.msra.mxu0 0.0
        %1865 = vmatprep.subr.mxu0 0.0
        %1866 = vmatpush1.msra.mxu0 0.0
        %1867 = vmatprep.subr.mxu0 0.0
        %1868 = vmatpush1.msra.mxu0 0.0
        %1869 = vmatprep.subr.mxu0 0.0
        %1870 = vmatpush1.msra.mxu0 0.0
        %1871 = vmatprep.subr.mxu0 0.0
        %1872 = vmatpush1.msra.mxu0 0.0
        %1873 = vmatprep.subr.mxu0 0.0
        %1874 = vmatpush1.msra.mxu0 0.0
        %1875 = vmatprep.subr.mxu0 0.0
        %1876 = vmatpush1.msra.mxu0 0.0
        %1877 = vmatprep.subr.mxu0 0.0
        %1878 = vmatpush1.msra.mxu0 0.0
        %1879 = vmatprep.subr.mxu0 0.0
        %1880 = vmatpush1.msra.mxu0 0.0
        %1881 = vmatprep.subr.mxu0 0.0
        %1882 = vmatpush1.msra.mxu0 0.0
        %1883 = vmatprep.subr.mxu0 0.0
        %1884 = vmatpush1.msra.mxu0 0.0
        %1885 = vmatprep.subr.mxu0 0.0
        %1886 = vmatpush1.msra.mxu0 0.0
        %1887 = vmatprep.subr.mxu0 0.0
        %1888 = vmatpush1.msra.mxu0 0.0
        %1889 = vmatprep.subr.mxu0 0.0
        %1890 = vmatpush1.msra.mxu0 0.0
        %1891 = vmatprep.subr.mxu0 0.0
        %1892 = vmatpush1.msra.mxu0 0.0
        %1893 = vmatprep.subr.mxu0 0.0
        %1894 = vmatpush1.msra.mxu0 0.0
        %1895 = vmatprep.subr.mxu0 0.0
        %1896 = vmatpush1.msra.mxu0 0.0
        %1897 = vmatprep.subr.mxu0 0.0
        %1898 = vmatpush1.msra.mxu0 0.0
        %1899 = vmatprep.subr.mxu0 0.0
        %1900 = vmatpush1.msra.mxu0 0.0
        %1901 = vmatprep.subr.mxu0 0.0
        %1902 = vmatpush1.msra.mxu0 0.0
        %1903 = vmatprep.subr.mxu0 0.0
        %1904 = vmatpush1.msra.mxu0 0.0
        %1905 = vmatprep.subr.mxu0 0.0
        %1906 = vmatpush1.msra.mxu0 0.0
        %1907 = vmatprep.subr.mxu0 0.0
        %1908 = vmatpush1.msra.mxu0 0.0
        %1909 = vmatprep.mubr.f32.mxu0 0.0
        %1910 = vmatmul.mubr.f32.gmra.mrb[0].mxu0 %v1679
        %v1911 = vpop.f32.mrb[0].mxu0
        %v1912 = vadd.f32 %v1675, %v1911
        %v1913 = vpop.f32.mrb[0].mxu0
        %v1914 = vadd.f32 %v1675, %v1913
        %1915 = vdwg.mxu0
        %1916 = vmatprep.subr.mxu0 0.0
        %1917 = vmatpush1.msra.mxu0 %v1663
        %1918 = vmatprep.subr.mxu0 0.0
        %1919 = vmatpush1.msra.mxu0 %v1701
        %1920 = vmatprep.subr.mxu0 0.0
        %1921 = vmatpush1.msra.mxu0 0.0
        %1922 = vmatprep.subr.mxu0 0.0
        %1923 = vmatpush1.msra.mxu0 0.0
        %1924 = vmatprep.subr.mxu0 0.0
        %1925 = vmatpush1.msra.mxu0 0.0
        %1926 = vmatprep.subr.mxu0 0.0
        %1927 = vmatpush1.msra.mxu0 0.0
        %1928 = vmatprep.subr.mxu0 0.0
        %1929 = vmatpush1.msra.mxu0 0.0
        %1930 = vmatprep.subr.mxu0 0.0
        %1931 = vmatpush1.msra.mxu0 0.0
        %1932 = vmatprep.subr.mxu0 0.0
        %1933 = vmatpush1.msra.mxu0 0.0
        %1934 = vmatprep.subr.mxu0 0.0
        %1935 = vmatpush1.msra.mxu0 0.0
        %1936 = vmatprep.subr.mxu0 0.0
        %1937 = vmatpush1.msra.mxu0 0.0
        %1938 = vmatprep.subr.mxu0 0.0
        %1939 = vmatpush1.msra.mxu0 0.0
        %1940 = vmatprep.subr.mxu0 0.0
        %1941 = vmatpush1.msra.mxu0 0.0
        %1942 = vmatprep.subr.mxu0 0.0
        %1943 = vmatpush1.msra.mxu0 0.0
        %1944 = vmatprep.subr.mxu0 0.0
        %1945 = vmatpush1.msra.mxu0 0.0
        %1946 = vmatprep.subr.mxu0 0.0
        %1947 = vmatpush1.msra.mxu0 0.0
        %1948 = vmatprep.subr.mxu0 0.0
        %1949 = vmatpush1.msra.mxu0 0.0
        %1950 = vmatprep.subr.mxu0 0.0
        %1951 = vmatpush1.msra.mxu0 0.0
        %1952 = vmatprep.subr.mxu0 0.0
        %1953 = vmatpush1.msra.mxu0 0.0
        %1954 = vmatprep.subr.mxu0 0.0
        %1955 = vmatpush1.msra.mxu0 0.0
        %1956 = vmatprep.subr.mxu0 0.0
        %1957 = vmatpush1.msra.mxu0 0.0
        %1958 = vmatprep.subr.mxu0 0.0
        %1959 = vmatpush1.msra.mxu0 0.0
        %1960 = vmatprep.subr.mxu0 0.0
        %1961 = vmatpush1.msra.mxu0 0.0
        %1962 = vmatprep.subr.mxu0 0.0
        %1963 = vmatpush1.msra.mxu0 0.0
        %1964 = vmatprep.subr.mxu0 0.0
        %1965 = vmatpush1.msra.mxu0 0.0
        %1966 = vmatprep.subr.mxu0 0.0
        %1967 = vmatpush1.msra.mxu0 0.0
        %1968 = vmatprep.subr.mxu0 0.0
        %1969 = vmatpush1.msra.mxu0 0.0
        %1970 = vmatprep.subr.mxu0 0.0
        %1971 = vmatpush1.msra.mxu0 0.0
        %1972 = vmatprep.subr.mxu0 0.0
        %1973 = vmatpush1.msra.mxu0 0.0
        %1974 = vmatprep.subr.mxu0 0.0
        %1975 = vmatpush1.msra.mxu0 0.0
        %1976 = vmatprep.subr.mxu0 0.0
        %1977 = vmatpush1.msra.mxu0 0.0
        %1978 = vmatprep.subr.mxu0 0.0
        %1979 = vmatpush1.msra.mxu0 0.0
        %1980 = vmatprep.mubr.f32.mxu0 0.0
        %1981 = vmatmul.mubr.f32.gmra.mrb[0].mxu0 %v1679
        %v1982 = vpop.f32.mrb[0].mxu0
        %v1983 = vadd.f32 %v1675, %v1982
        %v1984 = vpop.f32.mrb[0].mxu0
        %1985 = vdwg.mxu0
        %v1986 = vmax.f32 %v1770, 0.0
        %v1987 = vmax.f32 %v1772, 0.0
        %v1988 = vmax.f32 %v1841, 0.0
        %v1989 = vmax.f32 %v1843, 0.0
        %v1990 = vmax.f32 %v1912, 0.0
        %v1991 = vmax.f32 %v1914, 0.0
        %v1992 = vmax.f32 %v1983, 0.0
        %1993 = vrot.lane.b32.xlu0 %v1986, 29
        %v1994 = vpop.permute.xlu0 %1993
        %1995 = vrot.lane.b32.xlu0 %v1987, 29
        %v1996 = vpop.permute.xlu0 %1995
        %1997 = vrot.lane.b32.xlu0 %v1988, 29
        %v1998 = vpop.permute.xlu0 %1997
        %1999 = vrot.lane.b32.xlu0 %v1989, 29
        %v2000 = vpop.permute.xlu0 %1999
        %2001 = vrot.lane.b32.xlu0 %v1990, 29
        %v2002 = vpop.permute.xlu0 %2001
        %2003 = vrot.lane.b32.xlu0 %v1991, 29
        %v2004 = vpop.permute.xlu0 %2003
        %2005 = vrot.lane.b32.xlu0 %v1992, 29
        %v2006 = vpop.permute.xlu0 %2005
        %v2007 = vsel %vm636, %v2004, %v2006
        %v2008 = vsel %vm636, %v2002, %v2004
        %v2009 = vsel %vm636, %v2000, %v2002
        %v2010 = vsel %vm636, %v1998, %v2000
        %v2011 = vsel %vm636, %v1996, %v1998
        %v2012 = vsel %vm636, %v1994, %v1996
        %v2013 = vsel %vm636, %v2006, %v1994
        %v2014 = vld [vmem:[#allocation11] ss:$8 sm:$0xf]
        %v2015 = vld [vmem:[#allocation11] ss:$8 sm:$0xf0]
        %v2016 = vor.u32 %v2014, %v2015
        %v2018 = vlaneseq
        %v2019 = vshrl.u32 %v2018, 7
        %v2020 = vsub.s32 0, %v2019
        %v2021 = vrot.slane %v2016, %v2020
        %v2022 = vlaneseq
        %v2023 = vshrl.u32 %v2022, 7
        %v2024 = vsub.s32 1, %v2023
        %v2025 = vrot.slane %v2016, %v2024
        %v2026 = vlaneseq
        %v2027 = vshrl.u32 %v2026, 7
        %v2028 = vsub.s32 2, %v2027
        %v2029 = vrot.slane %v2016, %v2028
        %v2030 = vlaneseq
        %v2031 = vshrl.u32 %v2030, 7
        %v2032 = vsub.s32 3, %v2031
        %v2033 = vrot.slane %v2016, %v2032
        %v2034 = vlaneseq
        %v2035 = vshrl.u32 %v2034, 7
        %v2036 = vsub.s32 4, %v2035
        %v2037 = vrot.slane %v2016, %v2036
        %v2038 = vlaneseq
        %v2039 = vshrl.u32 %v2038, 7
        %v2040 = vsub.s32 5, %v2039
        %v2041 = vrot.slane %v2016, %v2040
        %v2042 = vlaneseq
        %v2043 = vshrl.u32 %v2042, 7
        %v2044 = vsub.s32 6, %v2043
        %v2045 = vrot.slane %v2016, %v2044
        %v2053 = vmul.f32 %v2013, %v2021
        %v2054 = vmul.f32 %v2012, %v2025
        %v2055 = vmul.f32 %v2011, %v2029
        %v2056 = vmul.f32 %v2010, %v2033
        %v2057 = vmul.f32 %v2009, %v2037
        %v2058 = vmul.f32 %v2008, %v2041
        %v2059 = vmul.f32 %v2007, %v2045
        %2060 = vst [vmem:[#allocation2] sm:$0xff] %v2053
        %2061 = vst [vmem:[#allocation2 + $0x8] sm:$0xff] %v2054
        %2062 = vst [vmem:[#allocation2 + $0x10] sm:$0xff] %v2055
        %2063 = vst [vmem:[#allocation2 + $0x18] sm:$0xff] %v2056
        %2064 = vst [vmem:[#allocation2 + $0x20] sm:$0xff] %v2057
        %2065 = vst [vmem:[#allocation2 + $0x28] sm:$0xff] %v2058
        %2066 = vst [vmem:[#allocation2 + $0x30] sm:$0xff] %v2059
        %2067 = vrot.lane.b32.xlu0 %v1986, 28
        %v2068 = vpop.permute.xlu0 %2067
        %2069 = vrot.lane.b32.xlu0 %v1987, 28
        %v2070 = vpop.permute.xlu0 %2069
        %2071 = vrot.lane.b32.xlu0 %v1988, 28
        %v2072 = vpop.permute.xlu0 %2071
        %2073 = vrot.lane.b32.xlu0 %v1989, 28
        %v2074 = vpop.permute.xlu0 %2073
        %2075 = vrot.lane.b32.xlu0 %v1990, 28
        %v2076 = vpop.permute.xlu0 %2075
        %2077 = vrot.lane.b32.xlu0 %v1991, 28
        %v2078 = vpop.permute.xlu0 %2077
        %2079 = vrot.lane.b32.xlu0 %v1992, 28
        %v2080 = vpop.permute.xlu0 %2079
        %v2081 = vsel %vm766, %v2078, %v2080
        %v2082 = vsel %vm766, %v2076, %v2078
        %v2083 = vsel %vm766, %v2074, %v2076
        %v2084 = vsel %vm766, %v2072, %v2074
        %v2085 = vsel %vm766, %v2070, %v2072
        %v2086 = vsel %vm766, %v2068, %v2070
        %v2087 = vsel %vm766, %v2080, %v2068
        %v2088 = vld [vmem:[%s774] ss:$8 sm:$0xf]
        %v2089 = vld [vmem:[%s774] ss:$8 sm:$0xf0]
        %v2090 = vor.u32 %v2088, %v2089
        %v2092 = vlaneseq
        %v2093 = vshrl.u32 %v2092, 7
        %v2094 = vsub.s32 0, %v2093
        %v2095 = vrot.slane %v2090, %v2094
        %v2096 = vlaneseq
        %v2097 = vshrl.u32 %v2096, 7
        %v2098 = vsub.s32 1, %v2097
        %v2099 = vrot.slane %v2090, %v2098
        %v2100 = vlaneseq
        %v2101 = vshrl.u32 %v2100, 7
        %v2102 = vsub.s32 2, %v2101
        %v2103 = vrot.slane %v2090, %v2102
        %v2104 = vlaneseq
        %v2105 = vshrl.u32 %v2104, 7
        %v2106 = vsub.s32 3, %v2105
        %v2107 = vrot.slane %v2090, %v2106
        %v2108 = vlaneseq
        %v2109 = vshrl.u32 %v2108, 7
        %v2110 = vsub.s32 4, %v2109
        %v2111 = vrot.slane %v2090, %v2110
        %v2112 = vlaneseq
        %v2113 = vshrl.u32 %v2112, 7
        %v2114 = vsub.s32 5, %v2113
        %v2115 = vrot.slane %v2090, %v2114
        %v2116 = vlaneseq
        %v2117 = vshrl.u32 %v2116, 7
        %v2118 = vsub.s32 6, %v2117
        %v2119 = vrot.slane %v2090, %v2118
        %v2127 = vmul.f32 %v2087, %v2095
        %v2128 = vmul.f32 %v2086, %v2099
        %v2129 = vmul.f32 %v2085, %v2103
        %v2130 = vmul.f32 %v2084, %v2107
        %v2131 = vmul.f32 %v2083, %v2111
        %v2132 = vmul.f32 %v2082, %v2115
        %v2133 = vmul.f32 %v2081, %v2119
        %2134 = vst [vmem:[#allocation2 + $0x38] sm:$0xff] %v2127
        %2135 = vst [vmem:[#allocation2 + $0x40] sm:$0xff] %v2128
        %2136 = vst [vmem:[#allocation2 + $0x48] sm:$0xff] %v2129
        %2137 = vst [vmem:[#allocation2 + $0x50] sm:$0xff] %v2130
        %2138 = vst [vmem:[#allocation2 + $0x58] sm:$0xff] %v2131
        %2139 = vst [vmem:[#allocation2 + $0x60] sm:$0xff] %v2132
        %2140 = vst [vmem:[#allocation2 + $0x68] sm:$0xff] %v2133
        %2141 = vrot.lane.b32.xlu0 %v1986, 27
        %v2142 = vpop.permute.xlu0 %2141
        %2143 = vrot.lane.b32.xlu0 %v1987, 27
        %v2144 = vpop.permute.xlu0 %2143
        %2145 = vrot.lane.b32.xlu0 %v1988, 27
        %v2146 = vpop.permute.xlu0 %2145
        %2147 = vrot.lane.b32.xlu0 %v1989, 27
        %v2148 = vpop.permute.xlu0 %2147
        %2149 = vrot.lane.b32.xlu0 %v1990, 27
        %v2150 = vpop.permute.xlu0 %2149
        %2151 = vrot.lane.b32.xlu0 %v1991, 27
        %v2152 = vpop.permute.xlu0 %2151
        %2153 = vrot.lane.b32.xlu0 %v1992, 27
        %v2154 = vpop.permute.xlu0 %2153
        %v2155 = vsel %vm894, %v2152, %v2154
        %v2156 = vsel %vm894, %v2150, %v2152
        %v2157 = vsel %vm894, %v2148, %v2150
        %v2158 = vsel %vm894, %v2146, %v2148
        %v2159 = vsel %vm894, %v2144, %v2146
        %v2160 = vsel %vm894, %v2142, %v2144
        %v2161 = vsel %vm894, %v2154, %v2142
        %v2162 = vld [vmem:[%s902] ss:$8 sm:$0xf]
        %v2163 = vld [vmem:[%s902] ss:$8 sm:$0xf0]
        %v2164 = vor.u32 %v2162, %v2163
        %v2166 = vlaneseq
        %v2167 = vshrl.u32 %v2166, 7
        %v2168 = vsub.s32 0, %v2167
        %v2169 = vrot.slane %v2164, %v2168
        %v2170 = vlaneseq
        %v2171 = vshrl.u32 %v2170, 7
        %v2172 = vsub.s32 1, %v2171
        %v2173 = vrot.slane %v2164, %v2172
        %v2174 = vlaneseq
        %v2175 = vshrl.u32 %v2174, 7
        %v2176 = vsub.s32 2, %v2175
        %v2177 = vrot.slane %v2164, %v2176
        %v2178 = vlaneseq
        %v2179 = vshrl.u32 %v2178, 7
        %v2180 = vsub.s32 3, %v2179
        %v2181 = vrot.slane %v2164, %v2180
        %v2182 = vlaneseq
        %v2183 = vshrl.u32 %v2182, 7
        %v2184 = vsub.s32 4, %v2183
        %v2185 = vrot.slane %v2164, %v2184
        %v2186 = vlaneseq
        %v2187 = vshrl.u32 %v2186, 7
        %v2188 = vsub.s32 5, %v2187
        %v2189 = vrot.slane %v2164, %v2188
        %v2190 = vlaneseq
        %v2191 = vshrl.u32 %v2190, 7
        %v2192 = vsub.s32 6, %v2191
        %v2193 = vrot.slane %v2164, %v2192
        %v2201 = vmul.f32 %v2161, %v2169
        %v2202 = vmul.f32 %v2160, %v2173
        %v2203 = vmul.f32 %v2159, %v2177
        %v2204 = vmul.f32 %v2158, %v2181
        %v2205 = vmul.f32 %v2157, %v2185
        %v2206 = vmul.f32 %v2156, %v2189
        %v2207 = vmul.f32 %v2155, %v2193
        %2208 = vst [vmem:[#allocation2 + $0x70] sm:$0xff] %v2201
        %2209 = vst [vmem:[#allocation2 + $0x78] sm:$0xff] %v2202
        %2210 = vst [vmem:[#allocation2 + $0x80] sm:$0xff] %v2203
        %2211 = vst [vmem:[#allocation2 + $0x88] sm:$0xff] %v2204
        %2212 = vst [vmem:[#allocation2 + $0x90] sm:$0xff] %v2205
        %2213 = vst [vmem:[#allocation2 + $0x98] sm:$0xff] %v2206
        %2214 = vst [vmem:[#allocation2 + $0xa0] sm:$0xff] %v2207
        %2215 = vrot.lane.b32.xlu0 %v1986, 1
        %v2216 = vpop.permute.xlu0 %2215
        %2217 = vrot.lane.b32.xlu0 %v1987, 1
        %v2218 = vpop.permute.xlu0 %2217
        %2219 = vrot.lane.b32.xlu0 %v1988, 1
        %v2220 = vpop.permute.xlu0 %2219
        %2221 = vrot.lane.b32.xlu0 %v1989, 1
        %v2222 = vpop.permute.xlu0 %2221
        %2223 = vrot.lane.b32.xlu0 %v1990, 1
        %v2224 = vpop.permute.xlu0 %2223
        %2225 = vrot.lane.b32.xlu0 %v1991, 1
        %v2226 = vpop.permute.xlu0 %2225
        %2227 = vrot.lane.b32.xlu0 %v1992, 1
        %v2228 = vpop.permute.xlu0 %2227
        %v2229 = vsel %vm1022, %v2226, %v2228
        %v2230 = vsel %vm1022, %v2224, %v2226
        %v2231 = vsel %vm1022, %v2222, %v2224
        %v2232 = vsel %vm1022, %v2220, %v2222
        %v2233 = vsel %vm1022, %v2218, %v2220
        %v2234 = vsel %vm1022, %v2216, %v2218
        %v2235 = vsel %vm1022, %v2228, %v2216
        %v2236 = vld [vmem:[%s1030] ss:$8 sm:$0xf]
        %v2237 = vld [vmem:[%s1030] ss:$8 sm:$0xf0]
        %v2238 = vor.u32 %v2236, %v2237
        %v2240 = vlaneseq
        %v2241 = vshrl.u32 %v2240, 7
        %v2242 = vsub.s32 0, %v2241
        %v2243 = vrot.slane %v2238, %v2242
        %v2244 = vlaneseq
        %v2245 = vshrl.u32 %v2244, 7
        %v2246 = vsub.s32 1, %v2245
        %v2247 = vrot.slane %v2238, %v2246
        %v2248 = vlaneseq
        %v2249 = vshrl.u32 %v2248, 7
        %v2250 = vsub.s32 2, %v2249
        %v2251 = vrot.slane %v2238, %v2250
        %v2252 = vlaneseq
        %v2253 = vshrl.u32 %v2252, 7
        %v2254 = vsub.s32 3, %v2253
        %v2255 = vrot.slane %v2238, %v2254
        %v2256 = vlaneseq
        %v2257 = vshrl.u32 %v2256, 7
        %v2258 = vsub.s32 4, %v2257
        %v2259 = vrot.slane %v2238, %v2258
        %v2260 = vlaneseq
        %v2261 = vshrl.u32 %v2260, 7
        %v2262 = vsub.s32 5, %v2261
        %v2263 = vrot.slane %v2238, %v2262
        %v2264 = vlaneseq
        %v2265 = vshrl.u32 %v2264, 7
        %v2266 = vsub.s32 6, %v2265
        %v2267 = vrot.slane %v2238, %v2266
        %v2275 = vmul.f32 %v2235, %v2243
        %v2276 = vmul.f32 %v2234, %v2247
        %v2277 = vmul.f32 %v2233, %v2251
        %v2278 = vmul.f32 %v2232, %v2255
        %v2279 = vmul.f32 %v2231, %v2259
        %v2280 = vmul.f32 %v2230, %v2263
        %v2281 = vmul.f32 %v2229, %v2267
        %2282 = vst [vmem:[#allocation2 + $0xa8] sm:$0xff] %v2275
        %2283 = vst [vmem:[#allocation2 + $0xb0] sm:$0xff] %v2276
        %2284 = vst [vmem:[#allocation2 + $0xb8] sm:$0xff] %v2277
        %2285 = vst [vmem:[#allocation2 + $0xc0] sm:$0xff] %v2278
        %2286 = vst [vmem:[#allocation2 + $0xc8] sm:$0xff] %v2279
        %2287 = vst [vmem:[#allocation2 + $0xd0] sm:$0xff] %v2280
        %2288 = vst [vmem:[#allocation2 + $0xd8] sm:$0xff] %v2281
        %v2289 = vld [vmem:[%s1136] ss:$8 sm:$0xf]
        %v2290 = vld [vmem:[%s1136] ss:$8 sm:$0xf0]
        %v2291 = vor.u32 %v2289, %v2290
        %v2293 = vlaneseq
        %v2294 = vshrl.u32 %v2293, 7
        %v2295 = vsub.s32 0, %v2294
        %v2296 = vrot.slane %v2291, %v2295
        %v2297 = vlaneseq
        %v2298 = vshrl.u32 %v2297, 7
        %v2299 = vsub.s32 1, %v2298
        %v2300 = vrot.slane %v2291, %v2299
        %v2301 = vlaneseq
        %v2302 = vshrl.u32 %v2301, 7
        %v2303 = vsub.s32 2, %v2302
        %v2304 = vrot.slane %v2291, %v2303
        %v2305 = vlaneseq
        %v2306 = vshrl.u32 %v2305, 7
        %v2307 = vsub.s32 3, %v2306
        %v2308 = vrot.slane %v2291, %v2307
        %v2309 = vlaneseq
        %v2310 = vshrl.u32 %v2309, 7
        %v2311 = vsub.s32 4, %v2310
        %v2312 = vrot.slane %v2291, %v2311
        %v2313 = vlaneseq
        %v2314 = vshrl.u32 %v2313, 7
        %v2315 = vsub.s32 5, %v2314
        %v2316 = vrot.slane %v2291, %v2315
        %v2317 = vlaneseq
        %v2318 = vshrl.u32 %v2317, 7
        %v2319 = vsub.s32 6, %v2318
        %v2320 = vrot.slane %v2291, %v2319
        %v2328 = vmul.f32 %v1986, %v2296
        %v2329 = vmul.f32 %v1987, %v2300
        %v2330 = vmul.f32 %v1988, %v2304
        %v2331 = vmul.f32 %v1989, %v2308
        %v2332 = vmul.f32 %v1990, %v2312
        %v2333 = vmul.f32 %v1991, %v2316
        %v2334 = vmul.f32 %v1992, %v2320
        %2335 = vst [vmem:[#allocation2 + $0xe0] sm:$0xff] %v2328
        %2336 = vst [vmem:[#allocation2 + $0xe8] sm:$0xff] %v2329
        %2337 = vst [vmem:[#allocation2 + $0xf0] sm:$0xff] %v2330
        %2338 = vst [vmem:[#allocation2 + $0xf8] sm:$0xff] %v2331
        %2339 = vst [vmem:[#allocation2 + $0x100] sm:$0xff] %v2332
        %2340 = vst [vmem:[#allocation2 + $0x108] sm:$0xff] %v2333
        %2341 = vst [vmem:[#allocation2 + $0x110] sm:$0xff] %v2334
        %2342 = vrot.lane.b32.xlu0 %v1986, 127
        %v2343 = vpop.permute.xlu0 %2342
        %2344 = vrot.lane.b32.xlu0 %v1987, 127
        %v2345 = vpop.permute.xlu0 %2344
        %2346 = vrot.lane.b32.xlu0 %v1988, 127
        %v2347 = vpop.permute.xlu0 %2346
        %2348 = vrot.lane.b32.xlu0 %v1989, 127
        %v2349 = vpop.permute.xlu0 %2348
        %2350 = vrot.lane.b32.xlu0 %v1990, 127
        %v2351 = vpop.permute.xlu0 %2350
        %2352 = vrot.lane.b32.xlu0 %v1991, 127
        %v2353 = vpop.permute.xlu0 %2352
        %2354 = vrot.lane.b32.xlu0 %v1992, 127
        %v2355 = vpop.permute.xlu0 %2354
        %v2356 = vsel %vm1158, %v2353, %v2355
        %v2357 = vsel %vm1158, %v2351, %v2353
        %v2358 = vsel %vm1158, %v2349, %v2351
        %v2359 = vsel %vm1158, %v2347, %v2349
        %v2360 = vsel %vm1158, %v2345, %v2347
        %v2361 = vsel %vm1158, %v2343, %v2345
        %v2362 = vsel %vm1158, %v2355, %v2343
        %v2363 = vld [vmem:[%s1166] ss:$8 sm:$0xf]
        %v2364 = vld [vmem:[%s1166] ss:$8 sm:$0xf0]
        %v2365 = vor.u32 %v2363, %v2364
        %v2367 = vlaneseq
        %v2368 = vshrl.u32 %v2367, 7
        %v2369 = vsub.s32 0, %v2368
        %v2370 = vrot.slane %v2365, %v2369
        %v2371 = vlaneseq
        %v2372 = vshrl.u32 %v2371, 7
        %v2373 = vsub.s32 1, %v2372
        %v2374 = vrot.slane %v2365, %v2373
        %v2375 = vlaneseq
        %v2376 = vshrl.u32 %v2375, 7
        %v2377 = vsub.s32 2, %v2376
        %v2378 = vrot.slane %v2365, %v2377
        %v2379 = vlaneseq
        %v2380 = vshrl.u32 %v2379, 7
        %v2381 = vsub.s32 3, %v2380
        %v2382 = vrot.slane %v2365, %v2381
        %v2383 = vlaneseq
        %v2384 = vshrl.u32 %v2383, 7
        %v2385 = vsub.s32 4, %v2384
        %v2386 = vrot.slane %v2365, %v2385
        %v2387 = vlaneseq
        %v2388 = vshrl.u32 %v2387, 7
        %v2389 = vsub.s32 5, %v2388
        %v2390 = vrot.slane %v2365, %v2389
        %v2391 = vlaneseq
        %v2392 = vshrl.u32 %v2391, 7
        %v2393 = vsub.s32 6, %v2392
        %v2394 = vrot.slane %v2365, %v2393
        %v2402 = vmul.f32 %v2361, %v2370
        %v2403 = vmul.f32 %v2360, %v2374
        %v2404 = vmul.f32 %v2359, %v2378
        %v2405 = vmul.f32 %v2358, %v2382
        %v2406 = vmul.f32 %v2357, %v2386
        %v2407 = vmul.f32 %v2356, %v2390
        %v2408 = vmul.f32 %v2362, %v2394
        %2409 = vst [vmem:[#allocation2 + $0x118] sm:$0xff] %v2402
        %2410 = vst [vmem:[#allocation2 + $0x120] sm:$0xff] %v2403
        %2411 = vst [vmem:[#allocation2 + $0x128] sm:$0xff] %v2404
        %2412 = vst [vmem:[#allocation2 + $0x130] sm:$0xff] %v2405
        %2413 = vst [vmem:[#allocation2 + $0x138] sm:$0xff] %v2406
        %2414 = vst [vmem:[#allocation2 + $0x140] sm:$0xff] %v2407
        %2415 = vst [vmem:[#allocation2 + $0x148] sm:$0xff] %v2408
        %2416 = vrot.lane.b32.xlu0 %v1986, 101
        %v2417 = vpop.permute.xlu0 %2416
        %2418 = vrot.lane.b32.xlu0 %v1987, 101
        %v2419 = vpop.permute.xlu0 %2418
        %2420 = vrot.lane.b32.xlu0 %v1988, 101
        %v2421 = vpop.permute.xlu0 %2420
        %2422 = vrot.lane.b32.xlu0 %v1989, 101
        %v2423 = vpop.permute.xlu0 %2422
        %2424 = vrot.lane.b32.xlu0 %v1990, 101
        %v2425 = vpop.permute.xlu0 %2424
        %2426 = vrot.lane.b32.xlu0 %v1991, 101
        %v2427 = vpop.permute.xlu0 %2426
        %2428 = vrot.lane.b32.xlu0 %v1992, 101
        %v2429 = vpop.permute.xlu0 %2428
        %v2430 = vsel %vm1286, %v2427, %v2429
        %v2431 = vsel %vm1286, %v2425, %v2427
        %v2432 = vsel %vm1286, %v2423, %v2425
        %v2433 = vsel %vm1286, %v2421, %v2423
        %v2434 = vsel %vm1286, %v2419, %v2421
        %v2435 = vsel %vm1286, %v2417, %v2419
        %v2436 = vsel %vm1286, %v2429, %v2417
        %v2437 = vld [vmem:[%s1294] ss:$8 sm:$0xf]
        %v2438 = vld [vmem:[%s1294] ss:$8 sm:$0xf0]
        %v2439 = vor.u32 %v2437, %v2438
        %v2441 = vlaneseq
        %v2442 = vshrl.u32 %v2441, 7
        %v2443 = vsub.s32 0, %v2442
        %v2444 = vrot.slane %v2439, %v2443
        %v2445 = vlaneseq
        %v2446 = vshrl.u32 %v2445, 7
        %v2447 = vsub.s32 1, %v2446
        %v2448 = vrot.slane %v2439, %v2447
        %v2449 = vlaneseq
        %v2450 = vshrl.u32 %v2449, 7
        %v2451 = vsub.s32 2, %v2450
        %v2452 = vrot.slane %v2439, %v2451
        %v2453 = vlaneseq
        %v2454 = vshrl.u32 %v2453, 7
        %v2455 = vsub.s32 3, %v2454
        %v2456 = vrot.slane %v2439, %v2455
        %v2457 = vlaneseq
        %v2458 = vshrl.u32 %v2457, 7
        %v2459 = vsub.s32 4, %v2458
        %v2460 = vrot.slane %v2439, %v2459
        %v2461 = vlaneseq
        %v2462 = vshrl.u32 %v2461, 7
        %v2463 = vsub.s32 5, %v2462
        %v2464 = vrot.slane %v2439, %v2463
        %v2465 = vlaneseq
        %v2466 = vshrl.u32 %v2465, 7
        %v2467 = vsub.s32 6, %v2466
        %v2468 = vrot.slane %v2439, %v2467
        %v2476 = vmul.f32 %v2435, %v2444
        %v2477 = vmul.f32 %v2434, %v2448
        %v2478 = vmul.f32 %v2433, %v2452
        %v2479 = vmul.f32 %v2432, %v2456
        %v2480 = vmul.f32 %v2431, %v2460
        %v2481 = vmul.f32 %v2430, %v2464
        %v2482 = vmul.f32 %v2436, %v2468
        %2483 = vst [vmem:[#allocation2 + $0x150] sm:$0xff] %v2476
        %2484 = vst [vmem:[#allocation2 + $0x158] sm:$0xff] %v2477
        %2485 = vst [vmem:[#allocation2 + $0x160] sm:$0xff] %v2478
        %2486 = vst [vmem:[#allocation2 + $0x168] sm:$0xff] %v2479
        %2487 = vst [vmem:[#allocation2 + $0x170] sm:$0xff] %v2480
        %2488 = vst [vmem:[#allocation2 + $0x178] sm:$0xff] %v2481
        %2489 = vst [vmem:[#allocation2 + $0x180] sm:$0xff] %v2482
        %2490 = vrot.lane.b32.xlu0 %v1986, 100
        %v2491 = vpop.permute.xlu0 %2490
        %2492 = vrot.lane.b32.xlu0 %v1987, 100
        %v2493 = vpop.permute.xlu0 %2492
        %2494 = vrot.lane.b32.xlu0 %v1988, 100
        %v2495 = vpop.permute.xlu0 %2494
        %2496 = vrot.lane.b32.xlu0 %v1989, 100
        %v2497 = vpop.permute.xlu0 %2496
        %2498 = vrot.lane.b32.xlu0 %v1990, 100
        %v2499 = vpop.permute.xlu0 %2498
        %2500 = vrot.lane.b32.xlu0 %v1991, 100
        %v2501 = vpop.permute.xlu0 %2500
        %2502 = vrot.lane.b32.xlu0 %v1992, 100
        %v2503 = vpop.permute.xlu0 %2502
        %v2504 = vsel %vm1414, %v2501, %v2503
        %v2505 = vsel %vm1414, %v2499, %v2501
        %v2506 = vsel %vm1414, %v2497, %v2499
        %v2507 = vsel %vm1414, %v2495, %v2497
        %v2508 = vsel %vm1414, %v2493, %v2495
        %v2509 = vsel %vm1414, %v2491, %v2493
        %v2510 = vsel %vm1414, %v2503, %v2491
        %v2511 = vld [vmem:[%s1422] ss:$8 sm:$0xf]
        %v2512 = vld [vmem:[%s1422] ss:$8 sm:$0xf0]
        %v2513 = vor.u32 %v2511, %v2512
        %v2515 = vlaneseq
        %v2516 = vshrl.u32 %v2515, 7
        %v2517 = vsub.s32 0, %v2516
        %v2518 = vrot.slane %v2513, %v2517
        %v2519 = vlaneseq
        %v2520 = vshrl.u32 %v2519, 7
        %v2521 = vsub.s32 1, %v2520
        %v2522 = vrot.slane %v2513, %v2521
        %v2523 = vlaneseq
        %v2524 = vshrl.u32 %v2523, 7
        %v2525 = vsub.s32 2, %v2524
        %v2526 = vrot.slane %v2513, %v2525
        %v2527 = vlaneseq
        %v2528 = vshrl.u32 %v2527, 7
        %v2529 = vsub.s32 3, %v2528
        %v2530 = vrot.slane %v2513, %v2529
        %v2531 = vlaneseq
        %v2532 = vshrl.u32 %v2531, 7
        %v2533 = vsub.s32 4, %v2532
        %v2534 = vrot.slane %v2513, %v2533
        %v2535 = vlaneseq
        %v2536 = vshrl.u32 %v2535, 7
        %v2537 = vsub.s32 5, %v2536
        %v2538 = vrot.slane %v2513, %v2537
        %v2539 = vlaneseq
        %v2540 = vshrl.u32 %v2539, 7
        %v2541 = vsub.s32 6, %v2540
        %v2542 = vrot.slane %v2513, %v2541
        %v2550 = vmul.f32 %v2509, %v2518
        %v2551 = vmul.f32 %v2508, %v2522
        %v2552 = vmul.f32 %v2507, %v2526
        %v2553 = vmul.f32 %v2506, %v2530
        %v2554 = vmul.f32 %v2505, %v2534
        %v2555 = vmul.f32 %v2504, %v2538
        %v2556 = vmul.f32 %v2510, %v2542
        %2557 = vst [vmem:[#allocation2 + $0x188] sm:$0xff] %v2550
        %2558 = vst [vmem:[#allocation2 + $0x190] sm:$0xff] %v2551
        %2559 = vst [vmem:[#allocation2 + $0x198] sm:$0xff] %v2552
        %2560 = vst [vmem:[#allocation2 + $0x1a0] sm:$0xff] %v2553
        %2561 = vst [vmem:[#allocation2 + $0x1a8] sm:$0xff] %v2554
        %2562 = vst [vmem:[#allocation2 + $0x1b0] sm:$0xff] %v2555
        %2563 = vst [vmem:[#allocation2 + $0x1b8] sm:$0xff] %v2556
        %2564 = vrot.lane.b32.xlu0 %v1986, 99
        %v2565 = vpop.permute.xlu0 %2564
        %2566 = vrot.lane.b32.xlu0 %v1987, 99
        %v2567 = vpop.permute.xlu0 %2566
        %2568 = vrot.lane.b32.xlu0 %v1988, 99
        %v2569 = vpop.permute.xlu0 %2568
        %2570 = vrot.lane.b32.xlu0 %v1989, 99
        %v2571 = vpop.permute.xlu0 %2570
        %2572 = vrot.lane.b32.xlu0 %v1990, 99
        %v2573 = vpop.permute.xlu0 %2572
        %2574 = vrot.lane.b32.xlu0 %v1991, 99
        %v2575 = vpop.permute.xlu0 %2574
        %2576 = vrot.lane.b32.xlu0 %v1992, 99
        %v2577 = vpop.permute.xlu0 %2576
        %v2578 = vsel %vm1542, %v2575, %v2577
        %v2579 = vsel %vm1542, %v2573, %v2575
        %v2580 = vsel %vm1542, %v2571, %v2573
        %v2581 = vsel %vm1542, %v2569, %v2571
        %v2582 = vsel %vm1542, %v2567, %v2569
        %v2583 = vsel %vm1542, %v2565, %v2567
        %v2584 = vsel %vm1542, %v2577, %v2565
        %v2585 = vld [vmem:[%s1550] ss:$8 sm:$0xf]
        %v2586 = vld [vmem:[%s1550] ss:$8 sm:$0xf0]
        %v2587 = vor.u32 %v2585, %v2586
        %v2589 = vlaneseq
        %v2590 = vshrl.u32 %v2589, 7
        %v2591 = vsub.s32 0, %v2590
        %v2592 = vrot.slane %v2587, %v2591
        %v2593 = vlaneseq
        %v2594 = vshrl.u32 %v2593, 7
        %v2595 = vsub.s32 1, %v2594
        %v2596 = vrot.slane %v2587, %v2595
        %v2597 = vlaneseq
        %v2598 = vshrl.u32 %v2597, 7
        %v2599 = vsub.s32 2, %v2598
        %v2600 = vrot.slane %v2587, %v2599
        %v2601 = vlaneseq
        %v2602 = vshrl.u32 %v2601, 7
        %v2603 = vsub.s32 3, %v2602
        %v2604 = vrot.slane %v2587, %v2603
        %v2605 = vlaneseq
        %v2606 = vshrl.u32 %v2605, 7
        %v2607 = vsub.s32 4, %v2606
        %v2608 = vrot.slane %v2587, %v2607
        %v2609 = vlaneseq
        %v2610 = vshrl.u32 %v2609, 7
        %v2611 = vsub.s32 5, %v2610
        %v2612 = vrot.slane %v2587, %v2611
        %v2613 = vlaneseq
        %v2614 = vshrl.u32 %v2613, 7
        %v2615 = vsub.s32 6, %v2614
        %v2616 = vrot.slane %v2587, %v2615
        %v2624 = vmul.f32 %v2583, %v2592
        %v2625 = vmul.f32 %v2582, %v2596
        %v2626 = vmul.f32 %v2581, %v2600
        %v2627 = vmul.f32 %v2580, %v2604
        %v2628 = vmul.f32 %v2579, %v2608
        %v2629 = vmul.f32 %v2578, %v2612
        %v2630 = vmul.f32 %v2584, %v2616
        %2631 = vst [vmem:[#allocation2 + $0x1c0] sm:$0xff] %v2624
        %2632 = vst [vmem:[#allocation2 + $0x1c8] sm:$0xff] %v2625
        %2633 = vst [vmem:[#allocation2 + $0x1d0] sm:$0xff] %v2626
        %2634 = vst [vmem:[#allocation2 + $0x1d8] sm:$0xff] %v2627
        %2635 = vst [vmem:[#allocation2 + $0x1e0] sm:$0xff] %v2628
        %2636 = vst [vmem:[#allocation2 + $0x1e8] sm:$0xff] %v2629
        %2637 = vst [vmem:[#allocation2 + $0x1f0] sm:$0xff] %v2630
        %v2638 = vld [vmem:[#allocation6] sm:$0xff]
        %v2639 = vld [vmem:[#allocation2] sm:$0xff]
        %v2640 = vld [vmem:[#allocation2 + $0x8] sm:$0xff]
        %v2641 = vld [vmem:[#allocation2 + $0x10] sm:$0xff]
        %v2642 = vld [vmem:[#allocation2 + $0x18] sm:$0xff]
        %v2643 = vld [vmem:[#allocation2 + $0x20] sm:$0xff]
        %v2644 = vld [vmem:[#allocation2 + $0x28] sm:$0xff]
        %v2645 = vld [vmem:[#allocation2 + $0x30] sm:$0xff]
        %v2646 = vld [vmem:[#allocation2 + $0x38] sm:$0xff]
        %v2647 = vld [vmem:[#allocation2 + $0x40] sm:$0xff]
        %v2648 = vld [vmem:[#allocation2 + $0x48] sm:$0xff]
        %v2649 = vld [vmem:[#allocation2 + $0x50] sm:$0xff]
        %v2650 = vld [vmem:[#allocation2 + $0x58] sm:$0xff]
        %v2651 = vld [vmem:[#allocation2 + $0x60] sm:$0xff]
        %v2652 = vld [vmem:[#allocation2 + $0x68] sm:$0xff]
        %v2653 = vld [vmem:[#allocation2 + $0x70] sm:$0xff]
        %v2654 = vld [vmem:[#allocation2 + $0x78] sm:$0xff]
        %v2655 = vld [vmem:[#allocation2 + $0x80] sm:$0xff]
        %v2656 = vld [vmem:[#allocation2 + $0x88] sm:$0xff]
        %v2657 = vld [vmem:[#allocation2 + $0x90] sm:$0xff]
        %v2658 = vld [vmem:[#allocation2 + $0x98] sm:$0xff]
        %v2659 = vld [vmem:[#allocation2 + $0xa0] sm:$0xff]
        %v2660 = vld [vmem:[#allocation2 + $0xa8] sm:$0xff]
        %v2661 = vld [vmem:[#allocation2 + $0xb0] sm:$0xff]
        %v2662 = vld [vmem:[#allocation2 + $0xb8] sm:$0xff]
        %v2663 = vld [vmem:[#allocation2 + $0xc0] sm:$0xff]
        %v2664 = vld [vmem:[#allocation2 + $0xc8] sm:$0xff]
        %v2665 = vld [vmem:[#allocation2 + $0xd0] sm:$0xff]
        %v2666 = vld [vmem:[#allocation2 + $0xd8] sm:$0xff]
        %v2667 = vld [vmem:[#allocation2 + $0xe0] sm:$0xff]
        %v2668 = vld [vmem:[#allocation2 + $0xe8] sm:$0xff]
        %v2669 = vld [vmem:[#allocation2 + $0xf0] sm:$0xff]
        %v2670 = vld [vmem:[#allocation2 + $0xf8] sm:$0xff]
        %v2671 = vld [vmem:[#allocation2 + $0x100] sm:$0xff]
        %v2672 = vld [vmem:[#allocation2 + $0x108] sm:$0xff]
        %v2673 = vld [vmem:[#allocation2 + $0x110] sm:$0xff]
        %v2674 = vld [vmem:[#allocation2 + $0x118] sm:$0xff]
        %v2675 = vld [vmem:[#allocation2 + $0x120] sm:$0xff]
        %v2676 = vld [vmem:[#allocation2 + $0x128] sm:$0xff]
        %v2677 = vld [vmem:[#allocation2 + $0x130] sm:$0xff]
        %v2678 = vld [vmem:[#allocation2 + $0x138] sm:$0xff]
        %v2679 = vld [vmem:[#allocation2 + $0x140] sm:$0xff]
        %v2680 = vld [vmem:[#allocation2 + $0x148] sm:$0xff]
        %v2681 = vld [vmem:[#allocation2 + $0x150] sm:$0xff]
        %v2682 = vld [vmem:[#allocation2 + $0x158] sm:$0xff]
        %v2683 = vld [vmem:[#allocation2 + $0x160] sm:$0xff]
        %v2684 = vld [vmem:[#allocation2 + $0x168] sm:$0xff]
        %v2685 = vld [vmem:[#allocation2 + $0x170] sm:$0xff]
        %v2686 = vld [vmem:[#allocation2 + $0x178] sm:$0xff]
        %v2687 = vld [vmem:[#allocation2 + $0x180] sm:$0xff]
        %v2688 = vld [vmem:[#allocation2 + $0x188] sm:$0xff]
        %v2689 = vld [vmem:[#allocation2 + $0x190] sm:$0xff]
        %v2690 = vld [vmem:[#allocation2 + $0x198] sm:$0xff]
        %v2691 = vld [vmem:[#allocation2 + $0x1a0] sm:$0xff]
        %v2692 = vld [vmem:[#allocation2 + $0x1a8] sm:$0xff]
        %v2693 = vld [vmem:[#allocation2 + $0x1b0] sm:$0xff]
        %v2694 = vld [vmem:[#allocation2 + $0x1b8] sm:$0xff]
        %v2695 = vld [vmem:[#allocation2 + $0x1c0] sm:$0xff]
        %v2696 = vld [vmem:[#allocation2 + $0x1c8] sm:$0xff]
        %v2697 = vld [vmem:[#allocation2 + $0x1d0] sm:$0xff]
        %v2698 = vld [vmem:[#allocation2 + $0x1d8] sm:$0xff]
        %v2699 = vld [vmem:[#allocation2 + $0x1e0] sm:$0xff]
        %v2700 = vld [vmem:[#allocation2 + $0x1e8] sm:$0xff]
        %v2701 = vld [vmem:[#allocation2 + $0x1f0] sm:$0xff]
        %v2702 = vld [vmem:[%s4] sm:$0xff]
        %2704 = vset.pattern.permute.xlu0 0
        %2705 = vperm.xlu0 %2704, %v2702
        %v2706 = vpop.permute.xlu0 %2705
        %vm2708 = vcmask 588800
        %v2710 = vsel %vm2708, %v2638, 0
        %2712 = vmatprep.subr.mxu0 %v2640
        %2713 = vmatpush1.msra.mxu0 %v2639
        %2714 = vmatprep.subr.mxu0 %v2647
        %2715 = vmatpush1.msra.mxu0 %v2646
        %2716 = vmatprep.subr.mxu0 %v2654
        %2717 = vmatpush1.msra.mxu0 %v2653
        %2718 = vmatprep.subr.mxu0 %v2661
        %2719 = vmatpush1.msra.mxu0 %v2660
        %2720 = vmatprep.subr.mxu0 %v2668
        %2721 = vmatpush1.msra.mxu0 %v2667
        %2722 = vmatprep.subr.mxu0 %v2675
        %2723 = vmatpush1.msra.mxu0 %v2674
        %2724 = vmatprep.subr.mxu0 %v2682
        %2725 = vmatpush1.msra.mxu0 %v2681
        %2726 = vmatprep.subr.mxu0 %v2689
        %2727 = vmatpush1.msra.mxu0 %v2688
        %2728 = vmatprep.subr.mxu0 %v2696
        %2729 = vmatpush1.msra.mxu0 %v2695
        %2730 = vmatprep.subr.mxu0 0.0
        %2731 = vmatpush1.msra.mxu0 0.0
        %2732 = vmatprep.subr.mxu0 0.0
        %2733 = vmatpush1.msra.mxu0 0.0
        %2734 = vmatprep.subr.mxu0 0.0
        %2735 = vmatpush1.msra.mxu0 0.0
        %2736 = vmatprep.subr.mxu0 0.0
        %2737 = vmatpush1.msra.mxu0 0.0
        %2738 = vmatprep.subr.mxu0 0.0
        %2739 = vmatpush1.msra.mxu0 0.0
        %2740 = vmatprep.subr.mxu0 0.0
        %2741 = vmatpush1.msra.mxu0 0.0
        %2742 = vmatprep.subr.mxu0 0.0
        %2743 = vmatpush1.msra.mxu0 0.0
        %2744 = vmatprep.subr.mxu0 0.0
        %2745 = vmatpush1.msra.mxu0 0.0
        %2746 = vmatprep.subr.mxu0 0.0
        %2747 = vmatpush1.msra.mxu0 0.0
        %2748 = vmatprep.subr.mxu0 0.0
        %2749 = vmatpush1.msra.mxu0 0.0
        %2750 = vmatprep.subr.mxu0 0.0
        %2751 = vmatpush1.msra.mxu0 0.0
        %2752 = vmatprep.subr.mxu0 0.0
        %2753 = vmatpush1.msra.mxu0 0.0
        %2754 = vmatprep.subr.mxu0 0.0
        %2755 = vmatpush1.msra.mxu0 0.0
        %2756 = vmatprep.subr.mxu0 0.0
        %2757 = vmatpush1.msra.mxu0 0.0
        %2758 = vmatprep.subr.mxu0 0.0
        %2759 = vmatpush1.msra.mxu0 0.0
        %2760 = vmatprep.subr.mxu0 0.0
        %2761 = vmatpush1.msra.mxu0 0.0
        %2762 = vmatprep.subr.mxu0 0.0
        %2763 = vmatpush1.msra.mxu0 0.0
        %2764 = vmatprep.subr.mxu0 0.0
        %2765 = vmatpush1.msra.mxu0 0.0
        %2766 = vmatprep.subr.mxu0 0.0
        %2767 = vmatpush1.msra.mxu0 0.0
        %2768 = vmatprep.subr.mxu0 0.0
        %2769 = vmatpush1.msra.mxu0 0.0
        %2770 = vmatprep.subr.mxu0 0.0
        %2771 = vmatpush1.msra.mxu0 0.0
        %2772 = vmatprep.subr.mxu0 0.0
        %2773 = vmatpush1.msra.mxu0 0.0
        %2774 = vmatprep.subr.mxu0 0.0
        %2775 = vmatpush1.msra.mxu0 0.0
        %2776 = vmatprep.mubr.f32.mxu0 0.0
        %2777 = vmatmul.mubr.f32.gmra.mrb[0].mxu0 %v2710
        %v2778 = vpop.f32.mrb[0].mxu0
        %v2779 = vadd.f32 %v2706, %v2778
        %v2780 = vpop.f32.mrb[0].mxu0
        %v2781 = vadd.f32 %v2706, %v2780
        %2782 = vdwg.mxu0
        %2783 = vmatprep.subr.mxu0 %v2642
        %2784 = vmatpush1.msra.mxu0 %v2641
        %2785 = vmatprep.subr.mxu0 %v2649
        %2786 = vmatpush1.msra.mxu0 %v2648
        %2787 = vmatprep.subr.mxu0 %v2656
        %2788 = vmatpush1.msra.mxu0 %v2655
        %2789 = vmatprep.subr.mxu0 %v2663
        %2790 = vmatpush1.msra.mxu0 %v2662
        %2791 = vmatprep.subr.mxu0 %v2670
        %2792 = vmatpush1.msra.mxu0 %v2669
        %2793 = vmatprep.subr.mxu0 %v2677
        %2794 = vmatpush1.msra.mxu0 %v2676
        %2795 = vmatprep.subr.mxu0 %v2684
        %2796 = vmatpush1.msra.mxu0 %v2683
        %2797 = vmatprep.subr.mxu0 %v2691
        %2798 = vmatpush1.msra.mxu0 %v2690
        %2799 = vmatprep.subr.mxu0 %v2698
        %2800 = vmatpush1.msra.mxu0 %v2697
        %2801 = vmatprep.subr.mxu0 0.0
        %2802 = vmatpush1.msra.mxu0 0.0
        %2803 = vmatprep.subr.mxu0 0.0
        %2804 = vmatpush1.msra.mxu0 0.0
        %2805 = vmatprep.subr.mxu0 0.0
        %2806 = vmatpush1.msra.mxu0 0.0
        %2807 = vmatprep.subr.mxu0 0.0
        %2808 = vmatpush1.msra.mxu0 0.0
        %2809 = vmatprep.subr.mxu0 0.0
        %2810 = vmatpush1.msra.mxu0 0.0
        %2811 = vmatprep.subr.mxu0 0.0
        %2812 = vmatpush1.msra.mxu0 0.0
        %2813 = vmatprep.subr.mxu0 0.0
        %2814 = vmatpush1.msra.mxu0 0.0
        %2815 = vmatprep.subr.mxu0 0.0
        %2816 = vmatpush1.msra.mxu0 0.0
        %2817 = vmatprep.subr.mxu0 0.0
        %2818 = vmatpush1.msra.mxu0 0.0
        %2819 = vmatprep.subr.mxu0 0.0
        %2820 = vmatpush1.msra.mxu0 0.0
        %2821 = vmatprep.subr.mxu0 0.0
        %2822 = vmatpush1.msra.mxu0 0.0
        %2823 = vmatprep.subr.mxu0 0.0
        %2824 = vmatpush1.msra.mxu0 0.0
        %2825 = vmatprep.subr.mxu0 0.0
        %2826 = vmatpush1.msra.mxu0 0.0
        %2827 = vmatprep.subr.mxu0 0.0
        %2828 = vmatpush1.msra.mxu0 0.0
        %2829 = vmatprep.subr.mxu0 0.0
        %2830 = vmatpush1.msra.mxu0 0.0
        %2831 = vmatprep.subr.mxu0 0.0
        %2832 = vmatpush1.msra.mxu0 0.0
        %2833 = vmatprep.subr.mxu0 0.0
        %2834 = vmatpush1.msra.mxu0 0.0
        %2835 = vmatprep.subr.mxu0 0.0
        %2836 = vmatpush1.msra.mxu0 0.0
        %2837 = vmatprep.subr.mxu0 0.0
        %2838 = vmatpush1.msra.mxu0 0.0
        %2839 = vmatprep.subr.mxu0 0.0
        %2840 = vmatpush1.msra.mxu0 0.0
        %2841 = vmatprep.subr.mxu0 0.0
        %2842 = vmatpush1.msra.mxu0 0.0
        %2843 = vmatprep.subr.mxu0 0.0
        %2844 = vmatpush1.msra.mxu0 0.0
        %2845 = vmatprep.subr.mxu0 0.0
        %2846 = vmatpush1.msra.mxu0 0.0
        %2847 = vmatprep.mubr.f32.mxu0 0.0
        %2848 = vmatmul.mubr.f32.gmra.mrb[0].mxu0 %v2710
        %v2849 = vpop.f32.mrb[0].mxu0
        %v2850 = vadd.f32 %v2706, %v2849
        %v2851 = vpop.f32.mrb[0].mxu0
        %v2852 = vadd.f32 %v2706, %v2851
        %2853 = vdwg.mxu0
        %2854 = vmatprep.subr.mxu0 %v2644
        %2855 = vmatpush1.msra.mxu0 %v2643
        %2856 = vmatprep.subr.mxu0 %v2651
        %2857 = vmatpush1.msra.mxu0 %v2650
        %2858 = vmatprep.subr.mxu0 %v2658
        %2859 = vmatpush1.msra.mxu0 %v2657
        %2860 = vmatprep.subr.mxu0 %v2665
        %2861 = vmatpush1.msra.mxu0 %v2664
        %2862 = vmatprep.subr.mxu0 %v2672
        %2863 = vmatpush1.msra.mxu0 %v2671
        %2864 = vmatprep.subr.mxu0 %v2679
        %2865 = vmatpush1.msra.mxu0 %v2678
        %2866 = vmatprep.subr.mxu0 %v2686
        %2867 = vmatpush1.msra.mxu0 %v2685
        %2868 = vmatprep.subr.mxu0 %v2693
        %2869 = vmatpush1.msra.mxu0 %v2692
        %2870 = vmatprep.subr.mxu0 %v2700
        %2871 = vmatpush1.msra.mxu0 %v2699
        %2872 = vmatprep.subr.mxu0 0.0
        %2873 = vmatpush1.msra.mxu0 0.0
        %2874 = vmatprep.subr.mxu0 0.0
        %2875 = vmatpush1.msra.mxu0 0.0
        %2876 = vmatprep.subr.mxu0 0.0
        %2877 = vmatpush1.msra.mxu0 0.0
        %2878 = vmatprep.subr.mxu0 0.0
        %2879 = vmatpush1.msra.mxu0 0.0
        %2880 = vmatprep.subr.mxu0 0.0
        %2881 = vmatpush1.msra.mxu0 0.0
        %2882 = vmatprep.subr.mxu0 0.0
        %2883 = vmatpush1.msra.mxu0 0.0
        %2884 = vmatprep.subr.mxu0 0.0
        %2885 = vmatpush1.msra.mxu0 0.0
        %2886 = vmatprep.subr.mxu0 0.0
        %2887 = vmatpush1.msra.mxu0 0.0
        %2888 = vmatprep.subr.mxu0 0.0
        %2889 = vmatpush1.msra.mxu0 0.0
        %2890 = vmatprep.subr.mxu0 0.0
        %2891 = vmatpush1.msra.mxu0 0.0
        %2892 = vmatprep.subr.mxu0 0.0
        %2893 = vmatpush1.msra.mxu0 0.0
        %2894 = vmatprep.subr.mxu0 0.0
        %2895 = vmatpush1.msra.mxu0 0.0
        %2896 = vmatprep.subr.mxu0 0.0
        %2897 = vmatpush1.msra.mxu0 0.0
        %2898 = vmatprep.subr.mxu0 0.0
        %2899 = vmatpush1.msra.mxu0 0.0
        %2900 = vmatprep.subr.mxu0 0.0
        %2901 = vmatpush1.msra.mxu0 0.0
        %2902 = vmatprep.subr.mxu0 0.0
        %2903 = vmatpush1.msra.mxu0 0.0
        %2904 = vmatprep.subr.mxu0 0.0
        %2905 = vmatpush1.msra.mxu0 0.0
        %2906 = vmatprep.subr.mxu0 0.0
        %2907 = vmatpush1.msra.mxu0 0.0
        %2908 = vmatprep.subr.mxu0 0.0
        %2909 = vmatpush1.msra.mxu0 0.0
        %2910 = vmatprep.subr.mxu0 0.0
        %2911 = vmatpush1.msra.mxu0 0.0
        %2912 = vmatprep.subr.mxu0 0.0
        %2913 = vmatpush1.msra.mxu0 0.0
        %2914 = vmatprep.subr.mxu0 0.0
        %2915 = vmatpush1.msra.mxu0 0.0
        %2916 = vmatprep.subr.mxu0 0.0
        %2917 = vmatpush1.msra.mxu0 0.0
        %2918 = vmatprep.mubr.f32.mxu0 0.0
        %2919 = vmatmul.mubr.f32.gmra.mrb[0].mxu0 %v2710
        %v2920 = vpop.f32.mrb[0].mxu0
        %v2921 = vadd.f32 %v2706, %v2920
        %v2922 = vpop.f32.mrb[0].mxu0
        %v2923 = vadd.f32 %v2706, %v2922
        %2924 = vdwg.mxu0
        %2925 = vmatprep.subr.mxu0 0.0
        %2926 = vmatpush1.msra.mxu0 %v2645
        %2927 = vmatprep.subr.mxu0 0.0
        %2928 = vmatpush1.msra.mxu0 %v2652
        %2929 = vmatprep.subr.mxu0 0.0
        %2930 = vmatpush1.msra.mxu0 %v2659
        %2931 = vmatprep.subr.mxu0 0.0
        %2932 = vmatpush1.msra.mxu0 %v2666
        %2933 = vmatprep.subr.mxu0 0.0
        %2934 = vmatpush1.msra.mxu0 %v2673
        %2935 = vmatprep.subr.mxu0 0.0
        %2936 = vmatpush1.msra.mxu0 %v2680
        %2937 = vmatprep.subr.mxu0 0.0
        %2938 = vmatpush1.msra.mxu0 %v2687
        %2939 = vmatprep.subr.mxu0 0.0
        %2940 = vmatpush1.msra.mxu0 %v2694
        %2941 = vmatprep.subr.mxu0 0.0
        %2942 = vmatpush1.msra.mxu0 %v2701
        %2943 = vmatprep.subr.mxu0 0.0
        %2944 = vmatpush1.msra.mxu0 0.0
        %2945 = vmatprep.subr.mxu0 0.0
        %2946 = vmatpush1.msra.mxu0 0.0
        %2947 = vmatprep.subr.mxu0 0.0
        %2948 = vmatpush1.msra.mxu0 0.0
        %2949 = vmatprep.subr.mxu0 0.0
        %2950 = vmatpush1.msra.mxu0 0.0
        %2951 = vmatprep.subr.mxu0 0.0
        %2952 = vmatpush1.msra.mxu0 0.0
        %2953 = vmatprep.subr.mxu0 0.0
        %2954 = vmatpush1.msra.mxu0 0.0
        %2955 = vmatprep.subr.mxu0 0.0
        %2956 = vmatpush1.msra.mxu0 0.0
        %2957 = vmatprep.subr.mxu0 0.0
        %2958 = vmatpush1.msra.mxu0 0.0
        %2959 = vmatprep.subr.mxu0 0.0
        %2960 = vmatpush1.msra.mxu0 0.0
        %2961 = vmatprep.subr.mxu0 0.0
        %2962 = vmatpush1.msra.mxu0 0.0
        %2963 = vmatprep.subr.mxu0 0.0
        %2964 = vmatpush1.msra.mxu0 0.0
        %2965 = vmatprep.subr.mxu0 0.0
        %2966 = vmatpush1.msra.mxu0 0.0
        %2967 = vmatprep.subr.mxu0 0.0
        %2968 = vmatpush1.msra.mxu0 0.0
        %2969 = vmatprep.subr.mxu0 0.0
        %2970 = vmatpush1.msra.mxu0 0.0
        %2971 = vmatprep.subr.mxu0 0.0
        %2972 = vmatpush1.msra.mxu0 0.0
        %2973 = vmatprep.subr.mxu0 0.0
        %2974 = vmatpush1.msra.mxu0 0.0
        %2975 = vmatprep.subr.mxu0 0.0
        %2976 = vmatpush1.msra.mxu0 0.0
        %2977 = vmatprep.subr.mxu0 0.0
        %2978 = vmatpush1.msra.mxu0 0.0
        %2979 = vmatprep.subr.mxu0 0.0
        %2980 = vmatpush1.msra.mxu0 0.0
        %2981 = vmatprep.subr.mxu0 0.0
        %2982 = vmatpush1.msra.mxu0 0.0
        %2983 = vmatprep.subr.mxu0 0.0
        %2984 = vmatpush1.msra.mxu0 0.0
        %2985 = vmatprep.subr.mxu0 0.0
        %2986 = vmatpush1.msra.mxu0 0.0
        %2987 = vmatprep.subr.mxu0 0.0
        %2988 = vmatpush1.msra.mxu0 0.0
        %2989 = vmatprep.mubr.f32.mxu0 0.0
        %2990 = vmatmul.mubr.f32.gmra.mrb[0].mxu0 %v2710
        %v2991 = vpop.f32.mrb[0].mxu0
        %v2992 = vadd.f32 %v2706, %v2991
        %v2993 = vpop.f32.mrb[0].mxu0
        %2994 = vdwg.mxu0
        %v2995 = vmax.f32 %v2779, 0.0
        %v2996 = vmax.f32 %v2781, 0.0
        %v2997 = vmax.f32 %v2850, 0.0
        %v2998 = vmax.f32 %v2852, 0.0
        %v2999 = vmax.f32 %v2921, 0.0
        %v3000 = vmax.f32 %v2923, 0.0
        %v3001 = vmax.f32 %v2992, 0.0
        %3002 = vrot.lane.b32.xlu0 %v2995, 127
        %v3003 = vpop.permute.xlu0 %3002
        %3004 = vrot.lane.b32.xlu0 %v2996, 127
        %v3005 = vpop.permute.xlu0 %3004
        %3006 = vrot.lane.b32.xlu0 %v2997, 127
        %v3007 = vpop.permute.xlu0 %3006
        %3008 = vrot.lane.b32.xlu0 %v2998, 127
        %v3009 = vpop.permute.xlu0 %3008
        %3010 = vrot.lane.b32.xlu0 %v2999, 127
        %v3011 = vpop.permute.xlu0 %3010
        %3012 = vrot.lane.b32.xlu0 %v3000, 127
        %v3013 = vpop.permute.xlu0 %3012
        %3014 = vrot.lane.b32.xlu0 %v3001, 127
        %v3015 = vpop.permute.xlu0 %3014
        %v3016 = vsel %vm1158, %v3013, %v3015
        %v3017 = vsel %vm1158, %v3011, %v3013
        %v3018 = vsel %vm1158, %v3009, %v3011
        %v3019 = vsel %vm1158, %v3007, %v3009
        %v3020 = vsel %vm1158, %v3005, %v3007
        %v3021 = vsel %vm1158, %v3003, %v3005
        %v3022 = vsel %vm1158, %v3015, %v3003
        %3023 = vrot.lane.b32.xlu0 %v2995, 100
        %v3024 = vpop.permute.xlu0 %3023
        %3025 = vrot.lane.b32.xlu0 %v2996, 100
        %v3026 = vpop.permute.xlu0 %3025
        %3027 = vrot.lane.b32.xlu0 %v2997, 100
        %v3028 = vpop.permute.xlu0 %3027
        %3029 = vrot.lane.b32.xlu0 %v2998, 100
        %v3030 = vpop.permute.xlu0 %3029
        %3031 = vrot.lane.b32.xlu0 %v2999, 100
        %v3032 = vpop.permute.xlu0 %3031
        %3033 = vrot.lane.b32.xlu0 %v3000, 100
        %v3034 = vpop.permute.xlu0 %3033
        %3035 = vrot.lane.b32.xlu0 %v3001, 100
        %v3036 = vpop.permute.xlu0 %3035
        %v3037 = vsel %vm1414, %v3034, %v3036
        %v3038 = vsel %vm1414, %v3032, %v3034
        %v3039 = vsel %vm1414, %v3030, %v3032
        %v3040 = vsel %vm1414, %v3028, %v3030
        %v3041 = vsel %vm1414, %v3026, %v3028
        %v3042 = vsel %vm1414, %v3024, %v3026
        %v3043 = vsel %vm1414, %v3036, %v3024
        %3044 = vrot.lane.b32.xlu0 %v2995, 99
        %v3045 = vpop.permute.xlu0 %3044
        %3046 = vrot.lane.b32.xlu0 %v2996, 99
        %v3047 = vpop.permute.xlu0 %3046
        %3048 = vrot.lane.b32.xlu0 %v2997, 99
        %v3049 = vpop.permute.xlu0 %3048
        %3050 = vrot.lane.b32.xlu0 %v2998, 99
        %v3051 = vpop.permute.xlu0 %3050
        %3052 = vrot.lane.b32.xlu0 %v2999, 99
        %v3053 = vpop.permute.xlu0 %3052
        %3054 = vrot.lane.b32.xlu0 %v3000, 99
        %v3055 = vpop.permute.xlu0 %3054
        %3056 = vrot.lane.b32.xlu0 %v3001, 99
        %v3057 = vpop.permute.xlu0 %3056
        %v3058 = vsel %vm1542, %v3055, %v3057
        %v3059 = vsel %vm1542, %v3053, %v3055
        %v3060 = vsel %vm1542, %v3051, %v3053
        %v3061 = vsel %vm1542, %v3049, %v3051
        %v3062 = vsel %vm1542, %v3047, %v3049
        %v3063 = vsel %vm1542, %v3045, %v3047
        %v3064 = vsel %vm1542, %v3057, %v3045
        %v3065 = vmax.f32 %v2995, %v3021
        %v3066 = vmax.f32 %v2996, %v3020
        %v3067 = vmax.f32 %v2997, %v3019
        %v3068 = vmax.f32 %v2998, %v3018
        %v3069 = vmax.f32 %v2999, %v3017
        %v3070 = vmax.f32 %v3000, %v3016
        %v3071 = vmax.f32 %v3001, %v3022
        %v3072 = vmax.f32 %v3042, %v3063
        %v3073 = vmax.f32 %v3041, %v3062
        %v3074 = vmax.f32 %v3040, %v3061
        %v3075 = vmax.f32 %v3039, %v3060
        %v3076 = vmax.f32 %v3038, %v3059
        %v3077 = vmax.f32 %v3037, %v3058
        %v3078 = vmax.f32 %v3043, %v3064
        %v3079 = vmax.f32 %v3065, %v3072
        %v3080 = vmax.f32 %v3066, %v3073
        %v3081 = vmax.f32 %v3067, %v3074
        %v3082 = vmax.f32 %v3068, %v3075
        %v3083 = vmax.f32 %v3069, %v3076
        %v3084 = vmax.f32 %v3070, %v3077
        %v3085 = vmax.f32 %v3071, %v3078
        %v3086 = vld [vmem:[#allocation12] sm:$0xff]
        %v3087 = vld [vmem:[#allocation12 + $0x8] sm:$0xff]
        %v3088 = vld [vmem:[#allocation12 + $0x10] sm:$0xff]
        %v3089 = vld [vmem:[#allocation12 + $0x18] sm:$0xff]
        %v3090 = vld [vmem:[#allocation12 + $0x20] sm:$0xff]
        %v3091 = vld [vmem:[#allocation12 + $0x28] sm:$0xff]
        %v3092 = vld [vmem:[#allocation12 + $0x30] sm:$0xff]
        %v3093 = vld [vmem:[#allocation12 + $0x38] sm:$0xff]
        %v3094 = vld [vmem:[#allocation12 + $0x40] sm:$0xff]
        %v3095 = vld [vmem:[#allocation12 + $0x48] sm:$0xff]
        %v3096 = vld [vmem:[#allocation12 + $0x50] sm:$0xff]
        %v3097 = vld [vmem:[#allocation12 + $0x58] sm:$0xff]
        %v3098 = vld [vmem:[#allocation12 + $0x60] sm:$0xff]
        %v3099 = vld [vmem:[#allocation12 + $0x68] sm:$0xff]
        %v3100 = vld [vmem:[#allocation12 + $0x70] sm:$0xff]
        %v3101 = vld [vmem:[#allocation12 + $0x78] sm:$0xff]
        %v3102 = vld [vmem:[#allocation12 + $0x80] sm:$0xff]
        %v3103 = vld [vmem:[#allocation12 + $0x88] sm:$0xff]
        %v3104 = vld [vmem:[#allocation12 + $0x90] sm:$0xff]
        %v3105 = vld [vmem:[#allocation12 + $0x98] sm:$0xff]
        %v3106 = vld [vmem:[#allocation12 + $0xa0] sm:$0xff]
        %v3107 = vld [vmem:[#allocation12 + $0xa8] sm:$0xff]
        %v3108 = vld [vmem:[#allocation12 + $0xb0] sm:$0xff]
        %v3109 = vld [vmem:[#allocation12 + $0xb8] sm:$0xff]
        %v3110 = vld [vmem:[#allocation12 + $0xc0] sm:$0xff]
        %v3111 = vld [vmem:[#allocation12 + $0xc8] sm:$0xff]
        %v3112 = vld [vmem:[#allocation12 + $0xd0] sm:$0xff]
        %v3113 = vld [vmem:[#allocation12 + $0xd8] sm:$0xff]
        %v3114 = vld [vmem:[#allocation12 + $0xe0] sm:$0xff]
        %v3115 = vld [vmem:[#allocation12 + $0xe8] sm:$0xff]
        %v3116 = vld [vmem:[#allocation12 + $0xf0] sm:$0xff]
        %v3117 = vld [vmem:[#allocation12 + $0xf8] sm:$0xff]
        %v3118 = vld [vmem:[#allocation12 + $0x100] sm:$0xff]
        %v3119 = vld [vmem:[#allocation12 + $0x108] sm:$0xff]
        %v3120 = vld [vmem:[#allocation12 + $0x110] sm:$0xff]
        %v3121 = vld [vmem:[#allocation12 + $0x118] sm:$0xff]
        %v3122 = vld [vmem:[#allocation12 + $0x120] sm:$0xff]
        %v3123 = vld [vmem:[#allocation12 + $0x128] sm:$0xff]
        %v3124 = vld [vmem:[#allocation12 + $0x130] sm:$0xff]
        %v3125 = vld [vmem:[#allocation12 + $0x138] sm:$0xff]
        %v3126 = vld [vmem:[#allocation12 + $0x140] sm:$0xff]
        %v3127 = vld [vmem:[#allocation12 + $0x148] sm:$0xff]
        %v3128 = vld [vmem:[#allocation12 + $0x150] sm:$0xff]
        %v3129 = vld [vmem:[#allocation12 + $0x158] sm:$0xff]
        %v3130 = vld [vmem:[#allocation12 + $0x160] sm:$0xff]
        %v3131 = vld [vmem:[#allocation12 + $0x168] sm:$0xff]
        %v3132 = vld [vmem:[#allocation12 + $0x170] sm:$0xff]
        %v3133 = vld [vmem:[#allocation12 + $0x178] sm:$0xff]
        %v3134 = vld [vmem:[#allocation12 + $0x180] sm:$0xff]
        %v3135 = vld [vmem:[#allocation12 + $0x188] sm:$0xff]
        %v3136 = vld [vmem:[#allocation12 + $0x190] sm:$0xff]
        %v3137 = vld [vmem:[#allocation12 + $0x198] sm:$0xff]
        %v3138 = vld [vmem:[#allocation12 + $0x1a0] sm:$0xff]
        %v3139 = vld [vmem:[#allocation12 + $0x1a8] sm:$0xff]
        %v3140 = vld [vmem:[#allocation12 + $0x1b0] sm:$0xff]
        %v3141 = vld [vmem:[#allocation12 + $0x1b8] sm:$0xff]
        %v3142 = vld [vmem:[#allocation12 + $0x1c0] sm:$0xff]
        %v3143 = vld [vmem:[#allocation12 + $0x1c8] sm:$0xff]
        %v3144 = vld [vmem:[#allocation12 + $0x1d0] sm:$0xff]
        %v3145 = vld [vmem:[#allocation12 + $0x1d8] sm:$0xff]
        %v3146 = vld [vmem:[#allocation12 + $0x1e0] sm:$0xff]
        %v3147 = vld [vmem:[#allocation12 + $0x1e8] sm:$0xff]
        %v3148 = vld [vmem:[#allocation12 + $0x1f0] sm:$0xff]
        %v3149 = vld [vmem:[#allocation12 + $0x1f8] sm:$0xff]
        %v3150 = vld [vmem:[#allocation12 + $0x200] sm:$0xff]
        %v3151 = vld [vmem:[#allocation12 + $0x208] sm:$0xff]
        %v3152 = vld [vmem:[#allocation12 + $0x210] sm:$0xff]
        %v3153 = vld [vmem:[#allocation12 + $0x218] sm:$0xff]
        %v3154 = vld [vmem:[#allocation12 + $0x220] sm:$0xff]
        %v3155 = vld [vmem:[#allocation12 + $0x228] sm:$0xff]
        %v3156 = vld [vmem:[#allocation12 + $0x230] sm:$0xff]
        %v3157 = vld [vmem:[#allocation12 + $0x238] sm:$0xff]
        %v3158 = vld [vmem:[#allocation12 + $0x240] sm:$0xff]
        %v3159 = vld [vmem:[#allocation12 + $0x248] sm:$0xff]
        %v3160 = vld [vmem:[#allocation12 + $0x250] sm:$0xff]
        %v3161 = vld [vmem:[#allocation12 + $0x258] sm:$0xff]
        %v3162 = vld [vmem:[#allocation12 + $0x260] sm:$0xff]
        %v3163 = vld [vmem:[#allocation12 + $0x268] sm:$0xff]
        %v3164 = vld [vmem:[#allocation12 + $0x270] sm:$0xff]
        %v3165 = vld [vmem:[#allocation12 + $0x278] sm:$0xff]
        %v3166 = vld [vmem:[#allocation12 + $0x280] sm:$0xff]
        %v3167 = vld [vmem:[#allocation12 + $0x288] sm:$0xff]
        %v3168 = vld [vmem:[#allocation12 + $0x290] sm:$0xff]
        %v3169 = vld [vmem:[#allocation12 + $0x298] sm:$0xff]
        %v3170 = vld [vmem:[#allocation12 + $0x2a0] sm:$0xff]
        %v3171 = vld [vmem:[#allocation12 + $0x2a8] sm:$0xff]
        %v3172 = vld [vmem:[#allocation12 + $0x2b0] sm:$0xff]
        %v3173 = vld [vmem:[#allocation12 + $0x2b8] sm:$0xff]
        %v3174 = vld [vmem:[#allocation12 + $0x2c0] sm:$0xff]
        %v3175 = vld [vmem:[#allocation12 + $0x2c8] sm:$0xff]
        %v3176 = vld [vmem:[#allocation12 + $0x2d0] sm:$0xff]
        %v3177 = vld [vmem:[#allocation12 + $0x2d8] sm:$0xff]
        %v3178 = vld [vmem:[#allocation12 + $0x2e0] sm:$0xff]
        %v3179 = vld [vmem:[#allocation12 + $0x2e8] sm:$0xff]
        %v3180 = vld [vmem:[#allocation12 + $0x2f0] sm:$0xff]
        %v3181 = vld [vmem:[#allocation12 + $0x2f8] sm:$0xff]
        %v3182 = vld [vmem:[#allocation12 + $0x300] sm:$0xff]
        %v3183 = vld [vmem:[#allocation12 + $0x308] sm:$0xff]
        %v3184 = vld [vmem:[#allocation12 + $0x310] sm:$0xff]
        %v3185 = vld [vmem:[#allocation12 + $0x318] sm:$0xff]
        %v3186 = vld [vmem:[#allocation12 + $0x320] sm:$0xff]
        %v3187 = vld [vmem:[#allocation12 + $0x328] sm:$0xff]
        %v3188 = vld [vmem:[#allocation12 + $0x330] sm:$0xff]
        %v3189 = vld [vmem:[#allocation12 + $0x338] sm:$0xff]
        %v3190 = vld [vmem:[#allocation12 + $0x340] sm:$0xff]
        %v3191 = vld [vmem:[#allocation12 + $0x348] sm:$0xff]
        %v3192 = vld [vmem:[#allocation12 + $0x350] sm:$0xff]
        %v3193 = vld [vmem:[#allocation12 + $0x358] sm:$0xff]
        %v3194 = vld [vmem:[#allocation12 + $0x360] sm:$0xff]
        %v3195 = vld [vmem:[#allocation12 + $0x368] sm:$0xff]
        %v3196 = vld [vmem:[#allocation12 + $0x370] sm:$0xff]
        %v3197 = vld [vmem:[#allocation12 + $0x378] sm:$0xff]
        %v3198 = vld [vmem:[#allocation12 + $0x380] sm:$0xff]
        %v3199 = vld [vmem:[#allocation12 + $0x388] sm:$0xff]
        %v3200 = vld [vmem:[#allocation12 + $0x390] sm:$0xff]
        %v3201 = vld [vmem:[#allocation12 + $0x398] sm:$0xff]
        %v3202 = vld [vmem:[#allocation12 + $0x3a0] sm:$0xff]
        %v3203 = vld [vmem:[#allocation12 + $0x3a8] sm:$0xff]
        %v3204 = vld [vmem:[#allocation12 + $0x3b0] sm:$0xff]
        %v3205 = vld [vmem:[#allocation12 + $0x3b8] sm:$0xff]
        %v3206 = vld [vmem:[#allocation12 + $0x3c0] sm:$0xff]
        %v3207 = vld [vmem:[#allocation12 + $0x3c8] sm:$0xff]
        %v3208 = vld [vmem:[#allocation12 + $0x3d0] sm:$0xff]
        %v3209 = vld [vmem:[#allocation12 + $0x3d8] sm:$0xff]
        %v3210 = vld [vmem:[#allocation12 + $0x3e0] sm:$0xff]
        %v3211 = vld [vmem:[#allocation12 + $0x3e8] sm:$0xff]
        %v3212 = vld [vmem:[#allocation12 + $0x3f0] sm:$0xff]
        %v3213 = vld [vmem:[#allocation12 + $0x3f8] sm:$0xff]
        %v3214 = vld [vmem:[#allocation12 + $0x400] sm:$0xff]
        %v3215 = vld [vmem:[#allocation12 + $0x408] sm:$0xff]
        %v3216 = vld [vmem:[#allocation12 + $0x410] sm:$0xff]
        %v3217 = vld [vmem:[#allocation12 + $0x418] sm:$0xff]
        %v3218 = vld [vmem:[#allocation12 + $0x420] sm:$0xff]
        %v3219 = vld [vmem:[#allocation12 + $0x428] sm:$0xff]
        %v3220 = vld [vmem:[#allocation12 + $0x430] sm:$0xff]
        %v3221 = vld [vmem:[#allocation12 + $0x438] sm:$0xff]
        %v3222 = vld [vmem:[#allocation12 + $0x440] sm:$0xff]
        %v3223 = vld [vmem:[#allocation12 + $0x448] sm:$0xff]
        %v3224 = vld [vmem:[#allocation12 + $0x450] sm:$0xff]
        %v3225 = vld [vmem:[#allocation12 + $0x458] sm:$0xff]
        %v3226 = vld [vmem:[#allocation12 + $0x460] sm:$0xff]
        %v3227 = vld [vmem:[#allocation12 + $0x468] sm:$0xff]
        %v3228 = vld [vmem:[#allocation12 + $0x470] sm:$0xff]
        %v3229 = vld [vmem:[#allocation12 + $0x478] sm:$0xff]
        %v3230 = vld [vmem:[#allocation12 + $0x480] sm:$0xff]
        %v3231 = vld [vmem:[#allocation12 + $0x488] sm:$0xff]
        %v3232 = vld [vmem:[#allocation12 + $0x490] sm:$0xff]
        %v3233 = vld [vmem:[#allocation12 + $0x498] sm:$0xff]
        %v3234 = vld [vmem:[#allocation12 + $0x4a0] sm:$0xff]
        %v3235 = vld [vmem:[#allocation12 + $0x4a8] sm:$0xff]
        %v3236 = vld [vmem:[#allocation12 + $0x4b0] sm:$0xff]
        %v3237 = vld [vmem:[#allocation12 + $0x4b8] sm:$0xff]
        %v3238 = vld [vmem:[#allocation12 + $0x4c0] sm:$0xff]
        %v3239 = vld [vmem:[#allocation12 + $0x4c8] sm:$0xff]
        %v3240 = vld [vmem:[#allocation12 + $0x4d0] sm:$0xff]
        %v3241 = vld [vmem:[#allocation12 + $0x4d8] sm:$0xff]
        %v3242 = vld [vmem:[#allocation12 + $0x4e0] sm:$0xff]
        %v3243 = vld [vmem:[#allocation12 + $0x4e8] sm:$0xff]
        %v3244 = vld [vmem:[#allocation12 + $0x4f0] sm:$0xff]
        %v3245 = vld [vmem:[#allocation12 + $0x4f8] sm:$0xff]
        %v3246 = vld [vmem:[#allocation12 + $0x500] sm:$0xff]
        %v3247 = vld [vmem:[#allocation12 + $0x508] sm:$0xff]
        %v3248 = vld [vmem:[#allocation12 + $0x510] sm:$0xff]
        %v3249 = vld [vmem:[#allocation12 + $0x518] sm:$0xff]
        %v3250 = vld [vmem:[#allocation12 + $0x520] sm:$0xff]
        %v3251 = vld [vmem:[#allocation12 + $0x528] sm:$0xff]
        %v3252 = vld [vmem:[#allocation12 + $0x530] sm:$0xff]
        %v3253 = vld [vmem:[#allocation12 + $0x538] sm:$0xff]
        %v3254 = vld [vmem:[#allocation12 + $0x540] sm:$0xff]
        %v3255 = vld [vmem:[#allocation12 + $0x548] sm:$0xff]
        %v3256 = vld [vmem:[#allocation12 + $0x550] sm:$0xff]
        %v3257 = vld [vmem:[#allocation12 + $0x558] sm:$0xff]
        %v3258 = vld [vmem:[#allocation12 + $0x560] sm:$0xff]
        %v3259 = vld [vmem:[#allocation12 + $0x568] sm:$0xff]
        %v3260 = vld [vmem:[#allocation12 + $0x570] sm:$0xff]
        %v3261 = vld [vmem:[#allocation12 + $0x578] sm:$0xff]
        %v3262 = vld [vmem:[#allocation12 + $0x580] sm:$0xff]
        %v3263 = vld [vmem:[#allocation12 + $0x588] sm:$0xff]
        %v3264 = vld [vmem:[#allocation12 + $0x590] sm:$0xff]
        %v3265 = vld [vmem:[#allocation12 + $0x598] sm:$0xff]
        %v3266 = vld [vmem:[#allocation12 + $0x5a0] sm:$0xff]
        %v3267 = vld [vmem:[#allocation12 + $0x5a8] sm:$0xff]
        %v3268 = vld [vmem:[#allocation12 + $0x5b0] sm:$0xff]
        %v3269 = vld [vmem:[#allocation12 + $0x5b8] sm:$0xff]
        %v3270 = vld [vmem:[#allocation12 + $0x5c0] sm:$0xff]
        %v3271 = vld [vmem:[#allocation12 + $0x5c8] sm:$0xff]
        %v3272 = vld [vmem:[#allocation12 + $0x5d0] sm:$0xff]
        %v3273 = vld [vmem:[#allocation12 + $0x5d8] sm:$0xff]
        %v3274 = vld [vmem:[#allocation12 + $0x5e0] sm:$0xff]
        %v3275 = vld [vmem:[#allocation12 + $0x5e8] sm:$0xff]
        %v3276 = vld [vmem:[#allocation12 + $0x5f0] sm:$0xff]
        %v3277 = vld [vmem:[#allocation12 + $0x5f8] sm:$0xff]
        %v3278 = vld [vmem:[#allocation12 + $0x600] sm:$0xff]
        %v3279 = vld [vmem:[#allocation12 + $0x608] sm:$0xff]
        %v3280 = vld [vmem:[#allocation12 + $0x610] sm:$0xff]
        %v3281 = vld [vmem:[#allocation12 + $0x618] sm:$0xff]
        %v3282 = vld [vmem:[#allocation12 + $0x620] sm:$0xff]
        %v3283 = vld [vmem:[#allocation12 + $0x628] sm:$0xff]
        %v3284 = vld [vmem:[#allocation12 + $0x630] sm:$0xff]
        %v3285 = vld [vmem:[#allocation12 + $0x638] sm:$0xff]
        %v3286 = vld [vmem:[#allocation12 + $0x640] sm:$0xff]
        %v3287 = vld [vmem:[#allocation12 + $0x648] sm:$0xff]
        %v3288 = vld [vmem:[#allocation12 + $0x650] sm:$0xff]
        %v3289 = vld [vmem:[#allocation12 + $0x658] sm:$0xff]
        %v3290 = vld [vmem:[#allocation12 + $0x660] sm:$0xff]
        %v3291 = vld [vmem:[#allocation12 + $0x668] sm:$0xff]
        %v3292 = vld [vmem:[#allocation12 + $0x670] sm:$0xff]
        %v3293 = vld [vmem:[#allocation12 + $0x678] sm:$0xff]
        %v3294 = vld [vmem:[#allocation12 + $0x680] sm:$0xff]
        %v3295 = vld [vmem:[#allocation12 + $0x688] sm:$0xff]
        %v3296 = vld [vmem:[#allocation12 + $0x690] sm:$0xff]
        %v3297 = vld [vmem:[#allocation12 + $0x698] sm:$0xff]
        %v3298 = vld [vmem:[#allocation12 + $0x6a0] sm:$0xff]
        %v3299 = vld [vmem:[#allocation12 + $0x6a8] sm:$0xff]
        %v3300 = vld [vmem:[#allocation12 + $0x6b0] sm:$0xff]
        %v3301 = vld [vmem:[#allocation12 + $0x6b8] sm:$0xff]
        %v3302 = vld [vmem:[#allocation12 + $0x6c0] sm:$0xff]
        %v3303 = vld [vmem:[#allocation12 + $0x6c8] sm:$0xff]
        %v3304 = vld [vmem:[#allocation12 + $0x6d0] sm:$0xff]
        %v3305 = vld [vmem:[#allocation12 + $0x6d8] sm:$0xff]
        %v3306 = vld [vmem:[#allocation12 + $0x6e0] sm:$0xff]
        %v3307 = vld [vmem:[#allocation12 + $0x6e8] sm:$0xff]
        %v3308 = vld [vmem:[#allocation12 + $0x6f0] sm:$0xff]
        %v3309 = vld [vmem:[#allocation12 + $0x6f8] sm:$0xff]
        %3310 = vmatprep.subr.mxu0 %v3087
        %3311 = vmatpush1.msra.mxu0 %v3086
        %3312 = vmatprep.subr.mxu0 %v3089
        %3313 = vmatpush1.msra.mxu0 %v3088
        %3314 = vmatprep.subr.mxu0 %v3091
        %3315 = vmatpush1.msra.mxu0 %v3090
        %3316 = vmatprep.subr.mxu0 %v3093
        %3317 = vmatpush1.msra.mxu0 %v3092
        %3318 = vmatprep.subr.mxu0 %v3095
        %3319 = vmatpush1.msra.mxu0 %v3094
        %3320 = vmatprep.subr.mxu0 %v3097
        %3321 = vmatpush1.msra.mxu0 %v3096
        %3322 = vmatprep.subr.mxu0 %v3099
        %3323 = vmatpush1.msra.mxu0 %v3098
        %3324 = vmatprep.subr.mxu0 %v3101
        %3325 = vmatpush1.msra.mxu0 %v3100
        %3326 = vmatprep.subr.mxu0 %v3103
        %3327 = vmatpush1.msra.mxu0 %v3102
        %3328 = vmatprep.subr.mxu0 %v3105
        %3329 = vmatpush1.msra.mxu0 %v3104
        %3330 = vmatprep.subr.mxu0 %v3107
        %3331 = vmatpush1.msra.mxu0 %v3106
        %3332 = vmatprep.subr.mxu0 %v3109
        %3333 = vmatpush1.msra.mxu0 %v3108
        %3334 = vmatprep.subr.mxu0 %v3111
        %3335 = vmatpush1.msra.mxu0 %v3110
        %3336 = vmatprep.subr.mxu0 %v3113
        %3337 = vmatpush1.msra.mxu0 %v3112
        %3338 = vmatprep.subr.mxu0 %v3115
        %3339 = vmatpush1.msra.mxu0 %v3114
        %3340 = vmatprep.subr.mxu0 %v3117
        %3341 = vmatpush1.msra.mxu0 %v3116
        %3342 = vmatprep.subr.mxu0 %v3119
        %3343 = vmatpush1.msra.mxu0 %v3118
        %3344 = vmatprep.subr.mxu0 %v3121
        %3345 = vmatpush1.msra.mxu0 %v3120
        %3346 = vmatprep.subr.mxu0 %v3123
        %3347 = vmatpush1.msra.mxu0 %v3122
        %3348 = vmatprep.subr.mxu0 %v3125
        %3349 = vmatpush1.msra.mxu0 %v3124
        %3350 = vmatprep.subr.mxu0 %v3127
        %3351 = vmatpush1.msra.mxu0 %v3126
        %3352 = vmatprep.subr.mxu0 %v3129
        %3353 = vmatpush1.msra.mxu0 %v3128
        %3354 = vmatprep.subr.mxu0 %v3131
        %3355 = vmatpush1.msra.mxu0 %v3130
        %3356 = vmatprep.subr.mxu0 %v3133
        %3357 = vmatpush1.msra.mxu0 %v3132
        %3358 = vmatprep.subr.mxu0 %v3135
        %3359 = vmatpush1.msra.mxu0 %v3134
        %3360 = vmatprep.subr.mxu0 %v3137
        %3361 = vmatpush1.msra.mxu0 %v3136
        %3362 = vmatprep.subr.mxu0 %v3139
        %3363 = vmatpush1.msra.mxu0 %v3138
        %3364 = vmatprep.subr.mxu0 %v3141
        %3365 = vmatpush1.msra.mxu0 %v3140
        %3366 = vmatprep.subr.mxu0 %v3143
        %3367 = vmatpush1.msra.mxu0 %v3142
        %3368 = vmatprep.subr.mxu0 %v3145
        %3369 = vmatpush1.msra.mxu0 %v3144
        %3370 = vmatprep.subr.mxu0 %v3147
        %3371 = vmatpush1.msra.mxu0 %v3146
        %3372 = vmatprep.subr.mxu0 %v3149
        %3373 = vmatpush1.msra.mxu0 %v3148
        %3374 = vmatprep.mubr.f32.mxu0 %v3080
        %3375 = vmatmul.mubr.f32.gmra.mrb[0].mxu0 %v3079
        %v3376 = vpop.f32.mrb[0].mxu0
        %v3377 = vadd.f32 0.0, %v3376
        %v3378 = vpop.f32.mrb[0].mxu0
        %v3379 = vadd.f32 0.0, %v3378
        %3380 = vdwg.mxu0
        %3381 = vmatprep.subr.mxu0 %v3151
        %3382 = vmatpush1.msra.mxu0 %v3150
        %3383 = vmatprep.subr.mxu0 %v3153
        %3384 = vmatpush1.msra.mxu0 %v3152
        %3385 = vmatprep.subr.mxu0 %v3155
        %3386 = vmatpush1.msra.mxu0 %v3154
        %3387 = vmatprep.subr.mxu0 %v3157
        %3388 = vmatpush1.msra.mxu0 %v3156
        %3389 = vmatprep.subr.mxu0 %v3159
        %3390 = vmatpush1.msra.mxu0 %v3158
        %3391 = vmatprep.subr.mxu0 %v3161
        %3392 = vmatpush1.msra.mxu0 %v3160
        %3393 = vmatprep.subr.mxu0 %v3163
        %3394 = vmatpush1.msra.mxu0 %v3162
        %3395 = vmatprep.subr.mxu0 %v3165
        %3396 = vmatpush1.msra.mxu0 %v3164
        %3397 = vmatprep.subr.mxu0 %v3167
        %3398 = vmatpush1.msra.mxu0 %v3166
        %3399 = vmatprep.subr.mxu0 %v3169
        %3400 = vmatpush1.msra.mxu0 %v3168
        %3401 = vmatprep.subr.mxu0 %v3171
        %3402 = vmatpush1.msra.mxu0 %v3170
        %3403 = vmatprep.subr.mxu0 %v3173
        %3404 = vmatpush1.msra.mxu0 %v3172
        %3405 = vmatprep.subr.mxu0 %v3175
        %3406 = vmatpush1.msra.mxu0 %v3174
        %3407 = vmatprep.subr.mxu0 %v3177
        %3408 = vmatpush1.msra.mxu0 %v3176
        %3409 = vmatprep.subr.mxu0 %v3179
        %3410 = vmatpush1.msra.mxu0 %v3178
        %3411 = vmatprep.subr.mxu0 %v3181
        %3412 = vmatpush1.msra.mxu0 %v3180
        %3413 = vmatprep.subr.mxu0 %v3183
        %3414 = vmatpush1.msra.mxu0 %v3182
        %3415 = vmatprep.subr.mxu0 %v3185
        %3416 = vmatpush1.msra.mxu0 %v3184
        %3417 = vmatprep.subr.mxu0 %v3187
        %3418 = vmatpush1.msra.mxu0 %v3186
        %3419 = vmatprep.subr.mxu0 %v3189
        %3420 = vmatpush1.msra.mxu0 %v3188
        %3421 = vmatprep.subr.mxu0 %v3191
        %3422 = vmatpush1.msra.mxu0 %v3190
        %3423 = vmatprep.subr.mxu0 %v3193
        %3424 = vmatpush1.msra.mxu0 %v3192
        %3425 = vmatprep.subr.mxu0 %v3195
        %3426 = vmatpush1.msra.mxu0 %v3194
        %3427 = vmatprep.subr.mxu0 %v3197
        %3428 = vmatpush1.msra.mxu0 %v3196
        %3429 = vmatprep.subr.mxu0 %v3199
        %3430 = vmatpush1.msra.mxu0 %v3198
        %3431 = vmatprep.subr.mxu0 %v3201
        %3432 = vmatpush1.msra.mxu0 %v3200
        %3433 = vmatprep.subr.mxu0 %v3203
        %3434 = vmatpush1.msra.mxu0 %v3202
        %3435 = vmatprep.subr.mxu0 %v3205
        %3436 = vmatpush1.msra.mxu0 %v3204
        %3437 = vmatprep.subr.mxu0 %v3207
        %3438 = vmatpush1.msra.mxu0 %v3206
        %3439 = vmatprep.subr.mxu0 %v3209
        %3440 = vmatpush1.msra.mxu0 %v3208
        %3441 = vmatprep.subr.mxu0 %v3211
        %3442 = vmatpush1.msra.mxu0 %v3210
        %3443 = vmatprep.subr.mxu0 %v3213
        %3444 = vmatpush1.msra.mxu0 %v3212
        %3445 = vmatprep.mubr.f32.mxu0 %v3082
        %3446 = vmatmul.mubr.f32.gmra.mrb[0].mxu0 %v3081
        %v3447 = vpop.f32.mrb[0].mxu0
        %v3448 = vadd.f32 %v3377, %v3447
        %v3449 = vpop.f32.mrb[0].mxu0
        %v3450 = vadd.f32 %v3379, %v3449
        %3451 = vdwg.mxu0
        %3452 = vmatprep.subr.mxu0 %v3215
        %3453 = vmatpush1.msra.mxu0 %v3214
        %3454 = vmatprep.subr.mxu0 %v3217
        %3455 = vmatpush1.msra.mxu0 %v3216
        %3456 = vmatprep.subr.mxu0 %v3219
        %3457 = vmatpush1.msra.mxu0 %v3218
        %3458 = vmatprep.subr.mxu0 %v3221
        %3459 = vmatpush1.msra.mxu0 %v3220
        %3460 = vmatprep.subr.mxu0 %v3223
        %3461 = vmatpush1.msra.mxu0 %v3222
        %3462 = vmatprep.subr.mxu0 %v3225
        %3463 = vmatpush1.msra.mxu0 %v3224
        %3464 = vmatprep.subr.mxu0 %v3227
        %3465 = vmatpush1.msra.mxu0 %v3226
        %3466 = vmatprep.subr.mxu0 %v3229
        %3467 = vmatpush1.msra.mxu0 %v3228
        %3468 = vmatprep.subr.mxu0 %v3231
        %3469 = vmatpush1.msra.mxu0 %v3230
        %3470 = vmatprep.subr.mxu0 %v3233
        %3471 = vmatpush1.msra.mxu0 %v3232
        %3472 = vmatprep.subr.mxu0 %v3235
        %3473 = vmatpush1.msra.mxu0 %v3234
        %3474 = vmatprep.subr.mxu0 %v3237
        %3475 = vmatpush1.msra.mxu0 %v3236
        %3476 = vmatprep.subr.mxu0 %v3239
        %3477 = vmatpush1.msra.mxu0 %v3238
        %3478 = vmatprep.subr.mxu0 %v3241
        %3479 = vmatpush1.msra.mxu0 %v3240
        %3480 = vmatprep.subr.mxu0 %v3243
        %3481 = vmatpush1.msra.mxu0 %v3242
        %3482 = vmatprep.subr.mxu0 %v3245
        %3483 = vmatpush1.msra.mxu0 %v3244
        %3484 = vmatprep.subr.mxu0 %v3247
        %3485 = vmatpush1.msra.mxu0 %v3246
        %3486 = vmatprep.subr.mxu0 %v3249
        %3487 = vmatpush1.msra.mxu0 %v3248
        %3488 = vmatprep.subr.mxu0 %v3251
        %3489 = vmatpush1.msra.mxu0 %v3250
        %3490 = vmatprep.subr.mxu0 %v3253
        %3491 = vmatpush1.msra.mxu0 %v3252
        %3492 = vmatprep.subr.mxu0 %v3255
        %3493 = vmatpush1.msra.mxu0 %v3254
        %3494 = vmatprep.subr.mxu0 %v3257
        %3495 = vmatpush1.msra.mxu0 %v3256
        %3496 = vmatprep.subr.mxu0 %v3259
        %3497 = vmatpush1.msra.mxu0 %v3258
        %3498 = vmatprep.subr.mxu0 %v3261
        %3499 = vmatpush1.msra.mxu0 %v3260
        %3500 = vmatprep.subr.mxu0 %v3263
        %3501 = vmatpush1.msra.mxu0 %v3262
        %3502 = vmatprep.subr.mxu0 %v3265
        %3503 = vmatpush1.msra.mxu0 %v3264
        %3504 = vmatprep.subr.mxu0 %v3267
        %3505 = vmatpush1.msra.mxu0 %v3266
        %3506 = vmatprep.subr.mxu0 %v3269
        %3507 = vmatpush1.msra.mxu0 %v3268
        %3508 = vmatprep.subr.mxu0 %v3271
        %3509 = vmatpush1.msra.mxu0 %v3270
        %3510 = vmatprep.subr.mxu0 %v3273
        %3511 = vmatpush1.msra.mxu0 %v3272
        %3512 = vmatprep.subr.mxu0 %v3275
        %3513 = vmatpush1.msra.mxu0 %v3274
        %3514 = vmatprep.subr.mxu0 %v3277
        %3515 = vmatpush1.msra.mxu0 %v3276
        %3516 = vmatprep.mubr.f32.mxu0 %v3084
        %3517 = vmatmul.mubr.f32.gmra.mrb[0].mxu0 %v3083
        %v3518 = vpop.f32.mrb[0].mxu0
        %v3519 = vadd.f32 %v3448, %v3518
        %v3520 = vpop.f32.mrb[0].mxu0
        %v3521 = vadd.f32 %v3450, %v3520
        %3522 = vdwg.mxu0
        %3523 = vmatprep.subr.mxu0 %v3279
        %3524 = vmatpush1.msra.mxu0 %v3278
        %3525 = vmatprep.subr.mxu0 %v3281
        %3526 = vmatpush1.msra.mxu0 %v3280
        %3527 = vmatprep.subr.mxu0 %v3283
        %3528 = vmatpush1.msra.mxu0 %v3282
        %3529 = vmatprep.subr.mxu0 %v3285
        %3530 = vmatpush1.msra.mxu0 %v3284
        %3531 = vmatprep.subr.mxu0 %v3287
        %3532 = vmatpush1.msra.mxu0 %v3286
        %3533 = vmatprep.subr.mxu0 %v3289
        %3534 = vmatpush1.msra.mxu0 %v3288
        %3535 = vmatprep.subr.mxu0 %v3291
        %3536 = vmatpush1.msra.mxu0 %v3290
        %3537 = vmatprep.subr.mxu0 %v3293
        %3538 = vmatpush1.msra.mxu0 %v3292
        %3539 = vmatprep.subr.mxu0 %v3295
        %3540 = vmatpush1.msra.mxu0 %v3294
        %3541 = vmatprep.subr.mxu0 %v3297
        %3542 = vmatpush1.msra.mxu0 %v3296
        %3543 = vmatprep.subr.mxu0 %v3299
        %3544 = vmatpush1.msra.mxu0 %v3298
        %3545 = vmatprep.subr.mxu0 %v3301
        %3546 = vmatpush1.msra.mxu0 %v3300
        %3547 = vmatprep.subr.mxu0 %v3303
        %3548 = vmatpush1.msra.mxu0 %v3302
        %3549 = vmatprep.subr.mxu0 %v3305
        %3550 = vmatpush1.msra.mxu0 %v3304
        %3551 = vmatprep.subr.mxu0 %v3307
        %3552 = vmatpush1.msra.mxu0 %v3306
        %3553 = vmatprep.subr.mxu0 %v3309
        %3554 = vmatpush1.msra.mxu0 %v3308
        %3555 = vmatprep.subr.mxu0 0.0
        %3556 = vmatpush1.msra.mxu0 0.0
        %3557 = vmatprep.subr.mxu0 0.0
        %3558 = vmatpush1.msra.mxu0 0.0
        %3559 = vmatprep.subr.mxu0 0.0
        %3560 = vmatpush1.msra.mxu0 0.0
        %3561 = vmatprep.subr.mxu0 0.0
        %3562 = vmatpush1.msra.mxu0 0.0
        %3563 = vmatprep.subr.mxu0 0.0
        %3564 = vmatpush1.msra.mxu0 0.0
        %3565 = vmatprep.subr.mxu0 0.0
        %3566 = vmatpush1.msra.mxu0 0.0
        %3567 = vmatprep.subr.mxu0 0.0
        %3568 = vmatpush1.msra.mxu0 0.0
        %3569 = vmatprep.subr.mxu0 0.0
        %3570 = vmatpush1.msra.mxu0 0.0
        %3571 = vmatprep.subr.mxu0 0.0
        %3572 = vmatpush1.msra.mxu0 0.0
        %3573 = vmatprep.subr.mxu0 0.0
        %3574 = vmatpush1.msra.mxu0 0.0
        %3575 = vmatprep.subr.mxu0 0.0
        %3576 = vmatpush1.msra.mxu0 0.0
        %3577 = vmatprep.subr.mxu0 0.0
        %3578 = vmatpush1.msra.mxu0 0.0
        %3579 = vmatprep.subr.mxu0 0.0
        %3580 = vmatpush1.msra.mxu0 0.0
        %3581 = vmatprep.subr.mxu0 0.0
        %3582 = vmatpush1.msra.mxu0 0.0
        %3583 = vmatprep.subr.mxu0 0.0
        %3584 = vmatpush1.msra.mxu0 0.0
        %3585 = vmatprep.subr.mxu0 0.0
        %3586 = vmatpush1.msra.mxu0 0.0
        %3587 = vmatprep.mubr.f32.mxu0 0.0
        %3588 = vmatmul.mubr.f32.gmra.mrb[0].mxu0 %v3085
        %v3589 = vpop.f32.mrb[0].mxu0
        %v3590 = vadd.f32 %v3519, %v3589
        %v3591 = vpop.f32.mrb[0].mxu0
        %v3592 = vadd.f32 %v3521, %v3591
        %3593 = vdwg.mxu0
        %3594 = vrot.lane.b32.xlu0 %v3590, 15
        %v3595 = vpop.permute.xlu0 %3594
        %3596 = vrot.lane.b32.xlu0 %v3592, 15
        %v3597 = vpop.permute.xlu0 %3596
        %vm3598 = vcmp.lt.s32.totalorder %v635, 15
        %v3599 = vsel %vm3598, %v3595, %v3597
        %v3600 = vsel %vm3598, %v3597, %v3595
        %v3601 = vld [vmem:[%s10] ss:$8 sm:$0x3]
        %v3603 = vlaneseq
        %v3604 = vshrl.u32 %v3603, 7
        %v3605 = vsub.s32 0, %v3604
        %v3606 = vrot.slane %v3601, %v3605
        %v3607 = vlaneseq
        %v3608 = vshrl.u32 %v3607, 7
        %v3609 = vsub.s32 1, %v3608
        %v3610 = vrot.slane %v3601, %v3609
        %v3613 = vmul.f32 %v3600, %v3606
        %v3614 = vmul.f32 %v3599, %v3610
        %3615 = vst [vmem:[#allocation2] sm:$0xff] %v3613
        %3616 = vst [vmem:[#allocation2 + $0x8] sm:$0xff] %v3614
        %3617 = vrot.lane.b32.xlu0 %v3590, 14
        %v3618 = vpop.permute.xlu0 %3617
        %3619 = vrot.lane.b32.xlu0 %v3592, 14
        %v3620 = vpop.permute.xlu0 %3619
        %vm3621 = vcmp.lt.s32.totalorder %v635, 14
        %v3622 = vsel %vm3621, %v3618, %v3620
        %v3623 = vsel %vm3621, %v3620, %v3618
        %s3624 = scalar_lea.vmem %s10, 1
        %v3625 = vld [vmem:[%s3624] ss:$8 sm:$0x3]
        %v3627 = vlaneseq
        %v3628 = vshrl.u32 %v3627, 7
        %v3629 = vsub.s32 0, %v3628
        %v3630 = vrot.slane %v3625, %v3629
        %v3631 = vlaneseq
        %v3632 = vshrl.u32 %v3631, 7
        %v3633 = vsub.s32 1, %v3632
        %v3634 = vrot.slane %v3625, %v3633
        %v3637 = vmul.f32 %v3623, %v3630
        %v3638 = vmul.f32 %v3622, %v3634
        %3639 = vst [vmem:[#allocation2 + $0x38] sm:$0xff] %v3637
        %3640 = vst [vmem:[#allocation2 + $0x40] sm:$0xff] %v3638
        %3641 = vrot.lane.b32.xlu0 %v3590, 13
        %v3642 = vpop.permute.xlu0 %3641
        %3643 = vrot.lane.b32.xlu0 %v3592, 13
        %v3644 = vpop.permute.xlu0 %3643
        %vm3645 = vcmp.lt.s32.totalorder %v635, 13
        %v3646 = vsel %vm3645, %v3642, %v3644
        %v3647 = vsel %vm3645, %v3644, %v3642
        %s3648 = scalar_lea.vmem %s10, 2
        %v3649 = vld [vmem:[%s3648] ss:$8 sm:$0x3]
        %v3651 = vlaneseq
        %v3652 = vshrl.u32 %v3651, 7
        %v3653 = vsub.s32 0, %v3652
        %v3654 = vrot.slane %v3649, %v3653
        %v3655 = vlaneseq
        %v3656 = vshrl.u32 %v3655, 7
        %v3657 = vsub.s32 1, %v3656
        %v3658 = vrot.slane %v3649, %v3657
        %v3661 = vmul.f32 %v3647, %v3654
        %v3662 = vmul.f32 %v3646, %v3658
        %3663 = vst [vmem:[#allocation2 + $0x70] sm:$0xff] %v3661
        %3664 = vst [vmem:[#allocation2 + $0x78] sm:$0xff] %v3662
        %3665 = vrot.lane.b32.xlu0 %v3590, 1
        %v3666 = vpop.permute.xlu0 %3665
        %3667 = vrot.lane.b32.xlu0 %v3592, 1
        %v3668 = vpop.permute.xlu0 %3667
        %v3669 = vsel %vm1022, %v3666, %v3668
        %v3670 = vsel %vm1022, %v3668, %v3666
        %s3671 = scalar_lea.vmem %s10, 3
        %v3672 = vld [vmem:[%s3671] ss:$8 sm:$0x3]
        %v3674 = vlaneseq
        %v3675 = vshrl.u32 %v3674, 7
        %v3676 = vsub.s32 0, %v3675
        %v3677 = vrot.slane %v3672, %v3676
        %v3678 = vlaneseq
        %v3679 = vshrl.u32 %v3678, 7
        %v3680 = vsub.s32 1, %v3679
        %v3681 = vrot.slane %v3672, %v3680
        %v3684 = vmul.f32 %v3670, %v3677
        %v3685 = vmul.f32 %v3669, %v3681
        %3686 = vst [vmem:[#allocation2 + $0xa8] sm:$0xff] %v3684
        %3687 = vst [vmem:[#allocation2 + $0xb0] sm:$0xff] %v3685
        %s3688 = scalar_lea.vmem %s10, 4
        %v3689 = vld [vmem:[%s3688] ss:$8 sm:$0x3]
        %v3691 = vlaneseq
        %v3692 = vshrl.u32 %v3691, 7
        %v3693 = vsub.s32 0, %v3692
        %v3694 = vrot.slane %v3689, %v3693
        %v3695 = vlaneseq
        %v3696 = vshrl.u32 %v3695, 7
        %v3697 = vsub.s32 1, %v3696
        %v3698 = vrot.slane %v3689, %v3697
        %v3701 = vmul.f32 %v3590, %v3694
        %v3702 = vmul.f32 %v3592, %v3698
        %3703 = vst [vmem:[#allocation2 + $0xe0] sm:$0xff] %v3701
        %3704 = vst [vmem:[#allocation2 + $0xe8] sm:$0xff] %v3702
        %3705 = vrot.lane.b32.xlu0 %v3590, 127
        %v3706 = vpop.permute.xlu0 %3705
        %3707 = vrot.lane.b32.xlu0 %v3592, 127
        %v3708 = vpop.permute.xlu0 %3707
        %v3709 = vsel %vm1158, %v3706, %v3708
        %v3710 = vsel %vm1158, %v3708, %v3706
        %s3711 = scalar_lea.vmem %s10, 5
        %v3712 = vld [vmem:[%s3711] ss:$8 sm:$0x3]
        %v3714 = vlaneseq
        %v3715 = vshrl.u32 %v3714, 7
        %v3716 = vsub.s32 0, %v3715
        %v3717 = vrot.slane %v3712, %v3716
        %v3718 = vlaneseq
        %v3719 = vshrl.u32 %v3718, 7
        %v3720 = vsub.s32 1, %v3719
        %v3721 = vrot.slane %v3712, %v3720
        %v3724 = vmul.f32 %v3709, %v3717
        %v3725 = vmul.f32 %v3710, %v3721
        %3726 = vst [vmem:[#allocation2 + $0x118] sm:$0xff] %v3724
        %3727 = vst [vmem:[#allocation2 + $0x120] sm:$0xff] %v3725
        %3728 = vrot.lane.b32.xlu0 %v3590, 115
        %v3729 = vpop.permute.xlu0 %3728
        %3730 = vrot.lane.b32.xlu0 %v3592, 115
        %v3731 = vpop.permute.xlu0 %3730
        %vm3732 = vcmp.lt.s32.totalorder %v635, 115
        %v3733 = vsel %vm3732, %v3729, %v3731
        %v3734 = vsel %vm3732, %v3731, %v3729
        %s3735 = scalar_lea.vmem %s10, 6
        %v3736 = vld [vmem:[%s3735] ss:$8 sm:$0x3]
        %v3738 = vlaneseq
        %v3739 = vshrl.u32 %v3738, 7
        %v3740 = vsub.s32 0, %v3739
        %v3741 = vrot.slane %v3736, %v3740
        %v3742 = vlaneseq
        %v3743 = vshrl.u32 %v3742, 7
        %v3744 = vsub.s32 1, %v3743
        %v3745 = vrot.slane %v3736, %v3744
        %v3748 = vmul.f32 %v3733, %v3741
        %v3749 = vmul.f32 %v3734, %v3745
        %3750 = vst [vmem:[#allocation2 + $0x150] sm:$0xff] %v3748
        %3751 = vst [vmem:[#allocation2 + $0x158] sm:$0xff] %v3749
        %3752 = vrot.lane.b32.xlu0 %v3590, 114
        %v3753 = vpop.permute.xlu0 %3752
        %3754 = vrot.lane.b32.xlu0 %v3592, 114
        %v3755 = vpop.permute.xlu0 %3754
        %vm3756 = vcmp.lt.s32.totalorder %v635, 114
        %v3757 = vsel %vm3756, %v3753, %v3755
        %v3758 = vsel %vm3756, %v3755, %v3753
        %s3759 = scalar_lea.vmem %s10, 7
        %v3760 = vld [vmem:[%s3759] ss:$8 sm:$0x3]
        %v3762 = vlaneseq
        %v3763 = vshrl.u32 %v3762, 7
        %v3764 = vsub.s32 0, %v3763
        %v3765 = vrot.slane %v3760, %v3764
        %v3766 = vlaneseq
        %v3767 = vshrl.u32 %v3766, 7
        %v3768 = vsub.s32 1, %v3767
        %v3769 = vrot.slane %v3760, %v3768
        %v3772 = vmul.f32 %v3757, %v3765
        %v3773 = vmul.f32 %v3758, %v3769
        %3774 = vst [vmem:[#allocation2 + $0x188] sm:$0xff] %v3772
        %3775 = vst [vmem:[#allocation2 + $0x190] sm:$0xff] %v3773
        %3776 = vrot.lane.b32.xlu0 %v3590, 113
        %v3777 = vpop.permute.xlu0 %3776
        %3778 = vrot.lane.b32.xlu0 %v3592, 113
        %v3779 = vpop.permute.xlu0 %3778
        %vm3780 = vcmp.lt.s32.totalorder %v635, 113
        %v3781 = vsel %vm3780, %v3777, %v3779
        %v3782 = vsel %vm3780, %v3779, %v3777
        %s3783 = scalar_lea.vmem %s10, 16
        %v3784 = vld [vmem:[%s3783] ss:$8 sm:$0x3]
        %v3786 = vlaneseq
        %v3787 = vshrl.u32 %v3786, 7
        %v3788 = vsub.s32 0, %v3787
        %v3789 = vrot.slane %v3784, %v3788
        %v3790 = vlaneseq
        %v3791 = vshrl.u32 %v3790, 7
        %v3792 = vsub.s32 1, %v3791
        %v3793 = vrot.slane %v3784, %v3792
        %v3796 = vmul.f32 %v3781, %v3789
        %v3797 = vmul.f32 %v3782, %v3793
        %3798 = vst [vmem:[#allocation2 + $0x1c0] sm:$0xff] %v3796
        %3799 = vst [vmem:[#allocation2 + $0x1c8] sm:$0xff] %v3797
        %v3800 = vld [vmem:[#allocation8] sm:$0xff]
        %v3801 = vld [vmem:[#allocation2] sm:$0xff]
        %v3802 = vld [vmem:[#allocation2 + $0x8] sm:$0xff]
        %v3803 = vld [vmem:[#allocation2 + $0x38] sm:$0xff]
        %v3804 = vld [vmem:[#allocation2 + $0x40] sm:$0xff]
        %v3805 = vld [vmem:[#allocation2 + $0x70] sm:$0xff]
        %v3806 = vld [vmem:[#allocation2 + $0x78] sm:$0xff]
        %v3807 = vld [vmem:[#allocation2 + $0xa8] sm:$0xff]
        %v3808 = vld [vmem:[#allocation2 + $0xb0] sm:$0xff]
        %v3809 = vld [vmem:[#allocation2 + $0xe0] sm:$0xff]
        %v3810 = vld [vmem:[#allocation2 + $0xe8] sm:$0xff]
        %v3811 = vld [vmem:[#allocation2 + $0x118] sm:$0xff]
        %v3812 = vld [vmem:[#allocation2 + $0x120] sm:$0xff]
        %v3813 = vld [vmem:[#allocation2 + $0x150] sm:$0xff]
        %v3814 = vld [vmem:[#allocation2 + $0x158] sm:$0xff]
        %v3815 = vld [vmem:[#allocation2 + $0x188] sm:$0xff]
        %v3816 = vld [vmem:[#allocation2 + $0x190] sm:$0xff]
        %v3817 = vld [vmem:[#allocation2 + $0x1c0] sm:$0xff]
        %v3818 = vld [vmem:[#allocation2 + $0x1c8] sm:$0xff]
        %v3819 = vld [vmem:[%s6] sm:$0xff]
        %3821 = vset.pattern.permute.xlu0 0
        %3822 = vperm.xlu0 %3821, %v3819
        %v3823 = vpop.permute.xlu0 %3822
        %v3826 = vsel %vm2708, %v3800, 0
        %3828 = vmatprep.subr.mxu0 %v3802
        %3829 = vmatpush1.msra.mxu0 %v3801
        %3830 = vmatprep.subr.mxu0 %v3804
        %3831 = vmatpush1.msra.mxu0 %v3803
        %3832 = vmatprep.subr.mxu0 %v3806
        %3833 = vmatpush1.msra.mxu0 %v3805
        %3834 = vmatprep.subr.mxu0 %v3808
        %3835 = vmatpush1.msra.mxu0 %v3807
        %3836 = vmatprep.subr.mxu0 %v3810
        %3837 = vmatpush1.msra.mxu0 %v3809
        %3838 = vmatprep.subr.mxu0 %v3812
        %3839 = vmatpush1.msra.mxu0 %v3811
        %3840 = vmatprep.subr.mxu0 %v3814
        %3841 = vmatpush1.msra.mxu0 %v3813
        %3842 = vmatprep.subr.mxu0 %v3816
        %3843 = vmatpush1.msra.mxu0 %v3815
        %3844 = vmatprep.subr.mxu0 %v3818
        %3845 = vmatpush1.msra.mxu0 %v3817
        %3846 = vmatprep.subr.mxu0 0.0
        %3847 = vmatpush1.msra.mxu0 0.0
        %3848 = vmatprep.subr.mxu0 0.0
        %3849 = vmatpush1.msra.mxu0 0.0
        %3850 = vmatprep.subr.mxu0 0.0
        %3851 = vmatpush1.msra.mxu0 0.0
        %3852 = vmatprep.subr.mxu0 0.0
        %3853 = vmatpush1.msra.mxu0 0.0
        %3854 = vmatprep.subr.mxu0 0.0
        %3855 = vmatpush1.msra.mxu0 0.0
        %3856 = vmatprep.subr.mxu0 0.0
        %3857 = vmatpush1.msra.mxu0 0.0
        %3858 = vmatprep.subr.mxu0 0.0
        %3859 = vmatpush1.msra.mxu0 0.0
        %3860 = vmatprep.subr.mxu0 0.0
        %3861 = vmatpush1.msra.mxu0 0.0
        %3862 = vmatprep.subr.mxu0 0.0
        %3863 = vmatpush1.msra.mxu0 0.0
        %3864 = vmatprep.subr.mxu0 0.0
        %3865 = vmatpush1.msra.mxu0 0.0
        %3866 = vmatprep.subr.mxu0 0.0
        %3867 = vmatpush1.msra.mxu0 0.0
        %3868 = vmatprep.subr.mxu0 0.0
        %3869 = vmatpush1.msra.mxu0 0.0
        %3870 = vmatprep.subr.mxu0 0.0
        %3871 = vmatpush1.msra.mxu0 0.0
        %3872 = vmatprep.subr.mxu0 0.0
        %3873 = vmatpush1.msra.mxu0 0.0
        %3874 = vmatprep.subr.mxu0 0.0
        %3875 = vmatpush1.msra.mxu0 0.0
        %3876 = vmatprep.subr.mxu0 0.0
        %3877 = vmatpush1.msra.mxu0 0.0
        %3878 = vmatprep.subr.mxu0 0.0
        %3879 = vmatpush1.msra.mxu0 0.0
        %3880 = vmatprep.subr.mxu0 0.0
        %3881 = vmatpush1.msra.mxu0 0.0
        %3882 = vmatprep.subr.mxu0 0.0
        %3883 = vmatpush1.msra.mxu0 0.0
        %3884 = vmatprep.subr.mxu0 0.0
        %3885 = vmatpush1.msra.mxu0 0.0
        %3886 = vmatprep.subr.mxu0 0.0
        %3887 = vmatpush1.msra.mxu0 0.0
        %3888 = vmatprep.subr.mxu0 0.0
        %3889 = vmatpush1.msra.mxu0 0.0
        %3890 = vmatprep.subr.mxu0 0.0
        %3891 = vmatpush1.msra.mxu0 0.0
        %3892 = vmatprep.mubr.f32.mxu0 0.0
        %3893 = vmatmul.mubr.f32.gmra.mrb[0].mxu0 %v3826
        %v3894 = vpop.f32.mrb[0].mxu0
        %v3895 = vadd.f32 %v3823, %v3894
        %v3896 = vpop.f32.mrb[0].mxu0
        %v3897 = vadd.f32 %v3823, %v3896
        %3898 = vdwg.mxu0
        %v3899 = vmax.f32 %v3895, 0.0
        %v3900 = vmax.f32 %v3897, 0.0
        %3901 = vrot.lane.b32.xlu0 %v3899, 15
        %v3902 = vpop.permute.xlu0 %3901
        %3903 = vrot.lane.b32.xlu0 %v3900, 15
        %v3904 = vpop.permute.xlu0 %3903
        %v3905 = vsel %vm3598, %v3902, %v3904
        %v3906 = vsel %vm3598, %v3904, %v3902
        %v3907 = vld [vmem:[%s10] ss:$8 sm:$0x3]
        %v3909 = vlaneseq
        %v3910 = vshrl.u32 %v3909, 7
        %v3911 = vsub.s32 0, %v3910
        %v3912 = vrot.slane %v3907, %v3911
        %v3913 = vlaneseq
        %v3914 = vshrl.u32 %v3913, 7
        %v3915 = vsub.s32 1, %v3914
        %v3916 = vrot.slane %v3907, %v3915
        %v3919 = vmul.f32 %v3906, %v3912
        %v3920 = vmul.f32 %v3905, %v3916
        %3921 = vst [vmem:[#allocation2] sm:$0xff] %v3919
        %3922 = vst [vmem:[#allocation2 + $0x8] sm:$0xff] %v3920
        %3923 = vrot.lane.b32.xlu0 %v3899, 14
        %v3924 = vpop.permute.xlu0 %3923
        %3925 = vrot.lane.b32.xlu0 %v3900, 14
        %v3926 = vpop.permute.xlu0 %3925
        %v3927 = vsel %vm3621, %v3924, %v3926
        %v3928 = vsel %vm3621, %v3926, %v3924
        %v3929 = vld [vmem:[%s3624] ss:$8 sm:$0x3]
        %v3931 = vlaneseq
        %v3932 = vshrl.u32 %v3931, 7
        %v3933 = vsub.s32 0, %v3932
        %v3934 = vrot.slane %v3929, %v3933
        %v3935 = vlaneseq
        %v3936 = vshrl.u32 %v3935, 7
        %v3937 = vsub.s32 1, %v3936
        %v3938 = vrot.slane %v3929, %v3937
        %v3941 = vmul.f32 %v3928, %v3934
        %v3942 = vmul.f32 %v3927, %v3938
        %3943 = vst [vmem:[#allocation2 + $0x38] sm:$0xff] %v3941
        %3944 = vst [vmem:[#allocation2 + $0x40] sm:$0xff] %v3942
        %3945 = vrot.lane.b32.xlu0 %v3899, 13
        %v3946 = vpop.permute.xlu0 %3945
        %3947 = vrot.lane.b32.xlu0 %v3900, 13
        %v3948 = vpop.permute.xlu0 %3947
        %v3949 = vsel %vm3645, %v3946, %v3948
        %v3950 = vsel %vm3645, %v3948, %v3946
        %v3951 = vld [vmem:[%s3648] ss:$8 sm:$0x3]
        %v3953 = vlaneseq
        %v3954 = vshrl.u32 %v3953, 7
        %v3955 = vsub.s32 0, %v3954
        %v3956 = vrot.slane %v3951, %v3955
        %v3957 = vlaneseq
        %v3958 = vshrl.u32 %v3957, 7
        %v3959 = vsub.s32 1, %v3958
        %v3960 = vrot.slane %v3951, %v3959
        %v3963 = vmul.f32 %v3950, %v3956
        %v3964 = vmul.f32 %v3949, %v3960
        %3965 = vst [vmem:[#allocation2 + $0x70] sm:$0xff] %v3963
        %3966 = vst [vmem:[#allocation2 + $0x78] sm:$0xff] %v3964
        %3967 = vrot.lane.b32.xlu0 %v3899, 1
        %v3968 = vpop.permute.xlu0 %3967
        %3969 = vrot.lane.b32.xlu0 %v3900, 1
        %v3970 = vpop.permute.xlu0 %3969
        %v3971 = vsel %vm1022, %v3968, %v3970
        %v3972 = vsel %vm1022, %v3970, %v3968
        %v3973 = vld [vmem:[%s3671] ss:$8 sm:$0x3]
        %v3975 = vlaneseq
        %v3976 = vshrl.u32 %v3975, 7
        %v3977 = vsub.s32 0, %v3976
        %v3978 = vrot.slane %v3973, %v3977
        %v3979 = vlaneseq
        %v3980 = vshrl.u32 %v3979, 7
        %v3981 = vsub.s32 1, %v3980
        %v3982 = vrot.slane %v3973, %v3981
        %v3985 = vmul.f32 %v3972, %v3978
        %v3986 = vmul.f32 %v3971, %v3982
        %3987 = vst [vmem:[#allocation2 + $0xa8] sm:$0xff] %v3985
        %3988 = vst [vmem:[#allocation2 + $0xb0] sm:$0xff] %v3986
        %v3989 = vld [vmem:[%s3688] ss:$8 sm:$0x3]
        %v3991 = vlaneseq
        %v3992 = vshrl.u32 %v3991, 7
        %v3993 = vsub.s32 0, %v3992
        %v3994 = vrot.slane %v3989, %v3993
        %v3995 = vlaneseq
        %v3996 = vshrl.u32 %v3995, 7
        %v3997 = vsub.s32 1, %v3996
        %v3998 = vrot.slane %v3989, %v3997
        %v4001 = vmul.f32 %v3899, %v3994
        %v4002 = vmul.f32 %v3900, %v3998
        %4003 = vst [vmem:[#allocation2 + $0xe0] sm:$0xff] %v4001
        %4004 = vst [vmem:[#allocation2 + $0xe8] sm:$0xff] %v4002
        %4005 = vrot.lane.b32.xlu0 %v3899, 127
        %v4006 = vpop.permute.xlu0 %4005
        %4007 = vrot.lane.b32.xlu0 %v3900, 127
        %v4008 = vpop.permute.xlu0 %4007
        %v4009 = vsel %vm1158, %v4006, %v4008
        %v4010 = vsel %vm1158, %v4008, %v4006
        %v4011 = vld [vmem:[%s3711] ss:$8 sm:$0x3]
        %v4013 = vlaneseq
        %v4014 = vshrl.u32 %v4013, 7
        %v4015 = vsub.s32 0, %v4014
        %v4016 = vrot.slane %v4011, %v4015
        %v4017 = vlaneseq
        %v4018 = vshrl.u32 %v4017, 7
        %v4019 = vsub.s32 1, %v4018
        %v4020 = vrot.slane %v4011, %v4019
        %v4023 = vmul.f32 %v4009, %v4016
        %v4024 = vmul.f32 %v4010, %v4020
        %4025 = vst [vmem:[#allocation2 + $0x118] sm:$0xff] %v4023
        %4026 = vst [vmem:[#allocation2 + $0x120] sm:$0xff] %v4024
        %4027 = vrot.lane.b32.xlu0 %v3899, 115
        %v4028 = vpop.permute.xlu0 %4027
        %4029 = vrot.lane.b32.xlu0 %v3900, 115
        %v4030 = vpop.permute.xlu0 %4029
        %v4031 = vsel %vm3732, %v4028, %v4030
        %v4032 = vsel %vm3732, %v4030, %v4028
        %v4033 = vld [vmem:[%s3735] ss:$8 sm:$0x3]
        %v4035 = vlaneseq
        %v4036 = vshrl.u32 %v4035, 7
        %v4037 = vsub.s32 0, %v4036
        %v4038 = vrot.slane %v4033, %v4037
        %v4039 = vlaneseq
        %v4040 = vshrl.u32 %v4039, 7
        %v4041 = vsub.s32 1, %v4040
        %v4042 = vrot.slane %v4033, %v4041
        %v4045 = vmul.f32 %v4031, %v4038
        %v4046 = vmul.f32 %v4032, %v4042
        %4047 = vst [vmem:[#allocation2 + $0x150] sm:$0xff] %v4045
        %4048 = vst [vmem:[#allocation2 + $0x158] sm:$0xff] %v4046
        %4049 = vrot.lane.b32.xlu0 %v3899, 114
        %v4050 = vpop.permute.xlu0 %4049
        %4051 = vrot.lane.b32.xlu0 %v3900, 114
        %v4052 = vpop.permute.xlu0 %4051
        %v4053 = vsel %vm3756, %v4050, %v4052
        %v4054 = vsel %vm3756, %v4052, %v4050
        %v4055 = vld [vmem:[%s3759] ss:$8 sm:$0x3]
        %v4057 = vlaneseq
        %v4058 = vshrl.u32 %v4057, 7
        %v4059 = vsub.s32 0, %v4058
        %v4060 = vrot.slane %v4055, %v4059
        %v4061 = vlaneseq
        %v4062 = vshrl.u32 %v4061, 7
        %v4063 = vsub.s32 1, %v4062
        %v4064 = vrot.slane %v4055, %v4063
        %v4067 = vmul.f32 %v4053, %v4060
        %v4068 = vmul.f32 %v4054, %v4064
        %4069 = vst [vmem:[#allocation2 + $0x188] sm:$0xff] %v4067
        %4070 = vst [vmem:[#allocation2 + $0x190] sm:$0xff] %v4068
        %4071 = vrot.lane.b32.xlu0 %v3899, 113
        %v4072 = vpop.permute.xlu0 %4071
        %4073 = vrot.lane.b32.xlu0 %v3900, 113
        %v4074 = vpop.permute.xlu0 %4073
        %v4075 = vsel %vm3780, %v4072, %v4074
        %v4076 = vsel %vm3780, %v4074, %v4072
        %v4077 = vld [vmem:[%s3783] ss:$8 sm:$0x3]
        %v4079 = vlaneseq
        %v4080 = vshrl.u32 %v4079, 7
        %v4081 = vsub.s32 0, %v4080
        %v4082 = vrot.slane %v4077, %v4081
        %v4083 = vlaneseq
        %v4084 = vshrl.u32 %v4083, 7
        %v4085 = vsub.s32 1, %v4084
        %v4086 = vrot.slane %v4077, %v4085
        %v4089 = vmul.f32 %v4075, %v4082
        %v4090 = vmul.f32 %v4076, %v4086
        %4091 = vst [vmem:[#allocation2 + $0x1c0] sm:$0xff] %v4089
        %4092 = vst [vmem:[#allocation2 + $0x1c8] sm:$0xff] %v4090
        %v4093 = vld [vmem:[#allocation9] sm:$0xff]
        %v4094 = vld [vmem:[#allocation2] sm:$0xff]
        %v4095 = vld [vmem:[#allocation2 + $0x8] sm:$0xff]
        %v4096 = vld [vmem:[#allocation2 + $0x38] sm:$0xff]
        %v4097 = vld [vmem:[#allocation2 + $0x40] sm:$0xff]
        %v4098 = vld [vmem:[#allocation2 + $0x70] sm:$0xff]
        %v4099 = vld [vmem:[#allocation2 + $0x78] sm:$0xff]
        %v4100 = vld [vmem:[#allocation2 + $0xa8] sm:$0xff]
        %v4101 = vld [vmem:[#allocation2 + $0xb0] sm:$0xff]
        %v4102 = vld [vmem:[#allocation2 + $0xe0] sm:$0xff]
        %v4103 = vld [vmem:[#allocation2 + $0xe8] sm:$0xff]
        %v4104 = vld [vmem:[#allocation2 + $0x118] sm:$0xff]
        %v4105 = vld [vmem:[#allocation2 + $0x120] sm:$0xff]
        %v4106 = vld [vmem:[#allocation2 + $0x150] sm:$0xff]
        %v4107 = vld [vmem:[#allocation2 + $0x158] sm:$0xff]
        %v4108 = vld [vmem:[#allocation2 + $0x188] sm:$0xff]
        %v4109 = vld [vmem:[#allocation2 + $0x190] sm:$0xff]
        %v4110 = vld [vmem:[#allocation2 + $0x1c0] sm:$0xff]
        %v4111 = vld [vmem:[#allocation2 + $0x1c8] sm:$0xff]
        %v4112 = vld [vmem:[%s8] sm:$0xff]
        %4114 = vset.pattern.permute.xlu0 0
        %4115 = vperm.xlu0 %4114, %v4112
        %v4116 = vpop.permute.xlu0 %4115
        %v4119 = vsel %vm2708, %v4093, 0
        %4121 = vmatprep.subr.mxu0 %v4095
        %4122 = vmatpush1.msra.mxu0 %v4094
        %4123 = vmatprep.subr.mxu0 %v4097
        %4124 = vmatpush1.msra.mxu0 %v4096
        %4125 = vmatprep.subr.mxu0 %v4099
        %4126 = vmatpush1.msra.mxu0 %v4098
        %4127 = vmatprep.subr.mxu0 %v4101
        %4128 = vmatpush1.msra.mxu0 %v4100
        %4129 = vmatprep.subr.mxu0 %v4103
        %4130 = vmatpush1.msra.mxu0 %v4102
        %4131 = vmatprep.subr.mxu0 %v4105
        %4132 = vmatpush1.msra.mxu0 %v4104
        %4133 = vmatprep.subr.mxu0 %v4107
        %4134 = vmatpush1.msra.mxu0 %v4106
        %4135 = vmatprep.subr.mxu0 %v4109
        %4136 = vmatpush1.msra.mxu0 %v4108
        %4137 = vmatprep.subr.mxu0 %v4111
        %4138 = vmatpush1.msra.mxu0 %v4110
        %4139 = vmatprep.subr.mxu0 0.0
        %4140 = vmatpush1.msra.mxu0 0.0
        %4141 = vmatprep.subr.mxu0 0.0
        %4142 = vmatpush1.msra.mxu0 0.0
        %4143 = vmatprep.subr.mxu0 0.0
        %4144 = vmatpush1.msra.mxu0 0.0
        %4145 = vmatprep.subr.mxu0 0.0
        %4146 = vmatpush1.msra.mxu0 0.0
        %4147 = vmatprep.subr.mxu0 0.0
        %4148 = vmatpush1.msra.mxu0 0.0
        %4149 = vmatprep.subr.mxu0 0.0
        %4150 = vmatpush1.msra.mxu0 0.0
        %4151 = vmatprep.subr.mxu0 0.0
        %4152 = vmatpush1.msra.mxu0 0.0
        %4153 = vmatprep.subr.mxu0 0.0
        %4154 = vmatpush1.msra.mxu0 0.0
        %4155 = vmatprep.subr.mxu0 0.0
        %4156 = vmatpush1.msra.mxu0 0.0
        %4157 = vmatprep.subr.mxu0 0.0
        %4158 = vmatpush1.msra.mxu0 0.0
        %4159 = vmatprep.subr.mxu0 0.0
        %4160 = vmatpush1.msra.mxu0 0.0
        %4161 = vmatprep.subr.mxu0 0.0
        %4162 = vmatpush1.msra.mxu0 0.0
        %4163 = vmatprep.subr.mxu0 0.0
        %4164 = vmatpush1.msra.mxu0 0.0
        %4165 = vmatprep.subr.mxu0 0.0
        %4166 = vmatpush1.msra.mxu0 0.0
        %4167 = vmatprep.subr.mxu0 0.0
        %4168 = vmatpush1.msra.mxu0 0.0
        %4169 = vmatprep.subr.mxu0 0.0
        %4170 = vmatpush1.msra.mxu0 0.0
        %4171 = vmatprep.subr.mxu0 0.0
        %4172 = vmatpush1.msra.mxu0 0.0
        %4173 = vmatprep.subr.mxu0 0.0
        %4174 = vmatpush1.msra.mxu0 0.0
        %4175 = vmatprep.subr.mxu0 0.0
        %4176 = vmatpush1.msra.mxu0 0.0
        %4177 = vmatprep.subr.mxu0 0.0
        %4178 = vmatpush1.msra.mxu0 0.0
        %4179 = vmatprep.subr.mxu0 0.0
        %4180 = vmatpush1.msra.mxu0 0.0
        %4181 = vmatprep.subr.mxu0 0.0
        %4182 = vmatpush1.msra.mxu0 0.0
        %4183 = vmatprep.subr.mxu0 0.0
        %4184 = vmatpush1.msra.mxu0 0.0
        %4185 = vmatprep.mubr.f32.mxu0 0.0
        %4186 = vmatmul.mubr.f32.gmra.mrb[0].mxu0 %v4119
        %v4187 = vpop.f32.mrb[0].mxu0
        %v4188 = vadd.f32 %v4116, %v4187
        %v4189 = vpop.f32.mrb[0].mxu0
        %v4190 = vadd.f32 %v4116, %v4189
        %4191 = vdwg.mxu0
        %v4192 = vmax.f32 %v4188, 0.0
        %v4193 = vmax.f32 %v4190, 0.0
        %4194 = vrot.lane.b32.xlu0 %v4192, 127
        %v4195 = vpop.permute.xlu0 %4194
        %4196 = vrot.lane.b32.xlu0 %v4193, 127
        %v4197 = vpop.permute.xlu0 %4196
        %v4198 = vsel %vm1158, %v4195, %v4197
        %v4199 = vsel %vm1158, %v4197, %v4195
        %4200 = vrot.lane.b32.xlu0 %v4192, 114
        %v4201 = vpop.permute.xlu0 %4200
        %4202 = vrot.lane.b32.xlu0 %v4193, 114
        %v4203 = vpop.permute.xlu0 %4202
        %v4204 = vsel %vm3756, %v4201, %v4203
        %v4205 = vsel %vm3756, %v4203, %v4201
        %4206 = vrot.lane.b32.xlu0 %v4192, 113
        %v4207 = vpop.permute.xlu0 %4206
        %4208 = vrot.lane.b32.xlu0 %v4193, 113
        %v4209 = vpop.permute.xlu0 %4208
        %v4210 = vsel %vm3780, %v4207, %v4209
        %v4211 = vsel %vm3780, %v4209, %v4207
        %v4212 = vmax.f32 %v4192, %v4198
        %v4213 = vmax.f32 %v4193, %v4199
        %v4214 = vmax.f32 %v4204, %v4210
        %v4215 = vmax.f32 %v4205, %v4211
        %v4216 = vmax.f32 %v4212, %v4214
        %v4217 = vmax.f32 %v4213, %v4215
        %v4218 = vld [vmem:[%s12] sm:$0xff]
        %v4219 = vld [vmem:[%s12 + $0x8] sm:$0xff]
        %v4220 = vld [vmem:[%s12 + $0x10] sm:$0xff]
        %v4221 = vld [vmem:[%s12 + $0x18] sm:$0xff]
        %v4222 = vld [vmem:[%s12 + $0x20] sm:$0xff]
        %v4223 = vld [vmem:[%s12 + $0x28] sm:$0xff]
        %v4224 = vld [vmem:[%s12 + $0x30] sm:$0xff]
        %v4225 = vld [vmem:[%s12 + $0x38] sm:$0xff]
        %v4226 = vld [vmem:[%s12 + $0x40] sm:$0xff]
        %v4227 = vld [vmem:[%s12 + $0x48] sm:$0xff]
        %v4228 = vld [vmem:[%s12 + $0x50] sm:$0xff]
        %v4229 = vld [vmem:[%s12 + $0x58] sm:$0xff]
        %v4230 = vld [vmem:[%s12 + $0x60] sm:$0xff]
        %v4231 = vld [vmem:[%s12 + $0x68] sm:$0xff]
        %v4232 = vld [vmem:[%s12 + $0x70] sm:$0xff]
        %v4233 = vld [vmem:[%s12 + $0x78] sm:$0xff]
        %v4234 = vld [vmem:[%s12 + $0x80] sm:$0xff]
        %v4235 = vld [vmem:[%s12 + $0x88] sm:$0xff]
        %v4236 = vld [vmem:[%s12 + $0x90] sm:$0xff]
        %v4237 = vld [vmem:[%s12 + $0x98] sm:$0xff]
        %v4238 = vld [vmem:[%s12 + $0xa0] sm:$0xff]
        %v4239 = vld [vmem:[%s12 + $0xa8] sm:$0xff]
        %v4240 = vld [vmem:[%s12 + $0xb0] sm:$0xff]
        %v4241 = vld [vmem:[%s12 + $0xb8] sm:$0xff]
        %v4242 = vld [vmem:[%s12 + $0xc0] sm:$0xff]
        %v4243 = vld [vmem:[%s12 + $0xc8] sm:$0xff]
        %v4244 = vld [vmem:[%s12 + $0xd0] sm:$0xff]
        %v4245 = vld [vmem:[%s12 + $0xd8] sm:$0xff]
        %v4246 = vld [vmem:[%s12 + $0xe0] sm:$0xff]
        %v4247 = vld [vmem:[%s12 + $0xe8] sm:$0xff]
        %v4248 = vld [vmem:[%s12 + $0xf0] sm:$0xff]
        %v4249 = vld [vmem:[%s12 + $0xf8] sm:$0xff]
        %4250 = vmatprep.subr.mxu0 0.0
        %4251 = vmatpush1.msra.mxu0 %v4218
        %4252 = vmatprep.subr.mxu0 0.0
        %4253 = vmatpush1.msra.mxu0 %v4219
        %4254 = vmatprep.subr.mxu0 0.0
        %4255 = vmatpush1.msra.mxu0 %v4220
        %4256 = vmatprep.subr.mxu0 0.0
        %4257 = vmatpush1.msra.mxu0 %v4221
        %4258 = vmatprep.subr.mxu0 0.0
        %4259 = vmatpush1.msra.mxu0 %v4222
        %4260 = vmatprep.subr.mxu0 0.0
        %4261 = vmatpush1.msra.mxu0 %v4223
        %4262 = vmatprep.subr.mxu0 0.0
        %4263 = vmatpush1.msra.mxu0 %v4224
        %4264 = vmatprep.subr.mxu0 0.0
        %4265 = vmatpush1.msra.mxu0 %v4225
        %4266 = vmatprep.subr.mxu0 0.0
        %4267 = vmatpush1.msra.mxu0 %v4226
        %4268 = vmatprep.subr.mxu0 0.0
        %4269 = vmatpush1.msra.mxu0 %v4227
        %4270 = vmatprep.subr.mxu0 0.0
        %4271 = vmatpush1.msra.mxu0 %v4228
        %4272 = vmatprep.subr.mxu0 0.0
        %4273 = vmatpush1.msra.mxu0 %v4229
        %4274 = vmatprep.subr.mxu0 0.0
        %4275 = vmatpush1.msra.mxu0 %v4230
        %4276 = vmatprep.subr.mxu0 0.0
        %4277 = vmatpush1.msra.mxu0 %v4231
        %4278 = vmatprep.subr.mxu0 0.0
        %4279 = vmatpush1.msra.mxu0 %v4232
        %4280 = vmatprep.subr.mxu0 0.0
        %4281 = vmatpush1.msra.mxu0 %v4233
        %4282 = vmatprep.subr.mxu0 0.0
        %4283 = vmatpush1.msra.mxu0 %v4234
        %4284 = vmatprep.subr.mxu0 0.0
        %4285 = vmatpush1.msra.mxu0 %v4235
        %4286 = vmatprep.subr.mxu0 0.0
        %4287 = vmatpush1.msra.mxu0 %v4236
        %4288 = vmatprep.subr.mxu0 0.0
        %4289 = vmatpush1.msra.mxu0 %v4237
        %4290 = vmatprep.subr.mxu0 0.0
        %4291 = vmatpush1.msra.mxu0 %v4238
        %4292 = vmatprep.subr.mxu0 0.0
        %4293 = vmatpush1.msra.mxu0 %v4239
        %4294 = vmatprep.subr.mxu0 0.0
        %4295 = vmatpush1.msra.mxu0 %v4240
        %4296 = vmatprep.subr.mxu0 0.0
        %4297 = vmatpush1.msra.mxu0 %v4241
        %4298 = vmatprep.subr.mxu0 0.0
        %4299 = vmatpush1.msra.mxu0 %v4242
        %4300 = vmatprep.subr.mxu0 0.0
        %4301 = vmatpush1.msra.mxu0 %v4243
        %4302 = vmatprep.subr.mxu0 0.0
        %4303 = vmatpush1.msra.mxu0 %v4244
        %4304 = vmatprep.subr.mxu0 0.0
        %4305 = vmatpush1.msra.mxu0 %v4245
        %4306 = vmatprep.subr.mxu0 0.0
        %4307 = vmatpush1.msra.mxu0 %v4246
        %4308 = vmatprep.subr.mxu0 0.0
        %4309 = vmatpush1.msra.mxu0 %v4247
        %4310 = vmatprep.subr.mxu0 0.0
        %4311 = vmatpush1.msra.mxu0 %v4248
        %4312 = vmatprep.subr.mxu0 0.0
        %4313 = vmatpush1.msra.mxu0 %v4249
        %4314 = vmatprep.mubr.f32.mxu0 %v4217
        %4315 = vmatmul.mubr.f32.gmra.mrb[0].mxu0 %v4216
        %v4316 = vpop.f32.mrb[0].mxu0
        %v4317 = vadd.f32 0.0, %v4316
        %v4318 = vpop.f32.mrb[0].mxu0
        %4319 = vdwg.mxu0
        %v4320 = vld [vmem:[%s14] sm:$0x1]
        %v4321 = vld [vmem:[#allocation14] sm:$0xff]
        %v4322 = vld [vmem:[#allocation14 + $0x8] sm:$0xff]
        %v4323 = vld [vmem:[#allocation14 + $0x10] sm:$0xff]
        %v4324 = vld [vmem:[#allocation14 + $0x18] sm:$0xff]
        %v4325 = vld [vmem:[#allocation14 + $0x20] sm:$0xff]
        %v4326 = vld [vmem:[#allocation14 + $0x28] sm:$0xff]
        %v4327 = vld [vmem:[#allocation14 + $0x30] sm:$0xff]
        %v4328 = vld [vmem:[#allocation14 + $0x38] sm:$0xff]
        %v4329 = vld [vmem:[#allocation14 + $0x40] sm:$0xff]
        %v4330 = vld [vmem:[#allocation14 + $0x48] sm:$0xff]
        %v4331 = vld [vmem:[#allocation14 + $0x50] sm:$0xff]
        %v4332 = vld [vmem:[#allocation14 + $0x58] sm:$0xff]
        %v4333 = vld [vmem:[#allocation14 + $0x60] sm:$0xff]
        %v4334 = vld [vmem:[#allocation14 + $0x68] sm:$0xff]
        %v4335 = vld [vmem:[#allocation14 + $0x70] sm:$0xff]
        %v4336 = vld [vmem:[#allocation14 + $0x78] sm:$0xff]
        %4337 = vmatprep.subr.mxu0 0.0
        %4338 = vmatpush1.msra.mxu0 %v4321
        %4339 = vmatprep.subr.mxu0 0.0
        %4340 = vmatpush1.msra.mxu0 %v4322
        %4341 = vmatprep.subr.mxu0 0.0
        %4342 = vmatpush1.msra.mxu0 %v4323
        %4343 = vmatprep.subr.mxu0 0.0
        %4344 = vmatpush1.msra.mxu0 %v4324
        %4345 = vmatprep.subr.mxu0 0.0
        %4346 = vmatpush1.msra.mxu0 %v4325
        %4347 = vmatprep.subr.mxu0 0.0
        %4348 = vmatpush1.msra.mxu0 %v4326
        %4349 = vmatprep.subr.mxu0 0.0
        %4350 = vmatpush1.msra.mxu0 %v4327
        %4351 = vmatprep.subr.mxu0 0.0
        %4352 = vmatpush1.msra.mxu0 %v4328
        %4353 = vmatprep.subr.mxu0 0.0
        %4354 = vmatpush1.msra.mxu0 %v4329
        %4355 = vmatprep.subr.mxu0 0.0
        %4356 = vmatpush1.msra.mxu0 %v4330
        %4357 = vmatprep.subr.mxu0 0.0
        %4358 = vmatpush1.msra.mxu0 %v4331
        %4359 = vmatprep.subr.mxu0 0.0
        %4360 = vmatpush1.msra.mxu0 %v4332
        %4361 = vmatprep.subr.mxu0 0.0
        %4362 = vmatpush1.msra.mxu0 %v4333
        %4363 = vmatprep.subr.mxu0 0.0
        %4364 = vmatpush1.msra.mxu0 %v4334
        %4365 = vmatprep.subr.mxu0 0.0
        %4366 = vmatpush1.msra.mxu0 %v4335
        %4367 = vmatprep.subr.mxu0 0.0
        %4368 = vmatpush1.msra.mxu0 %v4336
        %4369 = vmatprep.subr.mxu0 0.0
        %4370 = vmatpush1.msra.mxu0 0.0
        %4371 = vmatprep.subr.mxu0 0.0
        %4372 = vmatpush1.msra.mxu0 0.0
        %4373 = vmatprep.subr.mxu0 0.0
        %4374 = vmatpush1.msra.mxu0 0.0
        %4375 = vmatprep.subr.mxu0 0.0
        %4376 = vmatpush1.msra.mxu0 0.0
        %4377 = vmatprep.subr.mxu0 0.0
        %4378 = vmatpush1.msra.mxu0 0.0
        %4379 = vmatprep.subr.mxu0 0.0
        %4380 = vmatpush1.msra.mxu0 0.0
        %4381 = vmatprep.subr.mxu0 0.0
        %4382 = vmatpush1.msra.mxu0 0.0
        %4383 = vmatprep.subr.mxu0 0.0
        %4384 = vmatpush1.msra.mxu0 0.0
        %4385 = vmatprep.subr.mxu0 0.0
        %4386 = vmatpush1.msra.mxu0 0.0
        %4387 = vmatprep.subr.mxu0 0.0
        %4388 = vmatpush1.msra.mxu0 0.0
        %4389 = vmatprep.subr.mxu0 0.0
        %4390 = vmatpush1.msra.mxu0 0.0
        %4391 = vmatprep.subr.mxu0 0.0
        %4392 = vmatpush1.msra.mxu0 0.0
        %4393 = vmatprep.subr.mxu0 0.0
        %4394 = vmatpush1.msra.mxu0 0.0
        %4395 = vmatprep.subr.mxu0 0.0
        %4396 = vmatpush1.msra.mxu0 0.0
        %4397 = vmatprep.subr.mxu0 0.0
        %4398 = vmatpush1.msra.mxu0 0.0
        %4399 = vmatprep.subr.mxu0 0.0
        %4400 = vmatpush1.msra.mxu0 0.0
        %4401 = vmatprep.mubr.f32.mxu0 0.0
        %4402 = vmatmul.mubr.f32.gmra.mrb[0].mxu0 %v4317
        %v4403 = vpop.f32.mrb[0].mxu0
        %v4404 = vadd.f32 0.0, %v4403
        %v4405 = vpop.f32.mrb[0].mxu0
        %4406 = vdwg.mxu0
        %v4407 = vadd.f32 %v4320, %v4404
        %s4408 = scalar_lea.vmem [#allocation14], 128
        %v4409 = vld [vmem:[%s4408] sm:$0xff]
        %v4410 = vld [vmem:[%s4408 + $0x8] sm:$0xff]
        %v4411 = vld [vmem:[%s4408 + $0x10] sm:$0xff]
        %v4412 = vld [vmem:[%s4408 + $0x18] sm:$0xff]
        %v4413 = vld [vmem:[%s4408 + $0x20] sm:$0xff]
        %v4414 = vld [vmem:[%s4408 + $0x28] sm:$0xff]
        %v4415 = vld [vmem:[%s4408 + $0x30] sm:$0xff]
        %v4416 = vld [vmem:[%s4408 + $0x38] sm:$0xff]
        %v4417 = vld [vmem:[%s4408 + $0x40] sm:$0xff]
        %v4418 = vld [vmem:[%s4408 + $0x48] sm:$0xff]
        %v4419 = vld [vmem:[%s4408 + $0x50] sm:$0xff]
        %v4420 = vld [vmem:[%s4408 + $0x58] sm:$0xff]
        %v4421 = vld [vmem:[%s4408 + $0x60] sm:$0xff]
        %v4422 = vld [vmem:[%s4408 + $0x68] sm:$0xff]
        %v4423 = vld [vmem:[%s4408 + $0x70] sm:$0xff]
        %v4424 = vld [vmem:[%s4408 + $0x78] sm:$0xff]
        %v4426 = vrot.slane %v4317, 1
        %4428 = vmatprep.subr.mxu0 0.0
        %4429 = vmatpush1.msra.mxu0 %v4409
        %4430 = vmatprep.subr.mxu0 0.0
        %4431 = vmatpush1.msra.mxu0 %v4410
        %4432 = vmatprep.subr.mxu0 0.0
        %4433 = vmatpush1.msra.mxu0 %v4411
        %4434 = vmatprep.subr.mxu0 0.0
        %4435 = vmatpush1.msra.mxu0 %v4412
        %4436 = vmatprep.subr.mxu0 0.0
        %4437 = vmatpush1.msra.mxu0 %v4413
        %4438 = vmatprep.subr.mxu0 0.0
        %4439 = vmatpush1.msra.mxu0 %v4414
        %4440 = vmatprep.subr.mxu0 0.0
        %4441 = vmatpush1.msra.mxu0 %v4415
        %4442 = vmatprep.subr.mxu0 0.0
        %4443 = vmatpush1.msra.mxu0 %v4416
        %4444 = vmatprep.subr.mxu0 0.0
        %4445 = vmatpush1.msra.mxu0 %v4417
        %4446 = vmatprep.subr.mxu0 0.0
        %4447 = vmatpush1.msra.mxu0 %v4418
        %4448 = vmatprep.subr.mxu0 0.0
        %4449 = vmatpush1.msra.mxu0 %v4419
        %4450 = vmatprep.subr.mxu0 0.0
        %4451 = vmatpush1.msra.mxu0 %v4420
        %4452 = vmatprep.subr.mxu0 0.0
        %4453 = vmatpush1.msra.mxu0 %v4421
        %4454 = vmatprep.subr.mxu0 0.0
        %4455 = vmatpush1.msra.mxu0 %v4422
        %4456 = vmatprep.subr.mxu0 0.0
        %4457 = vmatpush1.msra.mxu0 %v4423
        %4458 = vmatprep.subr.mxu0 0.0
        %4459 = vmatpush1.msra.mxu0 %v4424
        %4460 = vmatprep.subr.mxu0 0.0
        %4461 = vmatpush1.msra.mxu0 0.0
        %4462 = vmatprep.subr.mxu0 0.0
        %4463 = vmatpush1.msra.mxu0 0.0
        %4464 = vmatprep.subr.mxu0 0.0
        %4465 = vmatpush1.msra.mxu0 0.0
        %4466 = vmatprep.subr.mxu0 0.0
        %4467 = vmatpush1.msra.mxu0 0.0
        %4468 = vmatprep.subr.mxu0 0.0
        %4469 = vmatpush1.msra.mxu0 0.0
        %4470 = vmatprep.subr.mxu0 0.0
        %4471 = vmatpush1.msra.mxu0 0.0
        %4472 = vmatprep.subr.mxu0 0.0
        %4473 = vmatpush1.msra.mxu0 0.0
        %4474 = vmatprep.subr.mxu0 0.0
        %4475 = vmatpush1.msra.mxu0 0.0
        %4476 = vmatprep.subr.mxu0 0.0
        %4477 = vmatpush1.msra.mxu0 0.0
        %4478 = vmatprep.subr.mxu0 0.0
        %4479 = vmatpush1.msra.mxu0 0.0
        %4480 = vmatprep.subr.mxu0 0.0
        %4481 = vmatpush1.msra.mxu0 0.0
        %4482 = vmatprep.subr.mxu0 0.0
        %4483 = vmatpush1.msra.mxu0 0.0
        %4484 = vmatprep.subr.mxu0 0.0
        %4485 = vmatpush1.msra.mxu0 0.0
        %4486 = vmatprep.subr.mxu0 0.0
        %4487 = vmatpush1.msra.mxu0 0.0
        %4488 = vmatprep.subr.mxu0 0.0
        %4489 = vmatpush1.msra.mxu0 0.0
        %4490 = vmatprep.subr.mxu0 0.0
        %4491 = vmatpush1.msra.mxu0 0.0
        %4492 = vmatprep.mubr.f32.mxu0 0.0
        %4493 = vmatmul.mubr.f32.gmra.mrb[0].mxu0 %v4426
        %v4494 = vpop.f32.mrb[0].mxu0
        %v4495 = vadd.f32 0.0, %v4494
        %v4496 = vpop.f32.mrb[0].mxu0
        %4497 = vdwg.mxu0
        %v4498 = vadd.f32 %v4407, %v4495
        %s4499 = scalar_lea.vmem [#allocation14], 256
        %v4500 = vld [vmem:[%s4499] sm:$0xff]
        %v4501 = vld [vmem:[%s4499 + $0x8] sm:$0xff]
        %v4502 = vld [vmem:[%s4499 + $0x10] sm:$0xff]
        %v4503 = vld [vmem:[%s4499 + $0x18] sm:$0xff]
        %v4504 = vld [vmem:[%s4499 + $0x20] sm:$0xff]
        %v4505 = vld [vmem:[%s4499 + $0x28] sm:$0xff]
        %v4506 = vld [vmem:[%s4499 + $0x30] sm:$0xff]
        %v4507 = vld [vmem:[%s4499 + $0x38] sm:$0xff]
        %v4508 = vld [vmem:[%s4499 + $0x40] sm:$0xff]
        %v4509 = vld [vmem:[%s4499 + $0x48] sm:$0xff]
        %v4510 = vld [vmem:[%s4499 + $0x50] sm:$0xff]
        %v4511 = vld [vmem:[%s4499 + $0x58] sm:$0xff]
        %v4512 = vld [vmem:[%s4499 + $0x60] sm:$0xff]
        %v4513 = vld [vmem:[%s4499 + $0x68] sm:$0xff]
        %v4514 = vld [vmem:[%s4499 + $0x70] sm:$0xff]
        %v4515 = vld [vmem:[%s4499 + $0x78] sm:$0xff]
        %v4516 = vrot.slane %v4317, 2
        %4518 = vmatprep.subr.mxu0 0.0
        %4519 = vmatpush1.msra.mxu0 %v4500
        %4520 = vmatprep.subr.mxu0 0.0
        %4521 = vmatpush1.msra.mxu0 %v4501
        %4522 = vmatprep.subr.mxu0 0.0
        %4523 = vmatpush1.msra.mxu0 %v4502
        %4524 = vmatprep.subr.mxu0 0.0
        %4525 = vmatpush1.msra.mxu0 %v4503
        %4526 = vmatprep.subr.mxu0 0.0
        %4527 = vmatpush1.msra.mxu0 %v4504
        %4528 = vmatprep.subr.mxu0 0.0
        %4529 = vmatpush1.msra.mxu0 %v4505
        %4530 = vmatprep.subr.mxu0 0.0
        %4531 = vmatpush1.msra.mxu0 %v4506
        %4532 = vmatprep.subr.mxu0 0.0
        %4533 = vmatpush1.msra.mxu0 %v4507
        %4534 = vmatprep.subr.mxu0 0.0
        %4535 = vmatpush1.msra.mxu0 %v4508
        %4536 = vmatprep.subr.mxu0 0.0
        %4537 = vmatpush1.msra.mxu0 %v4509
        %4538 = vmatprep.subr.mxu0 0.0
        %4539 = vmatpush1.msra.mxu0 %v4510
        %4540 = vmatprep.subr.mxu0 0.0
        %4541 = vmatpush1.msra.mxu0 %v4511
        %4542 = vmatprep.subr.mxu0 0.0
        %4543 = vmatpush1.msra.mxu0 %v4512
        %4544 = vmatprep.subr.mxu0 0.0
        %4545 = vmatpush1.msra.mxu0 %v4513
        %4546 = vmatprep.subr.mxu0 0.0
        %4547 = vmatpush1.msra.mxu0 %v4514
        %4548 = vmatprep.subr.mxu0 0.0
        %4549 = vmatpush1.msra.mxu0 %v4515
        %4550 = vmatprep.subr.mxu0 0.0
        %4551 = vmatpush1.msra.mxu0 0.0
        %4552 = vmatprep.subr.mxu0 0.0
        %4553 = vmatpush1.msra.mxu0 0.0
        %4554 = vmatprep.subr.mxu0 0.0
        %4555 = vmatpush1.msra.mxu0 0.0
        %4556 = vmatprep.subr.mxu0 0.0
        %4557 = vmatpush1.msra.mxu0 0.0
        %4558 = vmatprep.subr.mxu0 0.0
        %4559 = vmatpush1.msra.mxu0 0.0
        %4560 = vmatprep.subr.mxu0 0.0
        %4561 = vmatpush1.msra.mxu0 0.0
        %4562 = vmatprep.subr.mxu0 0.0
        %4563 = vmatpush1.msra.mxu0 0.0
        %4564 = vmatprep.subr.mxu0 0.0
        %4565 = vmatpush1.msra.mxu0 0.0
        %4566 = vmatprep.subr.mxu0 0.0
        %4567 = vmatpush1.msra.mxu0 0.0
        %4568 = vmatprep.subr.mxu0 0.0
        %4569 = vmatpush1.msra.mxu0 0.0
        %4570 = vmatprep.subr.mxu0 0.0
        %4571 = vmatpush1.msra.mxu0 0.0
        %4572 = vmatprep.subr.mxu0 0.0
        %4573 = vmatpush1.msra.mxu0 0.0
        %4574 = vmatprep.subr.mxu0 0.0
        %4575 = vmatpush1.msra.mxu0 0.0
        %4576 = vmatprep.subr.mxu0 0.0
        %4577 = vmatpush1.msra.mxu0 0.0
        %4578 = vmatprep.subr.mxu0 0.0
        %4579 = vmatpush1.msra.mxu0 0.0
        %4580 = vmatprep.subr.mxu0 0.0
        %4581 = vmatpush1.msra.mxu0 0.0
        %4582 = vmatprep.mubr.f32.mxu0 0.0
        %4583 = vmatmul.mubr.f32.gmra.mrb[0].mxu0 %v4516
        %v4584 = vpop.f32.mrb[0].mxu0
        %v4585 = vadd.f32 0.0, %v4584
        %v4586 = vpop.f32.mrb[0].mxu0
        %4587 = vdwg.mxu0
        %v4588 = vadd.f32 %v4498, %v4585
        %s4589 = scalar_lea.vmem [#allocation14], 384
        %v4590 = vld [vmem:[%s4589] sm:$0xff]
        %v4591 = vld [vmem:[%s4589 + $0x8] sm:$0xff]
        %v4592 = vld [vmem:[%s4589 + $0x10] sm:$0xff]
        %v4593 = vld [vmem:[%s4589 + $0x18] sm:$0xff]
        %v4594 = vld [vmem:[%s4589 + $0x20] sm:$0xff]
        %v4595 = vld [vmem:[%s4589 + $0x28] sm:$0xff]
        %v4596 = vld [vmem:[%s4589 + $0x30] sm:$0xff]
        %v4597 = vld [vmem:[%s4589 + $0x38] sm:$0xff]
        %v4598 = vld [vmem:[%s4589 + $0x40] sm:$0xff]
        %v4599 = vld [vmem:[%s4589 + $0x48] sm:$0xff]
        %v4600 = vld [vmem:[%s4589 + $0x50] sm:$0xff]
        %v4601 = vld [vmem:[%s4589 + $0x58] sm:$0xff]
        %v4602 = vld [vmem:[%s4589 + $0x60] sm:$0xff]
        %v4603 = vld [vmem:[%s4589 + $0x68] sm:$0xff]
        %v4604 = vld [vmem:[%s4589 + $0x70] sm:$0xff]
        %v4605 = vld [vmem:[%s4589 + $0x78] sm:$0xff]
        %v4606 = vrot.slane %v4317, 3
        %4608 = vmatprep.subr.mxu0 0.0
        %4609 = vmatpush1.msra.mxu0 %v4590
        %4610 = vmatprep.subr.mxu0 0.0
        %4611 = vmatpush1.msra.mxu0 %v4591
        %4612 = vmatprep.subr.mxu0 0.0
        %4613 = vmatpush1.msra.mxu0 %v4592
        %4614 = vmatprep.subr.mxu0 0.0
        %4615 = vmatpush1.msra.mxu0 %v4593
        %4616 = vmatprep.subr.mxu0 0.0
        %4617 = vmatpush1.msra.mxu0 %v4594
        %4618 = vmatprep.subr.mxu0 0.0
        %4619 = vmatpush1.msra.mxu0 %v4595
        %4620 = vmatprep.subr.mxu0 0.0
        %4621 = vmatpush1.msra.mxu0 %v4596
        %4622 = vmatprep.subr.mxu0 0.0
        %4623 = vmatpush1.msra.mxu0 %v4597
        %4624 = vmatprep.subr.mxu0 0.0
        %4625 = vmatpush1.msra.mxu0 %v4598
        %4626 = vmatprep.subr.mxu0 0.0
        %4627 = vmatpush1.msra.mxu0 %v4599
        %4628 = vmatprep.subr.mxu0 0.0
        %4629 = vmatpush1.msra.mxu0 %v4600
        %4630 = vmatprep.subr.mxu0 0.0
        %4631 = vmatpush1.msra.mxu0 %v4601
        %4632 = vmatprep.subr.mxu0 0.0
        %4633 = vmatpush1.msra.mxu0 %v4602
        %4634 = vmatprep.subr.mxu0 0.0
        %4635 = vmatpush1.msra.mxu0 %v4603
        %4636 = vmatprep.subr.mxu0 0.0
        %4637 = vmatpush1.msra.mxu0 %v4604
        %4638 = vmatprep.subr.mxu0 0.0
        %4639 = vmatpush1.msra.mxu0 %v4605
        %4640 = vmatprep.subr.mxu0 0.0
        %4641 = vmatpush1.msra.mxu0 0.0
        %4642 = vmatprep.subr.mxu0 0.0
        %4643 = vmatpush1.msra.mxu0 0.0
        %4644 = vmatprep.subr.mxu0 0.0
        %4645 = vmatpush1.msra.mxu0 0.0
        %4646 = vmatprep.subr.mxu0 0.0
        %4647 = vmatpush1.msra.mxu0 0.0
        %4648 = vmatprep.subr.mxu0 0.0
        %4649 = vmatpush1.msra.mxu0 0.0
        %4650 = vmatprep.subr.mxu0 0.0
        %4651 = vmatpush1.msra.mxu0 0.0
        %4652 = vmatprep.subr.mxu0 0.0
        %4653 = vmatpush1.msra.mxu0 0.0
        %4654 = vmatprep.subr.mxu0 0.0
        %4655 = vmatpush1.msra.mxu0 0.0
        %4656 = vmatprep.subr.mxu0 0.0
        %4657 = vmatpush1.msra.mxu0 0.0
        %4658 = vmatprep.subr.mxu0 0.0
        %4659 = vmatpush1.msra.mxu0 0.0
        %4660 = vmatprep.subr.mxu0 0.0
        %4661 = vmatpush1.msra.mxu0 0.0
        %4662 = vmatprep.subr.mxu0 0.0
        %4663 = vmatpush1.msra.mxu0 0.0
        %4664 = vmatprep.subr.mxu0 0.0
        %4665 = vmatpush1.msra.mxu0 0.0
        %4666 = vmatprep.subr.mxu0 0.0
        %4667 = vmatpush1.msra.mxu0 0.0
        %4668 = vmatprep.subr.mxu0 0.0
        %4669 = vmatpush1.msra.mxu0 0.0
        %4670 = vmatprep.subr.mxu0 0.0
        %4671 = vmatpush1.msra.mxu0 0.0
        %4672 = vmatprep.mubr.f32.mxu0 0.0
        %4673 = vmatmul.mubr.f32.gmra.mrb[0].mxu0 %v4606
        %v4674 = vpop.f32.mrb[0].mxu0
        %v4675 = vadd.f32 0.0, %v4674
        %v4676 = vpop.f32.mrb[0].mxu0
        %4677 = vdwg.mxu0
        %v4678 = vadd.f32 %v4588, %v4675
        %s4679 = scalar_lea.vmem [#allocation14], 512
        %v4680 = vld [vmem:[%s4679] sm:$0xff]
        %v4681 = vld [vmem:[%s4679 + $0x8] sm:$0xff]
        %v4682 = vld [vmem:[%s4679 + $0x10] sm:$0xff]
        %v4683 = vld [vmem:[%s4679 + $0x18] sm:$0xff]
        %v4684 = vld [vmem:[%s4679 + $0x20] sm:$0xff]
        %v4685 = vld [vmem:[%s4679 + $0x28] sm:$0xff]
        %v4686 = vld [vmem:[%s4679 + $0x30] sm:$0xff]
        %v4687 = vld [vmem:[%s4679 + $0x38] sm:$0xff]
        %v4688 = vld [vmem:[%s4679 + $0x40] sm:$0xff]
        %v4689 = vld [vmem:[%s4679 + $0x48] sm:$0xff]
        %v4690 = vld [vmem:[%s4679 + $0x50] sm:$0xff]
        %v4691 = vld [vmem:[%s4679 + $0x58] sm:$0xff]
        %v4692 = vld [vmem:[%s4679 + $0x60] sm:$0xff]
        %v4693 = vld [vmem:[%s4679 + $0x68] sm:$0xff]
        %v4694 = vld [vmem:[%s4679 + $0x70] sm:$0xff]
        %v4695 = vld [vmem:[%s4679 + $0x78] sm:$0xff]
        %v4696 = vrot.slane %v4317, 4
        %4698 = vmatprep.subr.mxu0 0.0
        %4699 = vmatpush1.msra.mxu0 %v4680
        %4700 = vmatprep.subr.mxu0 0.0
        %4701 = vmatpush1.msra.mxu0 %v4681
        %4702 = vmatprep.subr.mxu0 0.0
        %4703 = vmatpush1.msra.mxu0 %v4682
        %4704 = vmatprep.subr.mxu0 0.0
        %4705 = vmatpush1.msra.mxu0 %v4683
        %4706 = vmatprep.subr.mxu0 0.0
        %4707 = vmatpush1.msra.mxu0 %v4684
        %4708 = vmatprep.subr.mxu0 0.0
        %4709 = vmatpush1.msra.mxu0 %v4685
        %4710 = vmatprep.subr.mxu0 0.0
        %4711 = vmatpush1.msra.mxu0 %v4686
        %4712 = vmatprep.subr.mxu0 0.0
        %4713 = vmatpush1.msra.mxu0 %v4687
        %4714 = vmatprep.subr.mxu0 0.0
        %4715 = vmatpush1.msra.mxu0 %v4688
        %4716 = vmatprep.subr.mxu0 0.0
        %4717 = vmatpush1.msra.mxu0 %v4689
        %4718 = vmatprep.subr.mxu0 0.0
        %4719 = vmatpush1.msra.mxu0 %v4690
        %4720 = vmatprep.subr.mxu0 0.0
        %4721 = vmatpush1.msra.mxu0 %v4691
        %4722 = vmatprep.subr.mxu0 0.0
        %4723 = vmatpush1.msra.mxu0 %v4692
        %4724 = vmatprep.subr.mxu0 0.0
        %4725 = vmatpush1.msra.mxu0 %v4693
        %4726 = vmatprep.subr.mxu0 0.0
        %4727 = vmatpush1.msra.mxu0 %v4694
        %4728 = vmatprep.subr.mxu0 0.0
        %4729 = vmatpush1.msra.mxu0 %v4695
        %4730 = vmatprep.subr.mxu0 0.0
        %4731 = vmatpush1.msra.mxu0 0.0
        %4732 = vmatprep.subr.mxu0 0.0
        %4733 = vmatpush1.msra.mxu0 0.0
        %4734 = vmatprep.subr.mxu0 0.0
        %4735 = vmatpush1.msra.mxu0 0.0
        %4736 = vmatprep.subr.mxu0 0.0
        %4737 = vmatpush1.msra.mxu0 0.0
        %4738 = vmatprep.subr.mxu0 0.0
        %4739 = vmatpush1.msra.mxu0 0.0
        %4740 = vmatprep.subr.mxu0 0.0
        %4741 = vmatpush1.msra.mxu0 0.0
        %4742 = vmatprep.subr.mxu0 0.0
        %4743 = vmatpush1.msra.mxu0 0.0
        %4744 = vmatprep.subr.mxu0 0.0
        %4745 = vmatpush1.msra.mxu0 0.0
        %4746 = vmatprep.subr.mxu0 0.0
        %4747 = vmatpush1.msra.mxu0 0.0
        %4748 = vmatprep.subr.mxu0 0.0
        %4749 = vmatpush1.msra.mxu0 0.0
        %4750 = vmatprep.subr.mxu0 0.0
        %4751 = vmatpush1.msra.mxu0 0.0
        %4752 = vmatprep.subr.mxu0 0.0
        %4753 = vmatpush1.msra.mxu0 0.0
        %4754 = vmatprep.subr.mxu0 0.0
        %4755 = vmatpush1.msra.mxu0 0.0
        %4756 = vmatprep.subr.mxu0 0.0
        %4757 = vmatpush1.msra.mxu0 0.0
        %4758 = vmatprep.subr.mxu0 0.0
        %4759 = vmatpush1.msra.mxu0 0.0
        %4760 = vmatprep.subr.mxu0 0.0
        %4761 = vmatpush1.msra.mxu0 0.0
        %4762 = vmatprep.mubr.f32.mxu0 0.0
        %4763 = vmatmul.mubr.f32.gmra.mrb[0].mxu0 %v4696
        %v4764 = vpop.f32.mrb[0].mxu0
        %v4765 = vadd.f32 0.0, %v4764
        %v4766 = vpop.f32.mrb[0].mxu0
        %4767 = vdwg.mxu0
        %v4768 = vadd.f32 %v4678, %v4765
        %s4769 = scalar_lea.vmem [#allocation14], 640
        %v4770 = vld [vmem:[%s4769] sm:$0xff]
        %v4771 = vld [vmem:[%s4769 + $0x8] sm:$0xff]
        %v4772 = vld [vmem:[%s4769 + $0x10] sm:$0xff]
        %v4773 = vld [vmem:[%s4769 + $0x18] sm:$0xff]
        %v4774 = vld [vmem:[%s4769 + $0x20] sm:$0xff]
        %v4775 = vld [vmem:[%s4769 + $0x28] sm:$0xff]
        %v4776 = vld [vmem:[%s4769 + $0x30] sm:$0xff]
        %v4777 = vld [vmem:[%s4769 + $0x38] sm:$0xff]
        %v4778 = vld [vmem:[%s4769 + $0x40] sm:$0xff]
        %v4779 = vld [vmem:[%s4769 + $0x48] sm:$0xff]
        %v4780 = vld [vmem:[%s4769 + $0x50] sm:$0xff]
        %v4781 = vld [vmem:[%s4769 + $0x58] sm:$0xff]
        %v4782 = vld [vmem:[%s4769 + $0x60] sm:$0xff]
        %v4783 = vld [vmem:[%s4769 + $0x68] sm:$0xff]
        %v4784 = vld [vmem:[%s4769 + $0x70] sm:$0xff]
        %v4785 = vld [vmem:[%s4769 + $0x78] sm:$0xff]
        %v4786 = vrot.slane %v4317, 5
        %4788 = vmatprep.subr.mxu0 0.0
        %4789 = vmatpush1.msra.mxu0 %v4770
        %4790 = vmatprep.subr.mxu0 0.0
        %4791 = vmatpush1.msra.mxu0 %v4771
        %4792 = vmatprep.subr.mxu0 0.0
        %4793 = vmatpush1.msra.mxu0 %v4772
        %4794 = vmatprep.subr.mxu0 0.0
        %4795 = vmatpush1.msra.mxu0 %v4773
        %4796 = vmatprep.subr.mxu0 0.0
        %4797 = vmatpush1.msra.mxu0 %v4774
        %4798 = vmatprep.subr.mxu0 0.0
        %4799 = vmatpush1.msra.mxu0 %v4775
        %4800 = vmatprep.subr.mxu0 0.0
        %4801 = vmatpush1.msra.mxu0 %v4776
        %4802 = vmatprep.subr.mxu0 0.0
        %4803 = vmatpush1.msra.mxu0 %v4777
        %4804 = vmatprep.subr.mxu0 0.0
        %4805 = vmatpush1.msra.mxu0 %v4778
        %4806 = vmatprep.subr.mxu0 0.0
        %4807 = vmatpush1.msra.mxu0 %v4779
        %4808 = vmatprep.subr.mxu0 0.0
        %4809 = vmatpush1.msra.mxu0 %v4780
        %4810 = vmatprep.subr.mxu0 0.0
        %4811 = vmatpush1.msra.mxu0 %v4781
        %4812 = vmatprep.subr.mxu0 0.0
        %4813 = vmatpush1.msra.mxu0 %v4782
        %4814 = vmatprep.subr.mxu0 0.0
        %4815 = vmatpush1.msra.mxu0 %v4783
        %4816 = vmatprep.subr.mxu0 0.0
        %4817 = vmatpush1.msra.mxu0 %v4784
        %4818 = vmatprep.subr.mxu0 0.0
        %4819 = vmatpush1.msra.mxu0 %v4785
        %4820 = vmatprep.subr.mxu0 0.0
        %4821 = vmatpush1.msra.mxu0 0.0
        %4822 = vmatprep.subr.mxu0 0.0
        %4823 = vmatpush1.msra.mxu0 0.0
        %4824 = vmatprep.subr.mxu0 0.0
        %4825 = vmatpush1.msra.mxu0 0.0
        %4826 = vmatprep.subr.mxu0 0.0
        %4827 = vmatpush1.msra.mxu0 0.0
        %4828 = vmatprep.subr.mxu0 0.0
        %4829 = vmatpush1.msra.mxu0 0.0
        %4830 = vmatprep.subr.mxu0 0.0
        %4831 = vmatpush1.msra.mxu0 0.0
        %4832 = vmatprep.subr.mxu0 0.0
        %4833 = vmatpush1.msra.mxu0 0.0
        %4834 = vmatprep.subr.mxu0 0.0
        %4835 = vmatpush1.msra.mxu0 0.0
        %4836 = vmatprep.subr.mxu0 0.0
        %4837 = vmatpush1.msra.mxu0 0.0
        %4838 = vmatprep.subr.mxu0 0.0
        %4839 = vmatpush1.msra.mxu0 0.0
        %4840 = vmatprep.subr.mxu0 0.0
        %4841 = vmatpush1.msra.mxu0 0.0
        %4842 = vmatprep.subr.mxu0 0.0
        %4843 = vmatpush1.msra.mxu0 0.0
        %4844 = vmatprep.subr.mxu0 0.0
        %4845 = vmatpush1.msra.mxu0 0.0
        %4846 = vmatprep.subr.mxu0 0.0
        %4847 = vmatpush1.msra.mxu0 0.0
        %4848 = vmatprep.subr.mxu0 0.0
        %4849 = vmatpush1.msra.mxu0 0.0
        %4850 = vmatprep.subr.mxu0 0.0
        %4851 = vmatpush1.msra.mxu0 0.0
        %4852 = vmatprep.mubr.f32.mxu0 0.0
        %4853 = vmatmul.mubr.f32.gmra.mrb[0].mxu0 %v4786
        %v4854 = vpop.f32.mrb[0].mxu0
        %v4855 = vadd.f32 0.0, %v4854
        %v4856 = vpop.f32.mrb[0].mxu0
        %4857 = vdwg.mxu0
        %v4858 = vadd.f32 %v4768, %v4855
        %s4859 = scalar_lea.vmem [#allocation14], 768
        %v4860 = vld [vmem:[%s4859] sm:$0xff]
        %v4861 = vld [vmem:[%s4859 + $0x8] sm:$0xff]
        %v4862 = vld [vmem:[%s4859 + $0x10] sm:$0xff]
        %v4863 = vld [vmem:[%s4859 + $0x18] sm:$0xff]
        %v4864 = vld [vmem:[%s4859 + $0x20] sm:$0xff]
        %v4865 = vld [vmem:[%s4859 + $0x28] sm:$0xff]
        %v4866 = vld [vmem:[%s4859 + $0x30] sm:$0xff]
        %v4867 = vld [vmem:[%s4859 + $0x38] sm:$0xff]
        %v4868 = vld [vmem:[%s4859 + $0x40] sm:$0xff]
        %v4869 = vld [vmem:[%s4859 + $0x48] sm:$0xff]
        %v4870 = vld [vmem:[%s4859 + $0x50] sm:$0xff]
        %v4871 = vld [vmem:[%s4859 + $0x58] sm:$0xff]
        %v4872 = vld [vmem:[%s4859 + $0x60] sm:$0xff]
        %v4873 = vld [vmem:[%s4859 + $0x68] sm:$0xff]
        %v4874 = vld [vmem:[%s4859 + $0x70] sm:$0xff]
        %v4875 = vld [vmem:[%s4859 + $0x78] sm:$0xff]
        %v4876 = vrot.slane %v4317, 6
        %4878 = vmatprep.subr.mxu0 0.0
        %4879 = vmatpush1.msra.mxu0 %v4860
        %4880 = vmatprep.subr.mxu0 0.0
        %4881 = vmatpush1.msra.mxu0 %v4861
        %4882 = vmatprep.subr.mxu0 0.0
        %4883 = vmatpush1.msra.mxu0 %v4862
        %4884 = vmatprep.subr.mxu0 0.0
        %4885 = vmatpush1.msra.mxu0 %v4863
        %4886 = vmatprep.subr.mxu0 0.0
        %4887 = vmatpush1.msra.mxu0 %v4864
        %4888 = vmatprep.subr.mxu0 0.0
        %4889 = vmatpush1.msra.mxu0 %v4865
        %4890 = vmatprep.subr.mxu0 0.0
        %4891 = vmatpush1.msra.mxu0 %v4866
        %4892 = vmatprep.subr.mxu0 0.0
        %4893 = vmatpush1.msra.mxu0 %v4867
        %4894 = vmatprep.subr.mxu0 0.0
        %4895 = vmatpush1.msra.mxu0 %v4868
        %4896 = vmatprep.subr.mxu0 0.0
        %4897 = vmatpush1.msra.mxu0 %v4869
        %4898 = vmatprep.subr.mxu0 0.0
        %4899 = vmatpush1.msra.mxu0 %v4870
        %4900 = vmatprep.subr.mxu0 0.0
        %4901 = vmatpush1.msra.mxu0 %v4871
        %4902 = vmatprep.subr.mxu0 0.0
        %4903 = vmatpush1.msra.mxu0 %v4872
        %4904 = vmatprep.subr.mxu0 0.0
        %4905 = vmatpush1.msra.mxu0 %v4873
        %4906 = vmatprep.subr.mxu0 0.0
        %4907 = vmatpush1.msra.mxu0 %v4874
        %4908 = vmatprep.subr.mxu0 0.0
        %4909 = vmatpush1.msra.mxu0 %v4875
        %4910 = vmatprep.subr.mxu0 0.0
        %4911 = vmatpush1.msra.mxu0 0.0
        %4912 = vmatprep.subr.mxu0 0.0
        %4913 = vmatpush1.msra.mxu0 0.0
        %4914 = vmatprep.subr.mxu0 0.0
        %4915 = vmatpush1.msra.mxu0 0.0
        %4916 = vmatprep.subr.mxu0 0.0
        %4917 = vmatpush1.msra.mxu0 0.0
        %4918 = vmatprep.subr.mxu0 0.0
        %4919 = vmatpush1.msra.mxu0 0.0
        %4920 = vmatprep.subr.mxu0 0.0
        %4921 = vmatpush1.msra.mxu0 0.0
        %4922 = vmatprep.subr.mxu0 0.0
        %4923 = vmatpush1.msra.mxu0 0.0
        %4924 = vmatprep.subr.mxu0 0.0
        %4925 = vmatpush1.msra.mxu0 0.0
        %4926 = vmatprep.subr.mxu0 0.0
        %4927 = vmatpush1.msra.mxu0 0.0
        %4928 = vmatprep.subr.mxu0 0.0
        %4929 = vmatpush1.msra.mxu0 0.0
        %4930 = vmatprep.subr.mxu0 0.0
        %4931 = vmatpush1.msra.mxu0 0.0
        %4932 = vmatprep.subr.mxu0 0.0
        %4933 = vmatpush1.msra.mxu0 0.0
        %4934 = vmatprep.subr.mxu0 0.0
        %4935 = vmatpush1.msra.mxu0 0.0
        %4936 = vmatprep.subr.mxu0 0.0
        %4937 = vmatpush1.msra.mxu0 0.0
        %4938 = vmatprep.subr.mxu0 0.0
        %4939 = vmatpush1.msra.mxu0 0.0
        %4940 = vmatprep.subr.mxu0 0.0
        %4941 = vmatpush1.msra.mxu0 0.0
        %4942 = vmatprep.mubr.f32.mxu0 0.0
        %4943 = vmatmul.mubr.f32.gmra.mrb[0].mxu0 %v4876
        %v4944 = vpop.f32.mrb[0].mxu0
        %v4945 = vadd.f32 0.0, %v4944
        %v4946 = vpop.f32.mrb[0].mxu0
        %4947 = vdwg.mxu0
        %v4948 = vadd.f32 %v4858, %v4945
        %s4949 = scalar_lea.vmem [#allocation14], 896
        %v4950 = vld [vmem:[%s4949] sm:$0xff]
        %v4951 = vld [vmem:[%s4949 + $0x8] sm:$0xff]
        %v4952 = vld [vmem:[%s4949 + $0x10] sm:$0xff]
        %v4953 = vld [vmem:[%s4949 + $0x18] sm:$0xff]
        %v4954 = vld [vmem:[%s4949 + $0x20] sm:$0xff]
        %v4955 = vld [vmem:[%s4949 + $0x28] sm:$0xff]
        %v4956 = vld [vmem:[%s4949 + $0x30] sm:$0xff]
        %v4957 = vld [vmem:[%s4949 + $0x38] sm:$0xff]
        %v4958 = vld [vmem:[%s4949 + $0x40] sm:$0xff]
        %v4959 = vld [vmem:[%s4949 + $0x48] sm:$0xff]
        %v4960 = vld [vmem:[%s4949 + $0x50] sm:$0xff]
        %v4961 = vld [vmem:[%s4949 + $0x58] sm:$0xff]
        %v4962 = vld [vmem:[%s4949 + $0x60] sm:$0xff]
        %v4963 = vld [vmem:[%s4949 + $0x68] sm:$0xff]
        %v4964 = vld [vmem:[%s4949 + $0x70] sm:$0xff]
        %v4965 = vld [vmem:[%s4949 + $0x78] sm:$0xff]
        %v4966 = vrot.slane %v4317, 7
        %4968 = vmatprep.subr.mxu0 0.0
        %4969 = vmatpush1.msra.mxu0 %v4950
        %4970 = vmatprep.subr.mxu0 0.0
        %4971 = vmatpush1.msra.mxu0 %v4951
        %4972 = vmatprep.subr.mxu0 0.0
        %4973 = vmatpush1.msra.mxu0 %v4952
        %4974 = vmatprep.subr.mxu0 0.0
        %4975 = vmatpush1.msra.mxu0 %v4953
        %4976 = vmatprep.subr.mxu0 0.0
        %4977 = vmatpush1.msra.mxu0 %v4954
        %4978 = vmatprep.subr.mxu0 0.0
        %4979 = vmatpush1.msra.mxu0 %v4955
        %4980 = vmatprep.subr.mxu0 0.0
        %4981 = vmatpush1.msra.mxu0 %v4956
        %4982 = vmatprep.subr.mxu0 0.0
        %4983 = vmatpush1.msra.mxu0 %v4957
        %4984 = vmatprep.subr.mxu0 0.0
        %4985 = vmatpush1.msra.mxu0 %v4958
        %4986 = vmatprep.subr.mxu0 0.0
        %4987 = vmatpush1.msra.mxu0 %v4959
        %4988 = vmatprep.subr.mxu0 0.0
        %4989 = vmatpush1.msra.mxu0 %v4960
        %4990 = vmatprep.subr.mxu0 0.0
        %4991 = vmatpush1.msra.mxu0 %v4961
        %4992 = vmatprep.subr.mxu0 0.0
        %4993 = vmatpush1.msra.mxu0 %v4962
        %4994 = vmatprep.subr.mxu0 0.0
        %4995 = vmatpush1.msra.mxu0 %v4963
        %4996 = vmatprep.subr.mxu0 0.0
        %4997 = vmatpush1.msra.mxu0 %v4964
        %4998 = vmatprep.subr.mxu0 0.0
        %4999 = vmatpush1.msra.mxu0 %v4965
        %5000 = vmatprep.subr.mxu0 0.0
        %5001 = vmatpush1.msra.mxu0 0.0
        %5002 = vmatprep.subr.mxu0 0.0
        %5003 = vmatpush1.msra.mxu0 0.0
        %5004 = vmatprep.subr.mxu0 0.0
        %5005 = vmatpush1.msra.mxu0 0.0
        %5006 = vmatprep.subr.mxu0 0.0
        %5007 = vmatpush1.msra.mxu0 0.0
        %5008 = vmatprep.subr.mxu0 0.0
        %5009 = vmatpush1.msra.mxu0 0.0
        %5010 = vmatprep.subr.mxu0 0.0
        %5011 = vmatpush1.msra.mxu0 0.0
        %5012 = vmatprep.subr.mxu0 0.0
        %5013 = vmatpush1.msra.mxu0 0.0
        %5014 = vmatprep.subr.mxu0 0.0
        %5015 = vmatpush1.msra.mxu0 0.0
        %5016 = vmatprep.subr.mxu0 0.0
        %5017 = vmatpush1.msra.mxu0 0.0
        %5018 = vmatprep.subr.mxu0 0.0
        %5019 = vmatpush1.msra.mxu0 0.0
        %5020 = vmatprep.subr.mxu0 0.0
        %5021 = vmatpush1.msra.mxu0 0.0
        %5022 = vmatprep.subr.mxu0 0.0
        %5023 = vmatpush1.msra.mxu0 0.0
        %5024 = vmatprep.subr.mxu0 0.0
        %5025 = vmatpush1.msra.mxu0 0.0
        %5026 = vmatprep.subr.mxu0 0.0
        %5027 = vmatpush1.msra.mxu0 0.0
        %5028 = vmatprep.subr.mxu0 0.0
        %5029 = vmatpush1.msra.mxu0 0.0
        %5030 = vmatprep.subr.mxu0 0.0
        %5031 = vmatpush1.msra.mxu0 0.0
        %5032 = vmatprep.mubr.f32.mxu0 0.0
        %5033 = vmatmul.mubr.f32.gmra.mrb[0].mxu0 %v4966
        %v5034 = vpop.f32.mrb[0].mxu0
        %v5035 = vadd.f32 0.0, %v5034
        %v5036 = vpop.f32.mrb[0].mxu0
        %5037 = vdwg.mxu0
        %v5038 = vadd.f32 %v4948, %v5035
        %5039 = vst [vmem:[%s578] sm:$0x1] %v5038
        %s5040 = sand.u32 %s361, 1
        %s5041 = scalar_lea.sflag [#allocation5], %s5040
        %s5042 = sand.u32 %s361, 1
        %s5043 = scalar_lea.vmem [#allocation15], %s5042
        // Predicated region
        $region109: #{forward.1} parent=79 // pred_check
          %p5044 = pneg %p371
        $region110: #{forward.1} parent=79 // pred_check_branch
          %5046 = sbr.rel (%p5044) target = $region112
        $region111: #{forward.1} parent=79 // pred_region
          %s5048 = ssub.s32 16, 16
          %5049 = vsyncadd %s5041, %s5048
          %s5050 = smul.addr %s33, 16
          %s5051 = scalar_lea.hbm %s15, %s5050
          %s5053 = sshll.u32 %s5043, 4
          %s5054 = int_to_ptr.vmem [resolvable:$true] %s5053
          %5056 = dma.vmem_to_hbm [thread:$0]  %s5054, 16, %s5051, %s5041
        $region112: #{forward.1} parent=79 // pred_fallthru
          _
      $region80: #{forward.1} parent=5 // pred_fallthru
        _
      %p5057 = scmp.le.s32.totalorder 2, %s28
      // Predicated region
      $region113: #{forward.1} parent=5 // pred_check
        %p5058 = pneg %p5057
      $region114: #{forward.1} parent=5 // pred_check_branch
        %5060 = sbr.rel (%p5058) target = $region116
      $region115: #{forward.1} parent=5 // pred_region
        %s5061 = ssub.s32 %s28, 2
        // Predicated region
        $region117: #{forward.1} parent=115 // pred_check
          %p5062 = pneg %p377
        $region118: #{forward.1} parent=115 // pred_check_branch
          %5064 = sbr.rel (%p5062) target = $region120
        $region119: #{forward.1} parent=115 // pred_region
          %s5065 = sand.u32 %s362, 1
          %s5066 = scalar_lea.sflag [#allocation5], %s5065
          %s5067 = sand.u32 %s362, 1
          %s5068 = scalar_lea.vmem [#allocation15], %s5067
          %5069 = dma.done %s5066, 16
        $region120: #{forward.1} parent=115 // pred_fallthru
          _
      $region116: #{forward.1} parent=5 // pred_fallthru
        _
    $region6: #{forward.1} parent=1 // loop_footer
      %s32 = sadd.s32 1, %s28
    $region7: #{forward.1} parent=1 // loop_footer_branch
      %27 = sbr.rel target = $region3
    $region8: #{forward.1} parent=1 // loop_exit
      _
    %5070 = vsyncpa [#allocation4], 1
    %s5071 = scalar_lea.sflag [#allocation4], 1
    %5072 = vsyncpa %s5071, 1
    %5073 = vsyncpa [#allocation7], 1
    %5074 = vsyncpa [#allocation10], 1
    %5075 = vsyncpa [#allocation13], 1
    %5076 = vsyncpa [#allocation5], 1
    %s5077 = scalar_lea.sflag [#allocation5], 1
    %5078 = vsyncpa %s5077, 1

</llo_original>
